<compile_context>
chip_gen: v5e
topology: v5e:2x2
jax: 0.10.0
libtpu: 0.0.40
codegen_flags: <defaults>
</compile_context>

<pallas_src>
import functools

import jax
import jax.numpy as jnp
from jax import lax
from jax.experimental import pallas as pl
from jax.experimental.pallas import tpu as pltpu

LEAKY_SLOPE = 0.01   # nn.LeakyReLU() default
BN_EPS = 1e-5        # nn.BatchNorm2d default


# ----------------------------------------------------------------------------
# Pallas kernels
# ----------------------------------------------------------------------------
def _fc_kernel(x_ref, w_ref, out_ref):
    out_ref[...] = jnp.dot(x_ref[...], w_ref[...],
                           preferred_element_type=jnp.float32)


def _deconv_leaky_bn_kernel(xcol_ref, w_ref, scale_ref, shift_ref, out_ref, *,
                            slope):
    # xcol_ref: [1, M, K]   w_ref: [1, K, TN]   scale/shift: [1, TN]
    y = jnp.dot(xcol_ref[0], w_ref[0], preferred_element_type=jnp.float32)
    y = jnp.where(y >= 0.0, y, slope * y)              # LeakyReLU
    out_ref[0] = y * scale_ref[...] + shift_ref[...]   # eval-mode BatchNorm


def _deconv_bias_tanh_kernel(xcol_ref, w_ref, bias_ref, out_ref):
    y = jnp.dot(xcol_ref[0], w_ref[0], preferred_element_type=jnp.float32)
    out_ref[0] = jnp.tanh(y + bias_ref[...])


# ----------------------------------------------------------------------------
# pallas_call wrappers
# ----------------------------------------------------------------------------
def fc1_layer(x, w_t, *, tn=256):
    """x: [B, L] @ w_t: [L, N] -> [B, N], tiled over N."""
    B, L = x.shape
    N = w_t.shape[1]
    tn = min(tn, N)
    return pl.pallas_call(
        _fc_kernel,
        out_shape=jax.ShapeDtypeStruct((B, N), jnp.float32),
        grid_spec=pltpu.PrefetchScalarGridSpec(
            num_scalar_prefetch=0,
            grid=(pl.cdiv(N, tn),),
            in_specs=[pl.BlockSpec((B, L), lambda j: (0, 0)),
                      pl.BlockSpec((L, tn), lambda j: (0, j))],
            out_specs=pl.BlockSpec((B, tn), lambda j: (0, j)),
        ),
        compiler_params=pltpu.CompilerParams(
            dimension_semantics=("parallel",)),
    )(x, w_t)


def deconv_leaky_bn(xcol, w_col, scale, shift, *, tn=128):
    """Fused phase-matmul + LeakyReLU + BatchNorm(eval).

    xcol: [4, M, K], w_col: [4, K, Cout], scale/shift: [1, Cout]
    returns [4, M, Cout].
    """
    _, M, K = xcol.shape
    cout = w_col.shape[-1]
    tn = min(tn, cout)
    return pl.pallas_call(
        functools.partial(_deconv_leaky_bn_kernel, slope=LEAKY_SLOPE),
        out_shape=jax.ShapeDtypeStruct((4, M, cout), jnp.float32),
        grid_spec=pltpu.PrefetchScalarGridSpec(
            num_scalar_prefetch=0,
            grid=(4, pl.cdiv(cout, tn)),
            in_specs=[
                pl.BlockSpec((1, M, K), lambda p, j: (p, 0, 0)),
                pl.BlockSpec((1, K, tn), lambda p, j: (p, 0, j)),
                pl.BlockSpec((1, tn), lambda p, j: (0, j)),
                pl.BlockSpec((1, tn), lambda p, j: (0, j)),
            ],
            out_specs=pl.BlockSpec((1, M, tn), lambda p, j: (p, 0, j)),
        ),
        compiler_params=pltpu.CompilerParams(
            dimension_semantics=("parallel", "parallel")),
    )(xcol, w_col, scale, shift)


def deconv_bias_tanh(xcol, w_col, bias, *, tn=128):
    """Fused phase-matmul + bias + tanh (final conv5 layer)."""
    _, M, K = xcol.shape
    cout = w_col.shape[-1]
    tn = min(tn, cout)
    return pl.pallas_call(
        _deconv_bias_tanh_kernel,
        out_shape=jax.ShapeDtypeStruct((4, M, cout), jnp.float32),
        grid_spec=pltpu.PrefetchScalarGridSpec(
            num_scalar_prefetch=0,
            grid=(4, pl.cdiv(cout, tn)),
            in_specs=[
                pl.BlockSpec((1, M, K), lambda p, j: (p, 0, 0)),
                pl.BlockSpec((1, K, tn), lambda p, j: (p, 0, j)),
                pl.BlockSpec((1, tn), lambda p, j: (0, j)),
            ],
            out_specs=pl.BlockSpec((1, M, tn), lambda p, j: (p, 0, j)),
        ),
        compiler_params=pltpu.CompilerParams(
            dimension_semantics=("parallel", "parallel")),
    )(xcol, w_col, bias)


# ----------------------------------------------------------------------------
# Layout plumbing (wrapper side, tiny activation tensors)
# ----------------------------------------------------------------------------
def _im2col_deconv(x):
    """x: [B, H, W, C] NHWC -> [4, B*H*W, 4*C] phase-major im2col.

    ConvTranspose(k=4,s=2,p=1): output phase (ph, pw) at (2m+ph, 2n+pw) sums
    the 2x2 neighborhood of the zero-padded input starting at (m+ph, n+pw).
    """
    B, H, W, C = x.shape
    xp = jnp.pad(x, ((0, 0), (1, 1), (1, 1), (0, 0)))
    phases = []
    for ph in range(2):
        for pw in range(2):
            taps = []
            for dh in range(2):
                for dw in range(2):
                    taps.append(xp[:, ph + dh:ph + dh + H,
                                   pw + dw:pw + dw + W, :])
            phases.append(jnp.concatenate(taps, axis=-1).reshape(B * H * W,
                                                                 4 * C))
    return jnp.stack(phases, axis=0)


def _pack_deconv_weight(w):
    """w: [Cin, Cout, 4, 4] (torch ConvTranspose2d layout) -> [4, 4*Cin, Cout].

    Tap (dh, dw) of phase (ph, pw) uses kernel element (3-ph-2*dh, 3-pw-2*dw);
    tap ordering matches _im2col_deconv.
    """
    phases = []
    for ph in range(2):
        for pw in range(2):
            taps = []
            for dh in range(2):
                for dw in range(2):
                    kh = (3 - ph) - 2 * dh
                    kw = (3 - pw) - 2 * dw
                    taps.append(w[:, :, kh, kw])           # [Cin, Cout]
            phases.append(jnp.concatenate(taps, axis=0))   # [4*Cin, Cout]
    return jnp.stack(phases, axis=0)


def _interleave_phases(y, B, H, W):
    """y: [4, B*H*W, C] (phase index = 2*ph + pw) -> [B, 2H, 2W, C]."""
    C = y.shape[-1]
    y = y.reshape(2, 2, B, H, W, C)
    y = jnp.transpose(y, (2, 3, 0, 4, 1, 5))     # [B, H, 2, W, 2, C]
    return y.reshape(B, 2 * H, 2 * W, C)         # pure relabel of leading dims


# ----------------------------------------------------------------------------
# Full forward (input_scale = 1 path of generator32.forward)
# ----------------------------------------------------------------------------
@jax.jit
def generator32_forward(x, q):
    B = x.shape[0]
    c1 = q["fc1_w_t"].shape[1] // 4

    h = fc1_layer(x, q["fc1_w_t"])                        # [B, 4*c1]
    h = h.reshape(B, c1, 2, 2).transpose(0, 2, 3, 1)      # NHWC [B, 2, 2, c1]

    # conv2 / conv3 / conv4, each fused with LeakyReLU + BatchNorm(eval)
    for (w_col, scale, shift) in q["deconv"]:
        _, H, W, _ = h.shape
        y = deconv_leaky_bn(_im2col_deconv(h), w_col, scale, shift)
        h = _interleave_phases(y, B, H, W)

    # conv5 (+ bias) + tanh; output channels padded 3 -> 128 for lane density
    _, H, W, _ = h.shape
    y = deconv_bias_tanh(_im2col_deconv(h), q["conv5_w_col"], q["conv5_b"])
    h = _interleave_phases(y, B, H, W)[..., :3]
    return jnp.transpose(h, (0, 3, 1, 2))                 # NCHW [B, 3, 2H, 2W]


# ----------------------------------------------------------------------------
# Parameters
# ----------------------------------------------------------------------------
def make_params(key, latent, c1, c2, c3, c4):
    ks = jax.random.split(key, 12)
    p = {}
    p["fc1_w"] = jax.random.normal(ks[0], (4 * c1, latent), jnp.float32) * 0.05
    p["conv2_w"] = jax.random.normal(ks[1], (c1, c2, 4, 4), jnp.float32) * 0.05
    p["conv3_w"] = jax.random.normal(ks[2], (c2, c3, 4, 4), jnp.float32) * 0.05
    p["conv4_w"] = jax.random.normal(ks[3], (c3, c4, 4, 4), jnp.float32) * 0.05
    p["conv5_w"] = jax.random.normal(ks[4], (c4, 3, 4, 4), jnp.float32) * 0.05
    p["conv5_b"] = jax.random.normal(ks[5], (3,), jnp.float32) * 0.05
    for i, c in zip((2, 3, 4), (c2, c3, c4)):
        k = jax.random.split(ks[5 + i], 4)
        p[f"bn{i}_gamma"] = 1.0 + 0.02 * jax.random.normal(k[0], (c,), jnp.float32)
        p[f"bn{i}_beta"] = 0.02 * jax.random.normal(k[1], (c,), jnp.float32)
        p[f"bn{i}_mean"] = 0.1 * jax.random.normal(k[2], (c,), jnp.float32)
        p[f"bn{i}_var"] = 1.0 + 0.1 * jax.nn.softplus(
            jax.random.normal(k[3], (c,), jnp.float32))
    return p


def prepare_pallas_params(p, *, cout_pad=128):
    q = {"fc1_w_t": p["fc1_w"].T, "deconv": []}
    for i, wname in zip((2, 3, 4), ("conv2_w", "conv3_w", "conv4_w")):
        w_col = _pack_deconv_weight(p[wname])              # [4, 4*Cin, Cout]
        inv = p[f"bn{i}_gamma"] / jnp.sqrt(p[f"bn{i}_var"] + BN_EPS)
        scale = inv.reshape(1, -1)
        shift = (p[f"bn{i}_beta"] - p[f"bn{i}_mean"] * inv).reshape(1, -1)
        q["deconv"].append((w_col, scale, shift))
    # conv5: zero-pad 3 output channels to a full lane width
    w5 = jnp.pad(p["conv5_w"], ((0, 0), (0, cout_pad - 3), (0, 0), (0, 0)))
    q["conv5_w_col"] = _pack_deconv_weight(w5)             # [4, 4*c4, 128]
    q["conv5_b"] = jnp.pad(p["conv5_b"], (0, cout_pad - 3)).reshape(1, cout_pad)
    return q


# ----------------------------------------------------------------------------
# Pure-JAX reference (independent formulation via dilated convolution)
# ----------------------------------------------------------------------------
def _leaky(x):
    return jnp.where(x >= 0.0, x, LEAKY_SLOPE * x)


def _bn_eval(x, gamma, beta, mean, var):
    inv = gamma / jnp.sqrt(var + BN_EPS)
    return (x - mean[None, :, None, None]) * inv[None, :, None, None] \
        + beta[None, :, None, None]


def _conv_transpose_ref(x, w):
    # x: [B, Cin, H, W]; w: [Cin, Cout, 4, 4] (torch layout), stride 2, pad 1
    w_eq = jnp.transpose(w, (1, 0, 2, 3))[:, :, ::-1, ::-1]
    return lax.conv_general_dilated(
        x, w_eq, window_strides=(1, 1), padding=((2, 2), (2, 2)),
        lhs_dilation=(2, 2), dimension_numbers=("NCHW", "OIHW", "NCHW"),
        precision=lax.Precision.HIGHEST)


def generator32_ref(x, p):
    B = x.shape[0]
    c1 = p["fc1_w"].shape[0] // 4
    h = jnp.dot(x, p["fc1_w"].T, precision=lax.Precision.HIGHEST)
    h = h.reshape(B, c1, 2, 2)
    for i, wname in zip((2, 3, 4), ("conv2_w", "conv3_w", "conv4_w")):
        h = _conv_transpose_ref(h, p[wname])
        h = _leaky(h)
        h = _bn_eval(h, p[f"bn{i}_gamma"], p[f"bn{i}_beta"],
                     p[f"bn{i}_mean"], p[f"bn{i}_var"])
    h = _conv_transpose_ref(h, p["conv5_w"]) + p["conv5_b"][None, :, None, None]
    return jnp.tanh(h)


# ----------------------------------------------------------------------------
if __name__ == "__main__":
    B = 2
    latent = 128                          # latent_size (lane-aligned)
    c1, c2, c3, c4 = 256, 256, 128, 128   # scaled-down channel widths

    key = jax.random.PRNGKey(0)
    kx, kp = jax.random.split(key)
    x = jax.random.normal(kx, (B, latent), jnp.float32)
    params = make_params(kp, latent, c1, c2, c3, c4)
    q = prepare_pallas_params(params)

    out = generator32_forward(x, q)
    out = jax.block_until_ready(out)

    ref = generator32_ref(x, params)
    assert out.shape == (B, 3, 32, 32), out.shape
    assert out.dtype == jnp.float32
    assert bool(jnp.allclose(out, ref, atol=3e-2, rtol=0.0)), \
        f"mismatch vs reference, max abs err = {jnp.max(jnp.abs(out - ref))}"

    print("KERNEL_OK")
</pallas_src>

<mosaic_0001>
module attributes {stable_mosaic.version = 11 : i64} {
  func.func @_fc_kernel(%arg0: i32, %arg1: memref<2x128xf32, #tpu.memory_space<vmem>>, %arg2: memref<128x256xf32, #tpu.memory_space<vmem>>, %arg3: memref<2x256xf32, #tpu.memory_space<vmem>>) attributes {dimension_semantics = [#tpu.dimension_semantics<parallel>], iteration_bounds = array<i64: 4>, scalar_prefetch = 0 : i64, scratch_operands = 0 : i64, tpu.core_type = #tpu.core_type<tc>, window_params = [{pipeline_mode = #tpu.pipeline_mode<synchronous>, transform_indices = @transform_0, window_bounds = array<i64: 2, 128>}, {transform_indices = @transform_1, window_bounds = array<i64: 128, 256>}, {transform_indices = @transform_2, window_bounds = array<i64: 2, 256>}]} {
    %c0 = arith.constant 0 : index
    %c0_0 = arith.constant 0 : index
    %0 = vector.load %arg1[%c0, %c0_0] : memref<2x128xf32, #tpu.memory_space<vmem>>, vector<2x128xf32>
    %c0_1 = arith.constant 0 : index
    %c0_2 = arith.constant 0 : index
    %1 = vector.load %arg2[%c0_1, %c0_2] : memref<128x256xf32, #tpu.memory_space<vmem>>, vector<128x256xf32>
    %cst = arith.constant dense<0.000000e+00> : vector<2x256xf32>
    %2 = tpu.matmul %0, %1, %cst {dimension_numbers = #tpu.dot_dimension_numbers<[1], [0], [0], [1], [0, 0, 1, 1], [], []>} : vector<2x128xf32>, vector<128x256xf32>, vector<2x256xf32> -> vector<2x256xf32>
    %c0_3 = arith.constant 0 : index
    %c0_4 = arith.constant 0 : index
    %3 = vector.load %arg3[%c0_3, %c0_4] : memref<2x256xf32, #tpu.memory_space<vmem>>, vector<2x256xf32>
    tpu.vector_store %arg3[%c0_3, %c0_4], %2 {strides = array<i32>} : memref<2x256xf32, #tpu.memory_space<vmem>>, vector<2x256xf32>,
    return
  }
  func.func @transform_0(%arg0: i32) -> (i32, i32) {
    %c0_i32 = arith.constant 0 : i32
    %c0_i32_0 = arith.constant 0 : i32
    %c0_i32_1 = arith.constant 0 : i32
    return %c0_i32, %c0_i32_0 : i32, i32
  }
  func.func @transform_1(%arg0: i32) -> (i32, i32) {
    %c0_i32 = arith.constant 0 : i32
    %c0_i32_0 = arith.constant 0 : i32
    return %c0_i32, %arg0 : i32, i32
  }
  func.func @transform_2(%arg0: i32) -> (i32, i32) {
    %c0_i32 = arith.constant 0 : i32
    %c0_i32_0 = arith.constant 0 : i32
    return %c0_i32, %arg0 : i32, i32
  }
}

module attributes {stable_mosaic.version = 11 : i64} {
  func.func @_deconv_leaky_bn_kernel(%arg0: i32, %arg1: i32, %arg2: memref<1x8x1024xf32, #tpu.memory_space<vmem>>, %arg3: memref<1x1024x128xf32, #tpu.memory_space<vmem>>, %arg4: memref<1x128xf32, #tpu.memory_space<vmem>>, %arg5: memref<1x128xf32, #tpu.memory_space<vmem>>, %arg6: memref<1x8x128xf32, #tpu.memory_space<vmem>>) attributes {dimension_semantics = [#tpu.dimension_semantics<parallel>, #tpu.dimension_semantics<parallel>], iteration_bounds = array<i64: 4, 2>, scalar_prefetch = 0 : i64, scratch_operands = 0 : i64, tpu.core_type = #tpu.core_type<tc>, window_params = [{transform_indices = @transform_0, window_bounds = array<i64: 1, 8, 1024>}, {transform_indices = @transform_1, window_bounds = array<i64: 1, 1024, 128>}, {transform_indices = @transform_2, window_bounds = array<i64: 1, 128>}, {transform_indices = @transform_3, window_bounds = array<i64: 1, 128>}, {transform_indices = @transform_4, window_bounds = array<i64: 1, 8, 128>}]} {
    %c0 = arith.constant 0 : index
    %c0_0 = arith.constant 0 : index
    %c0_1 = arith.constant 0 : index
    %0 = vector.load %arg2[%c0, %c0_0, %c0_1] : memref<1x8x1024xf32, #tpu.memory_space<vmem>>, vector<1x8x1024xf32>
    %1 = vector.shape_cast %0 : vector<1x8x1024xf32> to vector<8x1024xf32>
    %c0_2 = arith.constant 0 : index
    %c0_3 = arith.constant 0 : index
    %c0_4 = arith.constant 0 : index
    %2 = vector.load %arg3[%c0_2, %c0_3, %c0_4] : memref<1x1024x128xf32, #tpu.memory_space<vmem>>, vector<1x1024x128xf32>
    %3 = vector.shape_cast %2 : vector<1x1024x128xf32> to vector<1024x128xf32>
    %cst = arith.constant dense<0.000000e+00> : vector<8x128xf32>
    %4 = tpu.matmul %1, %3, %cst {dimension_numbers = #tpu.dot_dimension_numbers<[1], [0], [0], [1], [0, 0, 1, 1], [], []>} : vector<8x1024xf32>, vector<1024x128xf32>, vector<8x128xf32> -> vector<8x128xf32>
    %cst_5 = arith.constant 0.000000e+00 : f32
    %5 = vector.broadcast %cst_5 : f32 to vector<8x128xf32>
    %6 = arith.cmpf oge, %4, %5 : vector<8x128xf32>
    %cst_6 = arith.constant 0.00999999977 : f32
    %7 = vector.broadcast %cst_6 : f32 to vector<8x128xf32>
    %8 = arith.mulf %7, %4 : vector<8x128xf32>
    %9 = arith.select %6, %4, %8 : vector<8x128xi1>, vector<8x128xf32>
    %c0_7 = arith.constant 0 : index
    %c0_8 = arith.constant 0 : index
    %10 = vector.load %arg4[%c0_7, %c0_8] : memref<1x128xf32, #tpu.memory_space<vmem>>, vector<1x128xf32>
    %11 = vector.broadcast %10 : vector<1x128xf32> to vector<8x128xf32>
    %12 = arith.mulf %9, %11 : vector<8x128xf32>
    %c0_9 = arith.constant 0 : index
    %c0_10 = arith.constant 0 : index
    %13 = vector.load %arg5[%c0_9, %c0_10] : memref<1x128xf32, #tpu.memory_space<vmem>>, vector<1x128xf32>
    %14 = vector.broadcast %13 : vector<1x128xf32> to vector<8x128xf32>
    %15 = arith.addf %12, %14 : vector<8x128xf32>
    %c0_11 = arith.constant 0 : index
    %c0_12 = arith.constant 0 : index
    %c0_13 = arith.constant 0 : index
    %16 = vector.load %arg6[%c0_11, %c0_12, %c0_13] : memref<1x8x128xf32, #tpu.memory_space<vmem>>, vector<1x8x128xf32>
    %17 = vector.shape_cast %16 : vector<1x8x128xf32> to vector<8x128xf32>
    %18 = vector.shape_cast %15 : vector<8x128xf32> to vector<1x8x128xf32>
    tpu.vector_store %arg6[%c0_11, %c0_12, %c0_13], %18 {strides = array<i32>} : memref<1x8x128xf32, #tpu.memory_space<vmem>>, vector<1x8x128xf32>,
    return
  }
  func.func @transform_0(%arg0: i32, %arg1: i32) -> (i32, i32, i32) {
    %c0_i32 = arith.constant 0 : i32
    %c0_i32_0 = arith.constant 0 : i32
    %c0_i32_1 = arith.constant 0 : i32
    return %arg0, %c0_i32, %c0_i32_0 : i32, i32, i32
  }
  func.func @transform_1(%arg0: i32, %arg1: i32) -> (i32, i32, i32) {
    %c0_i32 = arith.constant 0 : i32
    %c0_i32_0 = arith.constant 0 : i32
    return %arg0, %c0_i32, %arg1 : i32, i32, i32
  }
  func.func @transform_2(%arg0: i32, %arg1: i32) -> (i32, i32) {
    %c0_i32 = arith.constant 0 : i32
    %c0_i32_0 = arith.constant 0 : i32
    return %c0_i32, %arg1 : i32, i32
  }
  func.func @transform_3(%arg0: i32, %arg1: i32) -> (i32, i32) {
    %c0_i32 = arith.constant 0 : i32
    %c0_i32_0 = arith.constant 0 : i32
    return %c0_i32, %arg1 : i32, i32
  }
  func.func @transform_4(%arg0: i32, %arg1: i32) -> (i32, i32, i32) {
    %c0_i32 = arith.constant 0 : i32
    %c0_i32_0 = arith.constant 0 : i32
    return %arg0, %c0_i32, %arg1 : i32, i32, i32
  }
}

module attributes {stable_mosaic.version = 11 : i64} {
  func.func @_deconv_leaky_bn_kernel(%arg0: i32, %arg1: i32, %arg2: memref<1x32x1024xf32, #tpu.memory_space<vmem>>, %arg3: memref<1x1024x128xf32, #tpu.memory_space<vmem>>, %arg4: memref<1x128xf32, #tpu.memory_space<vmem>>, %arg5: memref<1x128xf32, #tpu.memory_space<vmem>>, %arg6: memref<1x32x128xf32, #tpu.memory_space<vmem>>) attributes {dimension_semantics = [#tpu.dimension_semantics<parallel>, #tpu.dimension_semantics<parallel>], iteration_bounds = array<i64: 4, 1>, scalar_prefetch = 0 : i64, scratch_operands = 0 : i64, tpu.core_type = #tpu.core_type<tc>, window_params = [{transform_indices = @transform_0, window_bounds = array<i64: 1, 32, 1024>}, {transform_indices = @transform_1, window_bounds = array<i64: 1, 1024, 128>}, {transform_indices = @transform_2, window_bounds = array<i64: 1, 128>}, {transform_indices = @transform_3, window_bounds = array<i64: 1, 128>}, {transform_indices = @transform_4, window_bounds = array<i64: 1, 32, 128>}]} {
    %c0 = arith.constant 0 : index
    %c0_0 = arith.constant 0 : index
    %c0_1 = arith.constant 0 : index
    %0 = vector.load %arg2[%c0, %c0_0, %c0_1] : memref<1x32x1024xf32, #tpu.memory_space<vmem>>, vector<1x32x1024xf32>
    %1 = vector.shape_cast %0 : vector<1x32x1024xf32> to vector<32x1024xf32>
    %c0_2 = arith.constant 0 : index
    %c0_3 = arith.constant 0 : index
    %c0_4 = arith.constant 0 : index
    %2 = vector.load %arg3[%c0_2, %c0_3, %c0_4] : memref<1x1024x128xf32, #tpu.memory_space<vmem>>, vector<1x1024x128xf32>
    %3 = vector.shape_cast %2 : vector<1x1024x128xf32> to vector<1024x128xf32>
    %cst = arith.constant dense<0.000000e+00> : vector<32x128xf32>
    %4 = tpu.matmul %1, %3, %cst {dimension_numbers = #tpu.dot_dimension_numbers<[1], [0], [0], [1], [0, 0, 1, 1], [], []>} : vector<32x1024xf32>, vector<1024x128xf32>, vector<32x128xf32> -> vector<32x128xf32>
    %cst_5 = arith.constant 0.000000e+00 : f32
    %5 = vector.broadcast %cst_5 : f32 to vector<32x128xf32>
    %6 = arith.cmpf oge, %4, %5 : vector<32x128xf32>
    %cst_6 = arith.constant 0.00999999977 : f32
    %7 = vector.broadcast %cst_6 : f32 to vector<32x128xf32>
    %8 = arith.mulf %7, %4 : vector<32x128xf32>
    %9 = arith.select %6, %4, %8 : vector<32x128xi1>, vector<32x128xf32>
    %c0_7 = arith.constant 0 : index
    %c0_8 = arith.constant 0 : index
    %10 = vector.load %arg4[%c0_7, %c0_8] : memref<1x128xf32, #tpu.memory_space<vmem>>, vector<1x128xf32>
    %11 = vector.broadcast %10 : vector<1x128xf32> to vector<32x128xf32>
    %12 = arith.mulf %9, %11 : vector<32x128xf32>
    %c0_9 = arith.constant 0 : index
    %c0_10 = arith.constant 0 : index
    %13 = vector.load %arg5[%c0_9, %c0_10] : memref<1x128xf32, #tpu.memory_space<vmem>>, vector<1x128xf32>
    %14 = vector.broadcast %13 : vector<1x128xf32> to vector<32x128xf32>
    %15 = arith.addf %12, %14 : vector<32x128xf32>
    %c0_11 = arith.constant 0 : index
    %c0_12 = arith.constant 0 : index
    %c0_13 = arith.constant 0 : index
    %16 = vector.load %arg6[%c0_11, %c0_12, %c0_13] : memref<1x32x128xf32, #tpu.memory_space<vmem>>, vector<1x32x128xf32>
    %17 = vector.shape_cast %16 : vector<1x32x128xf32> to vector<32x128xf32>
    %18 = vector.shape_cast %15 : vector<32x128xf32> to vector<1x32x128xf32>
    tpu.vector_store %arg6[%c0_11, %c0_12, %c0_13], %18 {strides = array<i32>} : memref<1x32x128xf32, #tpu.memory_space<vmem>>, vector<1x32x128xf32>,
    return
  }
  func.func @transform_0(%arg0: i32, %arg1: i32) -> (i32, i32, i32) {
    %c0_i32 = arith.constant 0 : i32
    %c0_i32_0 = arith.constant 0 : i32
    %c0_i32_1 = arith.constant 0 : i32
    return %arg0, %c0_i32, %c0_i32_0 : i32, i32, i32
  }
  func.func @transform_1(%arg0: i32, %arg1: i32) -> (i32, i32, i32) {
    %c0_i32 = arith.constant 0 : i32
    %c0_i32_0 = arith.constant 0 : i32
    return %arg0, %c0_i32, %arg1 : i32, i32, i32
  }
  func.func @transform_2(%arg0: i32, %arg1: i32) -> (i32, i32) {
    %c0_i32 = arith.constant 0 : i32
    %c0_i32_0 = arith.constant 0 : i32
    return %c0_i32, %arg1 : i32, i32
  }
  func.func @transform_3(%arg0: i32, %arg1: i32) -> (i32, i32) {
    %c0_i32 = arith.constant 0 : i32
    %c0_i32_0 = arith.constant 0 : i32
    return %c0_i32, %arg1 : i32, i32
  }
  func.func @transform_4(%arg0: i32, %arg1: i32) -> (i32, i32, i32) {
    %c0_i32 = arith.constant 0 : i32
    %c0_i32_0 = arith.constant 0 : i32
    return %arg0, %c0_i32, %arg1 : i32, i32, i32
  }
}

module attributes {stable_mosaic.version = 11 : i64} {
  func.func @_deconv_leaky_bn_kernel(%arg0: i32, %arg1: i32, %arg2: memref<1x128x512xf32, #tpu.memory_space<vmem>>, %arg3: memref<1x512x128xf32, #tpu.memory_space<vmem>>, %arg4: memref<1x128xf32, #tpu.memory_space<vmem>>, %arg5: memref<1x128xf32, #tpu.memory_space<vmem>>, %arg6: memref<1x128x128xf32, #tpu.memory_space<vmem>>) attributes {dimension_semantics = [#tpu.dimension_semantics<parallel>, #tpu.dimension_semantics<parallel>], iteration_bounds = array<i64: 4, 1>, scalar_prefetch = 0 : i64, scratch_operands = 0 : i64, tpu.core_type = #tpu.core_type<tc>, window_params = [{transform_indices = @transform_0, window_bounds = array<i64: 1, 128, 512>}, {transform_indices = @transform_1, window_bounds = array<i64: 1, 512, 128>}, {transform_indices = @transform_2, window_bounds = array<i64: 1, 128>}, {transform_indices = @transform_3, window_bounds = array<i64: 1, 128>}, {transform_indices = @transform_4, window_bounds = array<i64: 1, 128, 128>}]} {
    %c0 = arith.constant 0 : index
    %c0_0 = arith.constant 0 : index
    %c0_1 = arith.constant 0 : index
    %0 = vector.load %arg2[%c0, %c0_0, %c0_1] : memref<1x128x512xf32, #tpu.memory_space<vmem>>, vector<1x128x512xf32>
    %1 = vector.shape_cast %0 : vector<1x128x512xf32> to vector<128x512xf32>
    %c0_2 = arith.constant 0 : index
    %c0_3 = arith.constant 0 : index
    %c0_4 = arith.constant 0 : index
    %2 = vector.load %arg3[%c0_2, %c0_3, %c0_4] : memref<1x512x128xf32, #tpu.memory_space<vmem>>, vector<1x512x128xf32>
    %3 = vector.shape_cast %2 : vector<1x512x128xf32> to vector<512x128xf32>
    %cst = arith.constant dense<0.000000e+00> : vector<128x128xf32>
    %4 = tpu.matmul %1, %3, %cst {dimension_numbers = #tpu.dot_dimension_numbers<[1], [0], [0], [1], [0, 0, 1, 1], [], []>} : vector<128x512xf32>, vector<512x128xf32>, vector<128x128xf32> -> vector<128x128xf32>
    %cst_5 = arith.constant 0.000000e+00 : f32
    %5 = vector.broadcast %cst_5 : f32 to vector<128x128xf32>
    %6 = arith.cmpf oge, %4, %5 : vector<128x128xf32>
    %cst_6 = arith.constant 0.00999999977 : f32
    %7 = vector.broadcast %cst_6 : f32 to vector<128x128xf32>
    %8 = arith.mulf %7, %4 : vector<128x128xf32>
    %9 = arith.select %6, %4, %8 : vector<128x128xi1>, vector<128x128xf32>
    %c0_7 = arith.constant 0 : index
    %c0_8 = arith.constant 0 : index
    %10 = vector.load %arg4[%c0_7, %c0_8] : memref<1x128xf32, #tpu.memory_space<vmem>>, vector<1x128xf32>
    %11 = vector.broadcast %10 : vector<1x128xf32> to vector<128x128xf32>
    %12 = arith.mulf %9, %11 : vector<128x128xf32>
    %c0_9 = arith.constant 0 : index
    %c0_10 = arith.constant 0 : index
    %13 = vector.load %arg5[%c0_9, %c0_10] : memref<1x128xf32, #tpu.memory_space<vmem>>, vector<1x128xf32>
    %14 = vector.broadcast %13 : vector<1x128xf32> to vector<128x128xf32>
    %15 = arith.addf %12, %14 : vector<128x128xf32>
    %c0_11 = arith.constant 0 : index
    %c0_12 = arith.constant 0 : index
    %c0_13 = arith.constant 0 : index
    %16 = vector.load %arg6[%c0_11, %c0_12, %c0_13] : memref<1x128x128xf32, #tpu.memory_space<vmem>>, vector<1x128x128xf32>
    %17 = vector.shape_cast %16 : vector<1x128x128xf32> to vector<128x128xf32>
    %18 = vector.shape_cast %15 : vector<128x128xf32> to vector<1x128x128xf32>
    tpu.vector_store %arg6[%c0_11, %c0_12, %c0_13], %18 {strides = array<i32>} : memref<1x128x128xf32, #tpu.memory_space<vmem>>, vector<1x128x128xf32>,
    return
  }
  func.func @transform_0(%arg0: i32, %arg1: i32) -> (i32, i32, i32) {
    %c0_i32 = arith.constant 0 : i32
    %c0_i32_0 = arith.constant 0 : i32
    %c0_i32_1 = arith.constant 0 : i32
    return %arg0, %c0_i32, %c0_i32_0 : i32, i32, i32
  }
  func.func @transform_1(%arg0: i32, %arg1: i32) -> (i32, i32, i32) {
    %c0_i32 = arith.constant 0 : i32
    %c0_i32_0 = arith.constant 0 : i32
    return %arg0, %c0_i32, %arg1 : i32, i32, i32
  }
  func.func @transform_2(%arg0: i32, %arg1: i32) -> (i32, i32) {
    %c0_i32 = arith.constant 0 : i32
    %c0_i32_0 = arith.constant 0 : i32
    return %c0_i32, %arg1 : i32, i32
  }
  func.func @transform_3(%arg0: i32, %arg1: i32) -> (i32, i32) {
    %c0_i32 = arith.constant 0 : i32
    %c0_i32_0 = arith.constant 0 : i32
    return %c0_i32, %arg1 : i32, i32
  }
  func.func @transform_4(%arg0: i32, %arg1: i32) -> (i32, i32, i32) {
    %c0_i32 = arith.constant 0 : i32
    %c0_i32_0 = arith.constant 0 : i32
    return %arg0, %c0_i32, %arg1 : i32, i32, i32
  }
}

module attributes {stable_mosaic.version = 11 : i64} {
  func.func @_deconv_bias_tanh_kernel(%arg0: i32, %arg1: i32, %arg2: memref<1x512x512xf32, #tpu.memory_space<vmem>>, %arg3: memref<1x512x128xf32, #tpu.memory_space<vmem>>, %arg4: memref<1x128xf32, #tpu.memory_space<vmem>>, %arg5: memref<1x512x128xf32, #tpu.memory_space<vmem>>) attributes {dimension_semantics = [#tpu.dimension_semantics<parallel>, #tpu.dimension_semantics<parallel>], iteration_bounds = array<i64: 4, 1>, scalar_prefetch = 0 : i64, scratch_operands = 0 : i64, tpu.core_type = #tpu.core_type<tc>, window_params = [{transform_indices = @transform_0, window_bounds = array<i64: 1, 512, 512>}, {transform_indices = @transform_1, window_bounds = array<i64: 1, 512, 128>}, {transform_indices = @transform_2, window_bounds = array<i64: 1, 128>}, {transform_indices = @transform_3, window_bounds = array<i64: 1, 512, 128>}]} {
    %c0 = arith.constant 0 : index
    %c0_0 = arith.constant 0 : index
    %c0_1 = arith.constant 0 : index
    %0 = vector.load %arg2[%c0, %c0_0, %c0_1] : memref<1x512x512xf32, #tpu.memory_space<vmem>>, vector<1x512x512xf32>
    %1 = vector.shape_cast %0 : vector<1x512x512xf32> to vector<512x512xf32>
    %c0_2 = arith.constant 0 : index
    %c0_3 = arith.constant 0 : index
    %c0_4 = arith.constant 0 : index
    %2 = vector.load %arg3[%c0_2, %c0_3, %c0_4] : memref<1x512x128xf32, #tpu.memory_space<vmem>>, vector<1x512x128xf32>
    %3 = vector.shape_cast %2 : vector<1x512x128xf32> to vector<512x128xf32>
    %cst = arith.constant dense<0.000000e+00> : vector<512x128xf32>
    %4 = tpu.matmul %1, %3, %cst {dimension_numbers = #tpu.dot_dimension_numbers<[1], [0], [0], [1], [0, 0, 1, 1], [], []>} : vector<512x512xf32>, vector<512x128xf32>, vector<512x128xf32> -> vector<512x128xf32>
    %c0_5 = arith.constant 0 : index
    %c0_6 = arith.constant 0 : index
    %5 = vector.load %arg4[%c0_5, %c0_6] : memref<1x128xf32, #tpu.memory_space<vmem>>, vector<1x128xf32>
    %6 = vector.broadcast %5 : vector<1x128xf32> to vector<512x128xf32>
    %7 = arith.addf %4, %6 : vector<512x128xf32>
    %8 = math.tanh %7 : vector<512x128xf32>
    %c0_7 = arith.constant 0 : index
    %c0_8 = arith.constant 0 : index
    %c0_9 = arith.constant 0 : index
    %9 = vector.load %arg5[%c0_7, %c0_8, %c0_9] : memref<1x512x128xf32, #tpu.memory_space<vmem>>, vector<1x512x128xf32>
    %10 = vector.shape_cast %9 : vector<1x512x128xf32> to vector<512x128xf32>
    %11 = vector.shape_cast %8 : vector<512x128xf32> to vector<1x512x128xf32>
    tpu.vector_store %arg5[%c0_7, %c0_8, %c0_9], %11 {strides = array<i32>} : memref<1x512x128xf32, #tpu.memory_space<vmem>>, vector<1x512x128xf32>,
    return
  }
  func.func @transform_0(%arg0: i32, %arg1: i32) -> (i32, i32, i32) {
    %c0_i32 = arith.constant 0 : i32
    %c0_i32_0 = arith.constant 0 : i32
    %c0_i32_1 = arith.constant 0 : i32
    return %arg0, %c0_i32, %c0_i32_0 : i32, i32, i32
  }
  func.func @transform_1(%arg0: i32, %arg1: i32) -> (i32, i32, i32) {
    %c0_i32 = arith.constant 0 : i32
    %c0_i32_0 = arith.constant 0 : i32
    return %arg0, %c0_i32, %arg1 : i32, i32, i32
  }
  func.func @transform_2(%arg0: i32, %arg1: i32) -> (i32, i32) {
    %c0_i32 = arith.constant 0 : i32
    %c0_i32_0 = arith.constant 0 : i32
    return %c0_i32, %arg1 : i32, i32
  }
  func.func @transform_3(%arg0: i32, %arg1: i32) -> (i32, i32, i32) {
    %c0_i32 = arith.constant 0 : i32
    %c0_i32_0 = arith.constant 0 : i32
    return %arg0, %c0_i32, %arg1 : i32, i32, i32
  }
}

</mosaic_0001>

<llo_original>
// kernel: generator32_forward.5
$region0: #{generator32_forward.5}
  #allocation0 [shape = 'u32[]', space=smem, size = 0x4, offset = 0x4, fixed_abs, tag = 'smem constant byte address 0x4 - core index']
  #allocation1 [shape = 'u32[72,128]{1,0:T(1,128)}', space=vmem, size = 0x9000, scoped, tag = 'internal scratch']
  %s0 = inlined_call_operand.hbm [shape: f32[2,128], index: 0, kind: input, shape index: {}]
  %s1 = inlined_call_operand.hbm [shape: f32[128,1024], index: 1, kind: input, shape index: {}]
  %s2 = inlined_call_operand.vmem [shape: f32[2,1024], index: 2, kind: output, shape index: {}]
  %s3 = sld [smem:[#allocation0]]
  $region49: #{generator32_forward.5} parent=0
    _
  %s5 = ssub.s32 1, %s3
  %s6 = scalar_select 0, %s5, %s3
  $region1: #{generator32_forward.5} parent=0
    #allocation2 [shape = 'u8[1024]{0}', space=vmem, size = 0x400, scoped, tag = 'input window, operand 0, single buffered']
    #allocation3 [shape = 's32[2]{0}', space=sflag, size = 0x8, scoped, tag = 'scoped memory for generator32_forward.5']
    #allocation4 [shape = 'u8[262144]{0}', space=vmem, size = 0x40000, scoped, tag = 'input window, operand 1']
    #allocation5 [shape = 's32[2]{0}', space=sflag, size = 0x8, scoped, tag = 'scoped memory for generator32_forward.5']
    %7 = vsyncpa [#allocation3], 0
    %8 = vsyncpa [#allocation5], 0
    %s9 = scalar_lea.sflag [#allocation5], 1
    %10 = vsyncpa %s9, 0
    loop: start=0, step=1, limit=6
    $region2: #{generator32_forward.5} parent=1 // loop_pre_header
      _
    $region3: #{generator32_forward.5} parent=1 // loop_header
      %s12 = sphi 0, %s16
      %p13 = scmp.ge.s32.totalorder %s12, 6
      %s20 = sphi 0, %s20
      %s22 = sphi 0, %s20
      %s23 = sphi 0, %s22
      %s37 = sphi 0, %s23
      %s43 = sphi 0, %s45
      %s46 = sphi 0, %s43
      %s47 = sphi 0, %s46
      %s63 = sphi 0, %s47
      %s69 = sphi 0, %s71
      %s72 = sphi 0, %s69
      %s73 = sphi 0, %s72
      %s89 = sphi 0, %s73
    $region4: #{generator32_forward.5} parent=1 // loop_header_branch
      %15 = sbr.rel (%p13) target = $region8
    $region5: #{generator32_forward.5} parent=1 // loop_body
      %s17 = ssub.s32 %s12, 1
      %s18 = ssub.s32 %s12, 2
      %s19 = sadd.s32 %s12, 1
      %s21 = sadd.s32 %s20, 1
      %p24 = scmp.eq.s32.totalorder %s12, 3
      %p25 = scmp.ne.s32.totalorder %s20, %s22
      %p26 = scmp.eq.s32.totalorder %s12, 0
      %p27 = por %p25, %p26
      %p28 = scmp.ne.s32.totalorder %s20, %s22
      %p29 = scmp.eq.s32.totalorder %s17, 3
      %p30 = por %p28, %p29
      %p31 = scmp.ne.s32.totalorder %s22, %s23
      %p32 = scmp.eq.s32.totalorder %s17, 0
      %p33 = por %p31, %p32
      %p34 = scmp.ne.s32.totalorder %s22, %s23
      %p35 = scmp.eq.s32.totalorder %s18, 3
      %p36 = por %p34, %p35
      %p38 = scmp.ne.s32.totalorder %s23, %s37
      %p39 = scmp.eq.s32.totalorder %s18, 0
      %p40 = por %p38, %p39
      %s41 = ssub.s32 %s12, %s19
      %p42 = scmp.eq.s32.totalorder %s41, 0
      %s44 = sadd.s32 %s43, 1
      %s45 = scalar_select %p42, %s43, %s44
      %p48 = pneg %p42
      %p49 = scmp.eq.s32.totalorder %s12, 3
      %p50 = por %p48, %p49
      %p51 = scmp.ne.s32.totalorder %s43, %s46
      %p52 = scmp.eq.s32.totalorder %s12, 0
      %p53 = por %p51, %p52
      %p54 = scmp.ne.s32.totalorder %s43, %s46
      %p55 = scmp.eq.s32.totalorder %s17, 3
      %p56 = por %p54, %p55
      %p57 = scmp.ne.s32.totalorder %s46, %s47
      %p58 = scmp.eq.s32.totalorder %s17, 0
      %p59 = por %p57, %p58
      %p60 = scmp.ne.s32.totalorder %s46, %s47
      %p61 = scmp.eq.s32.totalorder %s18, 3
      %p62 = por %p60, %p61
      %p64 = scmp.ne.s32.totalorder %s47, %s63
      %p65 = scmp.eq.s32.totalorder %s18, 0
      %p66 = por %p64, %p65
      %s67 = ssub.s32 %s12, %s19
      %p68 = scmp.eq.s32.totalorder %s67, 0
      %s70 = sadd.s32 %s69, 1
      %s71 = scalar_select %p68, %s69, %s70
      %p74 = pneg %p68
      %p75 = scmp.eq.s32.totalorder %s12, 3
      %p76 = por %p74, %p75
      %p77 = scmp.ne.s32.totalorder %s69, %s72
      %p78 = scmp.eq.s32.totalorder %s12, 0
      %p79 = por %p77, %p78
      %p80 = scmp.ne.s32.totalorder %s69, %s72
      %p81 = scmp.eq.s32.totalorder %s17, 3
      %p82 = por %p80, %p81
      %p83 = scmp.ne.s32.totalorder %s72, %s73
      %p84 = scmp.eq.s32.totalorder %s17, 0
      %p85 = por %p83, %p84
      %p86 = scmp.ne.s32.totalorder %s72, %s73
      %p87 = scmp.eq.s32.totalorder %s18, 3
      %p88 = por %p86, %p87
      %p90 = scmp.ne.s32.totalorder %s73, %s89
      %p91 = scmp.eq.s32.totalorder %s18, 0
      %p92 = por %p90, %p91
      %p93 = scmp.le.s32.totalorder 1, %s12
      %p94 = scmp.lt.s32.totalorder %s12, 5
      %p95 = pnand %p93, %p94
      %p96 = pneg %p95
      // Predicated region
      $region9: #{generator32_forward.5} parent=5 // pred_check
        _
      $region10: #{generator32_forward.5} parent=5 // pred_check_branch
        %98 = sbr.rel (%p95) target = $region12
      $region11: #{generator32_forward.5} parent=5 // pred_region
        %s99 = ssub.s32 %s12, 1
        // Predicated region
        $region13: #{generator32_forward.5} parent=11 // pred_check
          %p100 = pneg %p33
        $region14: #{generator32_forward.5} parent=11 // pred_check_branch
          %102 = sbr.rel (%p100) target = $region16
        $region15: #{generator32_forward.5} parent=11 // pred_region
          %104 = vsyncadd [#allocation3], 0
          %s106 = sshll.u32 %s0, 4
          %s107 = int_to_ptr.hbm [resolvable:$true] %s106
          %s108 = sshll.u32 [#allocation2], 4
          %s109 = int_to_ptr.vmem [resolvable:$true] %s108
          %111 = dma.hbm_to_vmem [thread:$0]  %s107, 32, %s109, [#allocation3]
        $region16: #{generator32_forward.5} parent=11 // pred_fallthru
          _
      $region12: #{generator32_forward.5} parent=5 // pred_fallthru
        _
      %p112 = scmp.lt.s32.totalorder %s12, 4
      // Predicated region
      $region17: #{generator32_forward.5} parent=5 // pred_check
        %p113 = pneg %p112
      $region18: #{generator32_forward.5} parent=5 // pred_check_branch
        %115 = sbr.rel (%p113) target = $region20
      $region19: #{generator32_forward.5} parent=5 // pred_region
        // Predicated region
        $region21: #{generator32_forward.5} parent=19 // pred_check
          %p116 = pneg %p53
        $region22: #{generator32_forward.5} parent=19 // pred_check_branch
          %118 = sbr.rel (%p116) target = $region24
        $region23: #{generator32_forward.5} parent=19 // pred_region
          %s119 = sand.u32 %s43, 1
          %s120 = scalar_lea.sflag [#allocation5], %s119
          %s121 = sand.u32 %s43, 1
          %s122 = smul.addr %s121, 256
          %s123 = scalar_lea.vmem [#allocation4], %s122
          %s124 = smul.u32 2, %s12
          %126 = vsyncadd %s120, 0
          %s127 = smul.addr %s124, 8
          %s128 = scalar_lea.hbm %s1, %s127
          %s129 = sshll.u32 %s128, 4
          %s130 = int_to_ptr.hbm [resolvable:$true] %s129
          %s131 = sshll.u32 %s123, 4
          %s132 = int_to_ptr.vmem [resolvable:$true] %s131
          %137 = dma.hbm_to_vmem [thread:$0]  %s130, 4096, %s132, %s120, 1024, 256, 16
        $region24: #{generator32_forward.5} parent=19 // pred_fallthru
          _
      $region20: #{generator32_forward.5} parent=5 // pred_fallthru
        _
      %p138 = scmp.le.s32.totalorder 1, %s12
      %p139 = scmp.lt.s32.totalorder %s12, 5
      %p140 = pnand %p138, %p139
      %p141 = pneg %p140
      // Predicated region
      $region25: #{generator32_forward.5} parent=5 // pred_check
        _
      $region26: #{generator32_forward.5} parent=5 // pred_check_branch
        %143 = sbr.rel (%p140) target = $region28
      $region27: #{generator32_forward.5} parent=5 // pred_region
        %s144 = ssub.s32 %s12, 1
        // Predicated region
        $region29: #{generator32_forward.5} parent=27 // pred_check
          %p145 = pneg %p33
        $region30: #{generator32_forward.5} parent=27 // pred_check_branch
          %147 = sbr.rel (%p145) target = $region32
        $region31: #{generator32_forward.5} parent=27 // pred_region
          %149 = dma.done [#allocation3], 32
        $region32: #{generator32_forward.5} parent=27 // pred_fallthru
          _
        %s150 = sand.u32 %s46, 1
        %s151 = scalar_lea.sflag [#allocation5], %s150
        %s152 = sand.u32 %s46, 1
        %s153 = smul.addr %s152, 256
        %s154 = scalar_lea.vmem [#allocation4], %s153
        // Predicated region
        $region33: #{generator32_forward.5} parent=27 // pred_check
          %p155 = pneg %p59
        $region34: #{generator32_forward.5} parent=27 // pred_check_branch
          %157 = sbr.rel (%p155) target = $region36
        $region35: #{generator32_forward.5} parent=27 // pred_region
          %159 = dma.done %s151, 4096
        $region36: #{generator32_forward.5} parent=27 // pred_fallthru
          _
        %p160 = pneg %p33
        %p161 = pneg %p30
        %s162 = sand.u32 %s46, 1
        %s163 = scalar_lea.sflag [#allocation5], %s162
        %s164 = sand.u32 %s46, 1
        %s165 = smul.addr %s164, 256
        %s166 = scalar_lea.vmem [#allocation4], %s165
        %p167 = pneg %p59
        %p168 = pneg %p56
        %p169 = pneg %p85
        %p170 = pneg %p82
        %s171 = smul.u32 2, %s17
        %p172 = scmp.lt.s32.totalorder %s171, 7
        %s173 = scalar_select %p172, %s171, 7
        %s174 = smul.addr %s173, 2
        %s175 = scalar_lea.vmem %s2, %s174
        %s176 = smul.u32 2, %s17
        %s177 = smul.u32 2, %s17
        %p178 = scmp.lt.s32.totalorder %s177, 7
        %s179 = scalar_select %p178, %s177, 7
        %s180 = smul.addr %s179, 2
        %s181 = scalar_lea.vmem %s2, %s180
        %s182 = smul.u32 2, %s17
        %v183 = vld [vmem:[#allocation2] sm:$0x3]
        %v184 = vld [vmem:[%s154] sm:$0xff]
        %v185 = vld [vmem:[%s154 + $0x8] sm:$0xff]
        %v186 = vld [vmem:[%s154 + $0x10] sm:$0xff]
        %v187 = vld [vmem:[%s154 + $0x18] sm:$0xff]
        %v188 = vld [vmem:[%s154 + $0x20] sm:$0xff]
        %v189 = vld [vmem:[%s154 + $0x28] sm:$0xff]
        %v190 = vld [vmem:[%s154 + $0x30] sm:$0xff]
        %v191 = vld [vmem:[%s154 + $0x38] sm:$0xff]
        %v192 = vld [vmem:[%s154 + $0x40] sm:$0xff]
        %v193 = vld [vmem:[%s154 + $0x48] sm:$0xff]
        %v194 = vld [vmem:[%s154 + $0x50] sm:$0xff]
        %v195 = vld [vmem:[%s154 + $0x58] sm:$0xff]
        %v196 = vld [vmem:[%s154 + $0x60] sm:$0xff]
        %v197 = vld [vmem:[%s154 + $0x68] sm:$0xff]
        %v198 = vld [vmem:[%s154 + $0x70] sm:$0xff]
        %v199 = vld [vmem:[%s154 + $0x78] sm:$0xff]
        %v200 = vld [vmem:[%s154 + $0x80] sm:$0xff]
        %v201 = vld [vmem:[%s154 + $0x88] sm:$0xff]
        %v202 = vld [vmem:[%s154 + $0x90] sm:$0xff]
        %v203 = vld [vmem:[%s154 + $0x98] sm:$0xff]
        %v204 = vld [vmem:[%s154 + $0xa0] sm:$0xff]
        %v205 = vld [vmem:[%s154 + $0xa8] sm:$0xff]
        %v206 = vld [vmem:[%s154 + $0xb0] sm:$0xff]
        %v207 = vld [vmem:[%s154 + $0xb8] sm:$0xff]
        %v208 = vld [vmem:[%s154 + $0xc0] sm:$0xff]
        %v209 = vld [vmem:[%s154 + $0xc8] sm:$0xff]
        %v210 = vld [vmem:[%s154 + $0xd0] sm:$0xff]
        %v211 = vld [vmem:[%s154 + $0xd8] sm:$0xff]
        %v212 = vld [vmem:[%s154 + $0xe0] sm:$0xff]
        %v213 = vld [vmem:[%s154 + $0xe8] sm:$0xff]
        %v214 = vld [vmem:[%s154 + $0xf0] sm:$0xff]
        %v215 = vld [vmem:[%s154 + $0xf8] sm:$0xff]
        %216 = vmatpush.msra.mxu0 %v214
        %217 = vmatpush.msra.mxu0 %v212
        %218 = vmatpush.msra.mxu0 %v210
        %219 = vmatpush.msra.mxu0 %v208
        %220 = vmatpush.msra.mxu0 %v206
        %221 = vmatpush.msra.mxu0 %v204
        %222 = vmatpush.msra.mxu0 %v202
        %223 = vmatpush.msra.mxu0 %v200
        %224 = vmatpush.msra.mxu0 %v198
        %225 = vmatpush.msra.mxu0 %v196
        %226 = vmatpush.msra.mxu0 %v194
        %227 = vmatpush.msra.mxu0 %v192
        %228 = vmatpush.msra.mxu0 %v190
        %229 = vmatpush.msra.mxu0 %v188
        %230 = vmatpush.msra.mxu0 %v186
        %231 = vmatpush.msra.mxu0 %v184
        %232 = vmatmul.f32.gmra.mxu0 %v183
        %v233 = vpop.f32.mrf.mxu0
        %v234 = vadd.f32 0.0, %v233
        %235 = vdwg.mxu0
        %236 = vmatpush.msra.mxu0 %v215
        %237 = vmatpush.msra.mxu0 %v213
        %238 = vmatpush.msra.mxu0 %v211
        %239 = vmatpush.msra.mxu0 %v209
        %240 = vmatpush.msra.mxu0 %v207
        %241 = vmatpush.msra.mxu0 %v205
        %242 = vmatpush.msra.mxu0 %v203
        %243 = vmatpush.msra.mxu0 %v201
        %244 = vmatpush.msra.mxu0 %v199
        %245 = vmatpush.msra.mxu0 %v197
        %246 = vmatpush.msra.mxu0 %v195
        %247 = vmatpush.msra.mxu0 %v193
        %248 = vmatpush.msra.mxu0 %v191
        %249 = vmatpush.msra.mxu0 %v189
        %250 = vmatpush.msra.mxu0 %v187
        %251 = vmatpush.msra.mxu0 %v185
        %252 = vmatmul.f32.gmra.mxu0 %v183
        %v253 = vpop.f32.mrf.mxu0
        %v254 = vadd.f32 0.0, %v253
        %255 = vdwg.mxu0
        %v258 = vrot.slane %v254, 6
        %vm259 = vcmask 1041408
        %v260 = vsel %vm259, %v234, %v258
        %262 = vst [vmem:[%s181] sm:$0xf] %v260
        %s263 = smul.u32 2, %s17
        %p264 = scmp.lt.s32.totalorder %s263, 7
        %s265 = scalar_select %p264, %s263, 7
        %s266 = smul.addr %s265, 2
        %s267 = scalar_lea.vmem %s2, %s266
        // Predicated region
        $region37: #{generator32_forward.5} parent=27 // pred_check
          %p268 = pneg %p82
        $region38: #{generator32_forward.5} parent=27 // pred_check_branch
          %270 = sbr.rel (%p268) target = $region40
        $region39: #{generator32_forward.5} parent=27 // pred_region
          %s271 = smul.u32 2, %s17
        $region40: #{generator32_forward.5} parent=27 // pred_fallthru
          _
      $region28: #{generator32_forward.5} parent=5 // pred_fallthru
        _
      %p272 = scmp.le.s32.totalorder 2, %s12
      // Predicated region
      $region41: #{generator32_forward.5} parent=5 // pred_check
        %p273 = pneg %p272
      $region42: #{generator32_forward.5} parent=5 // pred_check_branch
        %275 = sbr.rel (%p273) target = $region44
      $region43: #{generator32_forward.5} parent=5 // pred_region
        %s276 = ssub.s32 %s12, 2
        // Predicated region
        $region45: #{generator32_forward.5} parent=43 // pred_check
          %p277 = pneg %p88
        $region46: #{generator32_forward.5} parent=43 // pred_check_branch
          %279 = sbr.rel (%p277) target = $region48
        $region47: #{generator32_forward.5} parent=43 // pred_region
          %s280 = smul.u32 2, %s18
          %p281 = scmp.lt.s32.totalorder %s280, 7
          %s282 = scalar_select %p281, %s280, 7
          %s283 = smul.addr %s282, 2
          %s284 = scalar_lea.vmem %s2, %s283
        $region48: #{generator32_forward.5} parent=43 // pred_fallthru
          _
      $region44: #{generator32_forward.5} parent=5 // pred_fallthru
        _
    $region6: #{generator32_forward.5} parent=1 // loop_footer
      %s16 = sadd.s32 1, %s12
    $region7: #{generator32_forward.5} parent=1 // loop_footer_branch
      %11 = sbr.rel target = $region3
    $region8: #{generator32_forward.5} parent=1 // loop_exit
      _
    %285 = vsyncpa [#allocation3], 1
    %s286 = scalar_lea.sflag [#allocation3], 1
    %287 = vsyncpa %s286, 1
    %288 = vsyncpa [#allocation5], 1
    %s289 = scalar_lea.sflag [#allocation5], 1
    %290 = vsyncpa %s289, 1

// kernel: generator32_forward.6
$region0: #{generator32_forward.6}
  #allocation0 [shape = 'u32[]', space=smem, size = 0x4, offset = 0x4, fixed_abs, tag = 'smem constant byte address 0x4 - core index']
  #allocation1 [shape = 'u32[72,128]{1,0:T(1,128)}', space=vmem, size = 0x9000, scoped, tag = 'internal scratch']
  %s0 = inlined_call_operand.vmem [shape: f32[4,8,1024], index: 0, kind: input, shape index: {}]
  %s1 = inlined_call_operand.vmem [shape: f32[4,1024,256], index: 1, kind: input, shape index: {}]
  %s2 = inlined_call_operand.vmem [shape: f32[1,256], index: 2, kind: input, shape index: {}]
  %s3 = inlined_call_operand.vmem [shape: f32[1,256], index: 3, kind: input, shape index: {}]
  %s4 = inlined_call_operand.vmem [shape: f32[4,8,256], index: 4, kind: output, shape index: {}]
  %s5 = sld [smem:[#allocation0]]
  $region87: #{generator32_forward.6} parent=0
    _
  %s7 = ssub.s32 1, %s5
  %s8 = scalar_select 0, %s7, %s5
  $region1: #{generator32_forward.6} parent=0
    #allocation2 [shape = 'u8[1048576]{0}', space=vmem, size = 0x100000, scoped, tag = 'input window, operand 1']
    loop: start=0, step=1, limit=10
    $region2: #{generator32_forward.6} parent=1 // loop_pre_header
      _
    $region3: #{generator32_forward.6} parent=1 // loop_header
      %s10 = sphi 0, %s14
      %p11 = scmp.ge.s32.totalorder %s10, 10
      %s17 = sphi 0, %s29
      %s18 = sphi 0, %s25
      %s19 = sphi 0, %s17
      %s20 = sphi 0, %s18
      %s21 = sphi 0, %s19
      %s22 = sphi 0, %s20
      %s32 = sphi 0, %s34
      %s35 = sphi 0, %s32
      %s36 = sphi 0, %s35
      %s52 = sphi 0, %s36
      %s60 = sphi 0, %s62
      %s63 = sphi 0, %s60
      %s64 = sphi 0, %s63
      %s80 = sphi 0, %s64
      %s86 = sphi 0, %s88
      %s89 = sphi 0, %s86
      %s90 = sphi 0, %s89
      %s106 = sphi 0, %s90
      %s112 = sphi 0, %s114
      %s115 = sphi 0, %s112
      %s116 = sphi 0, %s115
      %s132 = sphi 0, %s116
      %s140 = sphi 0, %s142
      %s143 = sphi 0, %s140
      %s144 = sphi 0, %s143
      %s160 = sphi 0, %s144
    $region4: #{generator32_forward.6} parent=1 // loop_header_branch
      %13 = sbr.rel (%p11) target = $region8
    $region5: #{generator32_forward.6} parent=1 // loop_body
      %s15 = ssub.s32 %s10, 1
      %s16 = ssub.s32 %s10, 2
      %s23 = sadd.s32 1, %s18
      %p24 = scmp.ge.s32.totalorder %s23, 2
      %s25 = scalar_select %p24, 0, %s23
      %s26 = sadd.s32 1, %s17
      %s27 = scalar_select %p24, %s26, %s17
      %p28 = scmp.ge.s32.totalorder %s27, 4
      %s29 = scalar_select %p28, 0, %s27
      %s30 = ssub.s32 %s17, %s29
      %p31 = scmp.eq.s32.totalorder %s30, 0
      %s33 = sadd.s32 %s32, 1
      %s34 = scalar_select %p31, %s32, %s33
      %p37 = pneg %p31
      %p38 = scmp.eq.s32.totalorder %s10, 7
      %p39 = por %p37, %p38
      %p40 = scmp.ne.s32.totalorder %s32, %s35
      %p41 = scmp.eq.s32.totalorder %s10, 0
      %p42 = por %p40, %p41
      %p43 = scmp.ne.s32.totalorder %s32, %s35
      %p44 = scmp.eq.s32.totalorder %s15, 7
      %p45 = por %p43, %p44
      %p46 = scmp.ne.s32.totalorder %s35, %s36
      %p47 = scmp.eq.s32.totalorder %s15, 0
      %p48 = por %p46, %p47
      %p49 = scmp.ne.s32.totalorder %s35, %s36
      %p50 = scmp.eq.s32.totalorder %s16, 7
      %p51 = por %p49, %p50
      %p53 = scmp.ne.s32.totalorder %s36, %s52
      %p54 = scmp.eq.s32.totalorder %s16, 0
      %p55 = por %p53, %p54
      %s56 = ssub.s32 %s17, %s29
      %s57 = ssub.s32 %s18, %s25
      %s58 = sor.u32 %s56, %s57
      %p59 = scmp.eq.s32.totalorder %s58, 0
      %s61 = sadd.s32 %s60, 1
      %s62 = scalar_select %p59, %s60, %s61
      %p65 = pneg %p59
      %p66 = scmp.eq.s32.totalorder %s10, 7
      %p67 = por %p65, %p66
      %p68 = scmp.ne.s32.totalorder %s60, %s63
      %p69 = scmp.eq.s32.totalorder %s10, 0
      %p70 = por %p68, %p69
      %p71 = scmp.ne.s32.totalorder %s60, %s63
      %p72 = scmp.eq.s32.totalorder %s15, 7
      %p73 = por %p71, %p72
      %p74 = scmp.ne.s32.totalorder %s63, %s64
      %p75 = scmp.eq.s32.totalorder %s15, 0
      %p76 = por %p74, %p75
      %p77 = scmp.ne.s32.totalorder %s63, %s64
      %p78 = scmp.eq.s32.totalorder %s16, 7
      %p79 = por %p77, %p78
      %p81 = scmp.ne.s32.totalorder %s64, %s80
      %p82 = scmp.eq.s32.totalorder %s16, 0
      %p83 = por %p81, %p82
      %s84 = ssub.s32 %s18, %s25
      %p85 = scmp.eq.s32.totalorder %s84, 0
      %s87 = sadd.s32 %s86, 1
      %s88 = scalar_select %p85, %s86, %s87
      %p91 = pneg %p85
      %p92 = scmp.eq.s32.totalorder %s10, 7
      %p93 = por %p91, %p92
      %p94 = scmp.ne.s32.totalorder %s86, %s89
      %p95 = scmp.eq.s32.totalorder %s10, 0
      %p96 = por %p94, %p95
      %p97 = scmp.ne.s32.totalorder %s86, %s89
      %p98 = scmp.eq.s32.totalorder %s15, 7
      %p99 = por %p97, %p98
      %p100 = scmp.ne.s32.totalorder %s89, %s90
      %p101 = scmp.eq.s32.totalorder %s15, 0
      %p102 = por %p100, %p101
      %p103 = scmp.ne.s32.totalorder %s89, %s90
      %p104 = scmp.eq.s32.totalorder %s16, 7
      %p105 = por %p103, %p104
      %p107 = scmp.ne.s32.totalorder %s90, %s106
      %p108 = scmp.eq.s32.totalorder %s16, 0
      %p109 = por %p107, %p108
      %s110 = ssub.s32 %s18, %s25
      %p111 = scmp.eq.s32.totalorder %s110, 0
      %s113 = sadd.s32 %s112, 1
      %s114 = scalar_select %p111, %s112, %s113
      %p117 = pneg %p111
      %p118 = scmp.eq.s32.totalorder %s10, 7
      %p119 = por %p117, %p118
      %p120 = scmp.ne.s32.totalorder %s112, %s115
      %p121 = scmp.eq.s32.totalorder %s10, 0
      %p122 = por %p120, %p121
      %p123 = scmp.ne.s32.totalorder %s112, %s115
      %p124 = scmp.eq.s32.totalorder %s15, 7
      %p125 = por %p123, %p124
      %p126 = scmp.ne.s32.totalorder %s115, %s116
      %p127 = scmp.eq.s32.totalorder %s15, 0
      %p128 = por %p126, %p127
      %p129 = scmp.ne.s32.totalorder %s115, %s116
      %p130 = scmp.eq.s32.totalorder %s16, 7
      %p131 = por %p129, %p130
      %p133 = scmp.ne.s32.totalorder %s116, %s132
      %p134 = scmp.eq.s32.totalorder %s16, 0
      %p135 = por %p133, %p134
      %s136 = ssub.s32 %s17, %s29
      %s137 = ssub.s32 %s18, %s25
      %s138 = sor.u32 %s136, %s137
      %p139 = scmp.eq.s32.totalorder %s138, 0
      %s141 = sadd.s32 %s140, 1
      %s142 = scalar_select %p139, %s140, %s141
      %p145 = pneg %p139
      %p146 = scmp.eq.s32.totalorder %s10, 7
      %p147 = por %p145, %p146
      %p148 = scmp.ne.s32.totalorder %s140, %s143
      %p149 = scmp.eq.s32.totalorder %s10, 0
      %p150 = por %p148, %p149
      %p151 = scmp.ne.s32.totalorder %s140, %s143
      %p152 = scmp.eq.s32.totalorder %s15, 7
      %p153 = por %p151, %p152
      %p154 = scmp.ne.s32.totalorder %s143, %s144
      %p155 = scmp.eq.s32.totalorder %s15, 0
      %p156 = por %p154, %p155
      %p157 = scmp.ne.s32.totalorder %s143, %s144
      %p158 = scmp.eq.s32.totalorder %s16, 7
      %p159 = por %p157, %p158
      %p161 = scmp.ne.s32.totalorder %s144, %s160
      %p162 = scmp.eq.s32.totalorder %s16, 0
      %p163 = por %p161, %p162
      %p164 = scmp.le.s32.totalorder 1, %s10
      %p165 = scmp.lt.s32.totalorder %s10, 9
      %p166 = pnand %p164, %p165
      %p167 = pneg %p166
      // Predicated region
      $region9: #{generator32_forward.6} parent=5 // pred_check
        _
      $region10: #{generator32_forward.6} parent=5 // pred_check_branch
        %169 = sbr.rel (%p166) target = $region12
      $region11: #{generator32_forward.6} parent=5 // pred_region
        %s170 = ssub.s32 %s10, 1
      $region12: #{generator32_forward.6} parent=5 // pred_fallthru
        _
      %p171 = scmp.lt.s32.totalorder %s10, 8
      // Predicated region
      $region13: #{generator32_forward.6} parent=5 // pred_check
        %p172 = pneg %p171
      $region14: #{generator32_forward.6} parent=5 // pred_check_branch
        %174 = sbr.rel (%p172) target = $region16
      $region15: #{generator32_forward.6} parent=5 // pred_region
        // Predicated region
        $region17: #{generator32_forward.6} parent=15 // pred_check
          %p175 = pneg %p42
        $region18: #{generator32_forward.6} parent=15 // pred_check_branch
          %177 = sbr.rel (%p175) target = $region20
        $region19: #{generator32_forward.6} parent=15 // pred_region
          %p178 = scmp.lt.s32.totalorder %s17, 3
          %s179 = scalar_select %p178, %s17, 3
          %s180 = smul.addr %s179, 8
          %s181 = smul.addr %s180, 8
          %s182 = scalar_lea.vmem %s0, %s181
        $region20: #{generator32_forward.6} parent=15 // pred_fallthru
          _
        // Predicated region
        $region21: #{generator32_forward.6} parent=15 // pred_check
          %p183 = pneg %p70
        $region22: #{generator32_forward.6} parent=15 // pred_check_branch
          %185 = sbr.rel (%p183) target = $region24
        $region23: #{generator32_forward.6} parent=15 // pred_region
          %s186 = sand.u32 %s60, 1
          %s187 = sand.u32 %s60, 1
          %s188 = smul.addr %s187, 1024
          %s189 = scalar_lea.vmem [#allocation2], %s188
          %s190 = smul.addr %s17, 256
          %s191 = sadd.s32 %s18, %s190
          %s192 = smul.addr %s191, 8
          %s193 = scalar_lea.vmem %s1, %s192
          // Predicated region
          $region25: #{generator32_forward.6} parent=23 // pred_check
            _
          $region26: #{generator32_forward.6} parent=23 // pred_check_branch
            %195 = sbr.rel (0) target = $region28
          $region27: #{generator32_forward.6} parent=23 // pred_region
            // Predicated region
            $region29: #{generator32_forward.6} parent=27 // pred_check
              _
            $region30: #{generator32_forward.6} parent=27 // pred_check_branch
              %197 = sbr.rel (0) target = $region32
            $region31: #{generator32_forward.6} parent=27 // pred_region
              // Predicated region
              $region44: #{generator32_forward.6} parent=31 // pred_check
                _
              $region45: #{generator32_forward.6} parent=31 // pred_check_branch
                %467 = sbr.rel (0) target = $region47
              $region46: #{generator32_forward.6} parent=31 // pred_region
                loop: start=0, step=1, limit=1
                $region48: #{generator32_forward.6} parent=46 // loop_pre_header
                  _
                $region49: #{generator32_forward.6} parent=46 // loop_header
                  %s469 = sphi 0, %s473
                  %p470 = scmp.ge.s32.totalorder %s469, 1
                  %s474 = sphi %s193, %s193
                  %s475 = sphi %s189, %s189
                $region50: #{generator32_forward.6} parent=46 // loop_header_branch
                  %472 = sbr.rel (%p470) target = $region54
                $region51: #{generator32_forward.6} parent=46 // loop_body
                  %v476 = vld [vmem:[%s474] sm:$0xff]
                  %477 = vst [vmem:[%s475] sm:$0xff] %v476
                  %v478 = vld [vmem:[%s474 + $0x10] sm:$0xff]
                  %479 = vst [vmem:[%s475 + $0x8] sm:$0xff] %v478
                  %v480 = vld [vmem:[%s474 + $0x20] sm:$0xff]
                  %481 = vst [vmem:[%s475 + $0x10] sm:$0xff] %v480
                  %v482 = vld [vmem:[%s474 + $0x30] sm:$0xff]
                  %483 = vst [vmem:[%s475 + $0x18] sm:$0xff] %v482
                  %v484 = vld [vmem:[%s474 + $0x40] sm:$0xff]
                  %485 = vst [vmem:[%s475 + $0x20] sm:$0xff] %v484
                  %v486 = vld [vmem:[%s474 + $0x50] sm:$0xff]
                  %487 = vst [vmem:[%s475 + $0x28] sm:$0xff] %v486
                  %v488 = vld [vmem:[%s474 + $0x60] sm:$0xff]
                  %489 = vst [vmem:[%s475 + $0x30] sm:$0xff] %v488
                  %v490 = vld [vmem:[%s474 + $0x70] sm:$0xff]
                  %491 = vst [vmem:[%s475 + $0x38] sm:$0xff] %v490
                  %v492 = vld [vmem:[%s474 + $0x80] sm:$0xff]
                  %493 = vst [vmem:[%s475 + $0x40] sm:$0xff] %v492
                  %v494 = vld [vmem:[%s474 + $0x90] sm:$0xff]
                  %495 = vst [vmem:[%s475 + $0x48] sm:$0xff] %v494
                  %v496 = vld [vmem:[%s474 + $0xa0] sm:$0xff]
                  %497 = vst [vmem:[%s475 + $0x50] sm:$0xff] %v496
                  %v498 = vld [vmem:[%s474 + $0xb0] sm:$0xff]
                  %499 = vst [vmem:[%s475 + $0x58] sm:$0xff] %v498
                  %v500 = vld [vmem:[%s474 + $0xc0] sm:$0xff]
                  %501 = vst [vmem:[%s475 + $0x60] sm:$0xff] %v500
                  %v502 = vld [vmem:[%s474 + $0xd0] sm:$0xff]
                  %503 = vst [vmem:[%s475 + $0x68] sm:$0xff] %v502
                  %v504 = vld [vmem:[%s474 + $0xe0] sm:$0xff]
                  %505 = vst [vmem:[%s475 + $0x70] sm:$0xff] %v504
                  %v506 = vld [vmem:[%s474 + $0xf0] sm:$0xff]
                  %507 = vst [vmem:[%s475 + $0x78] sm:$0xff] %v506
                  %v508 = vld [vmem:[%s474 + $0x100] sm:$0xff]
                  %509 = vst [vmem:[%s475 + $0x80] sm:$0xff] %v508
                  %v510 = vld [vmem:[%s474 + $0x110] sm:$0xff]
                  %511 = vst [vmem:[%s475 + $0x88] sm:$0xff] %v510
                  %v512 = vld [vmem:[%s474 + $0x120] sm:$0xff]
                  %513 = vst [vmem:[%s475 + $0x90] sm:$0xff] %v512
                  %v514 = vld [vmem:[%s474 + $0x130] sm:$0xff]
                  %515 = vst [vmem:[%s475 + $0x98] sm:$0xff] %v514
                  %v516 = vld [vmem:[%s474 + $0x140] sm:$0xff]
                  %517 = vst [vmem:[%s475 + $0xa0] sm:$0xff] %v516
                  %v518 = vld [vmem:[%s474 + $0x150] sm:$0xff]
                  %519 = vst [vmem:[%s475 + $0xa8] sm:$0xff] %v518
                  %v520 = vld [vmem:[%s474 + $0x160] sm:$0xff]
                  %521 = vst [vmem:[%s475 + $0xb0] sm:$0xff] %v520
                  %v522 = vld [vmem:[%s474 + $0x170] sm:$0xff]
                  %523 = vst [vmem:[%s475 + $0xb8] sm:$0xff] %v522
                  %v524 = vld [vmem:[%s474 + $0x180] sm:$0xff]
                  %525 = vst [vmem:[%s475 + $0xc0] sm:$0xff] %v524
                  %v526 = vld [vmem:[%s474 + $0x190] sm:$0xff]
                  %527 = vst [vmem:[%s475 + $0xc8] sm:$0xff] %v526
                  %v528 = vld [vmem:[%s474 + $0x1a0] sm:$0xff]
                  %529 = vst [vmem:[%s475 + $0xd0] sm:$0xff] %v528
                  %v530 = vld [vmem:[%s474 + $0x1b0] sm:$0xff]
                  %531 = vst [vmem:[%s475 + $0xd8] sm:$0xff] %v530
                  %v532 = vld [vmem:[%s474 + $0x1c0] sm:$0xff]
                  %533 = vst [vmem:[%s475 + $0xe0] sm:$0xff] %v532
                  %v534 = vld [vmem:[%s474 + $0x1d0] sm:$0xff]
                  %535 = vst [vmem:[%s475 + $0xe8] sm:$0xff] %v534
                  %v536 = vld [vmem:[%s474 + $0x1e0] sm:$0xff]
                  %537 = vst [vmem:[%s475 + $0xf0] sm:$0xff] %v536
                  %v538 = vld [vmem:[%s474 + $0x1f0] sm:$0xff]
                  %539 = vst [vmem:[%s475 + $0xf8] sm:$0xff] %v538
                  %v540 = vld [vmem:[%s474 + $0x200] sm:$0xff]
                  %541 = vst [vmem:[%s475 + $0x100] sm:$0xff] %v540
                  %v542 = vld [vmem:[%s474 + $0x210] sm:$0xff]
                  %543 = vst [vmem:[%s475 + $0x108] sm:$0xff] %v542
                  %v544 = vld [vmem:[%s474 + $0x220] sm:$0xff]
                  %545 = vst [vmem:[%s475 + $0x110] sm:$0xff] %v544
                  %v546 = vld [vmem:[%s474 + $0x230] sm:$0xff]
                  %547 = vst [vmem:[%s475 + $0x118] sm:$0xff] %v546
                  %v548 = vld [vmem:[%s474 + $0x240] sm:$0xff]
                  %549 = vst [vmem:[%s475 + $0x120] sm:$0xff] %v548
                  %v550 = vld [vmem:[%s474 + $0x250] sm:$0xff]
                  %551 = vst [vmem:[%s475 + $0x128] sm:$0xff] %v550
                  %v552 = vld [vmem:[%s474 + $0x260] sm:$0xff]
                  %553 = vst [vmem:[%s475 + $0x130] sm:$0xff] %v552
                  %v554 = vld [vmem:[%s474 + $0x270] sm:$0xff]
                  %555 = vst [vmem:[%s475 + $0x138] sm:$0xff] %v554
                  %v556 = vld [vmem:[%s474 + $0x280] sm:$0xff]
                  %557 = vst [vmem:[%s475 + $0x140] sm:$0xff] %v556
                  %v558 = vld [vmem:[%s474 + $0x290] sm:$0xff]
                  %559 = vst [vmem:[%s475 + $0x148] sm:$0xff] %v558
                  %v560 = vld [vmem:[%s474 + $0x2a0] sm:$0xff]
                  %561 = vst [vmem:[%s475 + $0x150] sm:$0xff] %v560
                  %v562 = vld [vmem:[%s474 + $0x2b0] sm:$0xff]
                  %563 = vst [vmem:[%s475 + $0x158] sm:$0xff] %v562
                  %v564 = vld [vmem:[%s474 + $0x2c0] sm:$0xff]
                  %565 = vst [vmem:[%s475 + $0x160] sm:$0xff] %v564
                  %v566 = vld [vmem:[%s474 + $0x2d0] sm:$0xff]
                  %567 = vst [vmem:[%s475 + $0x168] sm:$0xff] %v566
                  %v568 = vld [vmem:[%s474 + $0x2e0] sm:$0xff]
                  %569 = vst [vmem:[%s475 + $0x170] sm:$0xff] %v568
                  %v570 = vld [vmem:[%s474 + $0x2f0] sm:$0xff]
                  %571 = vst [vmem:[%s475 + $0x178] sm:$0xff] %v570
                  %v572 = vld [vmem:[%s474 + $0x300] sm:$0xff]
                  %573 = vst [vmem:[%s475 + $0x180] sm:$0xff] %v572
                  %v574 = vld [vmem:[%s474 + $0x310] sm:$0xff]
                  %575 = vst [vmem:[%s475 + $0x188] sm:$0xff] %v574
                  %v576 = vld [vmem:[%s474 + $0x320] sm:$0xff]
                  %577 = vst [vmem:[%s475 + $0x190] sm:$0xff] %v576
                  %v578 = vld [vmem:[%s474 + $0x330] sm:$0xff]
                  %579 = vst [vmem:[%s475 + $0x198] sm:$0xff] %v578
                  %v580 = vld [vmem:[%s474 + $0x340] sm:$0xff]
                  %581 = vst [vmem:[%s475 + $0x1a0] sm:$0xff] %v580
                  %v582 = vld [vmem:[%s474 + $0x350] sm:$0xff]
                  %583 = vst [vmem:[%s475 + $0x1a8] sm:$0xff] %v582
                  %v584 = vld [vmem:[%s474 + $0x360] sm:$0xff]
                  %585 = vst [vmem:[%s475 + $0x1b0] sm:$0xff] %v584
                  %v586 = vld [vmem:[%s474 + $0x370] sm:$0xff]
                  %587 = vst [vmem:[%s475 + $0x1b8] sm:$0xff] %v586
                  %v588 = vld [vmem:[%s474 + $0x380] sm:$0xff]
                  %589 = vst [vmem:[%s475 + $0x1c0] sm:$0xff] %v588
                  %v590 = vld [vmem:[%s474 + $0x390] sm:$0xff]
                  %591 = vst [vmem:[%s475 + $0x1c8] sm:$0xff] %v590
                  %v592 = vld [vmem:[%s474 + $0x3a0] sm:$0xff]
                  %593 = vst [vmem:[%s475 + $0x1d0] sm:$0xff] %v592
                  %v594 = vld [vmem:[%s474 + $0x3b0] sm:$0xff]
                  %595 = vst [vmem:[%s475 + $0x1d8] sm:$0xff] %v594
                  %v596 = vld [vmem:[%s474 + $0x3c0] sm:$0xff]
                  %597 = vst [vmem:[%s475 + $0x1e0] sm:$0xff] %v596
                  %v598 = vld [vmem:[%s474 + $0x3d0] sm:$0xff]
                  %599 = vst [vmem:[%s475 + $0x1e8] sm:$0xff] %v598
                  %v600 = vld [vmem:[%s474 + $0x3e0] sm:$0xff]
                  %601 = vst [vmem:[%s475 + $0x1f0] sm:$0xff] %v600
                  %v602 = vld [vmem:[%s474 + $0x3f0] sm:$0xff]
                  %603 = vst [vmem:[%s475 + $0x1f8] sm:$0xff] %v602
                  %v604 = vld [vmem:[%s474 + $0x400] sm:$0xff]
                  %605 = vst [vmem:[%s475 + $0x200] sm:$0xff] %v604
                  %v606 = vld [vmem:[%s474 + $0x410] sm:$0xff]
                  %607 = vst [vmem:[%s475 + $0x208] sm:$0xff] %v606
                  %v608 = vld [vmem:[%s474 + $0x420] sm:$0xff]
                  %609 = vst [vmem:[%s475 + $0x210] sm:$0xff] %v608
                  %v610 = vld [vmem:[%s474 + $0x430] sm:$0xff]
                  %611 = vst [vmem:[%s475 + $0x218] sm:$0xff] %v610
                  %v612 = vld [vmem:[%s474 + $0x440] sm:$0xff]
                  %613 = vst [vmem:[%s475 + $0x220] sm:$0xff] %v612
                  %v614 = vld [vmem:[%s474 + $0x450] sm:$0xff]
                  %615 = vst [vmem:[%s475 + $0x228] sm:$0xff] %v614
                  %v616 = vld [vmem:[%s474 + $0x460] sm:$0xff]
                  %617 = vst [vmem:[%s475 + $0x230] sm:$0xff] %v616
                  %v618 = vld [vmem:[%s474 + $0x470] sm:$0xff]
                  %619 = vst [vmem:[%s475 + $0x238] sm:$0xff] %v618
                  %v620 = vld [vmem:[%s474 + $0x480] sm:$0xff]
                  %621 = vst [vmem:[%s475 + $0x240] sm:$0xff] %v620
                  %v622 = vld [vmem:[%s474 + $0x490] sm:$0xff]
                  %623 = vst [vmem:[%s475 + $0x248] sm:$0xff] %v622
                  %v624 = vld [vmem:[%s474 + $0x4a0] sm:$0xff]
                  %625 = vst [vmem:[%s475 + $0x250] sm:$0xff] %v624
                  %v626 = vld [vmem:[%s474 + $0x4b0] sm:$0xff]
                  %627 = vst [vmem:[%s475 + $0x258] sm:$0xff] %v626
                  %v628 = vld [vmem:[%s474 + $0x4c0] sm:$0xff]
                  %629 = vst [vmem:[%s475 + $0x260] sm:$0xff] %v628
                  %v630 = vld [vmem:[%s474 + $0x4d0] sm:$0xff]
                  %631 = vst [vmem:[%s475 + $0x268] sm:$0xff] %v630
                  %v632 = vld [vmem:[%s474 + $0x4e0] sm:$0xff]
                  %633 = vst [vmem:[%s475 + $0x270] sm:$0xff] %v632
                  %v634 = vld [vmem:[%s474 + $0x4f0] sm:$0xff]
                  %635 = vst [vmem:[%s475 + $0x278] sm:$0xff] %v634
                  %v636 = vld [vmem:[%s474 + $0x500] sm:$0xff]
                  %637 = vst [vmem:[%s475 + $0x280] sm:$0xff] %v636
                  %v638 = vld [vmem:[%s474 + $0x510] sm:$0xff]
                  %639 = vst [vmem:[%s475 + $0x288] sm:$0xff] %v638
                  %v640 = vld [vmem:[%s474 + $0x520] sm:$0xff]
                  %641 = vst [vmem:[%s475 + $0x290] sm:$0xff] %v640
                  %v642 = vld [vmem:[%s474 + $0x530] sm:$0xff]
                  %643 = vst [vmem:[%s475 + $0x298] sm:$0xff] %v642
                  %v644 = vld [vmem:[%s474 + $0x540] sm:$0xff]
                  %645 = vst [vmem:[%s475 + $0x2a0] sm:$0xff] %v644
                  %v646 = vld [vmem:[%s474 + $0x550] sm:$0xff]
                  %647 = vst [vmem:[%s475 + $0x2a8] sm:$0xff] %v646
                  %v648 = vld [vmem:[%s474 + $0x560] sm:$0xff]
                  %649 = vst [vmem:[%s475 + $0x2b0] sm:$0xff] %v648
                  %v650 = vld [vmem:[%s474 + $0x570] sm:$0xff]
                  %651 = vst [vmem:[%s475 + $0x2b8] sm:$0xff] %v650
                  %v652 = vld [vmem:[%s474 + $0x580] sm:$0xff]
                  %653 = vst [vmem:[%s475 + $0x2c0] sm:$0xff] %v652
                  %v654 = vld [vmem:[%s474 + $0x590] sm:$0xff]
                  %655 = vst [vmem:[%s475 + $0x2c8] sm:$0xff] %v654
                  %v656 = vld [vmem:[%s474 + $0x5a0] sm:$0xff]
                  %657 = vst [vmem:[%s475 + $0x2d0] sm:$0xff] %v656
                  %v658 = vld [vmem:[%s474 + $0x5b0] sm:$0xff]
                  %659 = vst [vmem:[%s475 + $0x2d8] sm:$0xff] %v658
                  %v660 = vld [vmem:[%s474 + $0x5c0] sm:$0xff]
                  %661 = vst [vmem:[%s475 + $0x2e0] sm:$0xff] %v660
                  %v662 = vld [vmem:[%s474 + $0x5d0] sm:$0xff]
                  %663 = vst [vmem:[%s475 + $0x2e8] sm:$0xff] %v662
                  %v664 = vld [vmem:[%s474 + $0x5e0] sm:$0xff]
                  %665 = vst [vmem:[%s475 + $0x2f0] sm:$0xff] %v664
                  %v666 = vld [vmem:[%s474 + $0x5f0] sm:$0xff]
                  %667 = vst [vmem:[%s475 + $0x2f8] sm:$0xff] %v666
                  %v668 = vld [vmem:[%s474 + $0x600] sm:$0xff]
                  %669 = vst [vmem:[%s475 + $0x300] sm:$0xff] %v668
                  %v670 = vld [vmem:[%s474 + $0x610] sm:$0xff]
                  %671 = vst [vmem:[%s475 + $0x308] sm:$0xff] %v670
                  %v672 = vld [vmem:[%s474 + $0x620] sm:$0xff]
                  %673 = vst [vmem:[%s475 + $0x310] sm:$0xff] %v672
                  %v674 = vld [vmem:[%s474 + $0x630] sm:$0xff]
                  %675 = vst [vmem:[%s475 + $0x318] sm:$0xff] %v674
                  %v676 = vld [vmem:[%s474 + $0x640] sm:$0xff]
                  %677 = vst [vmem:[%s475 + $0x320] sm:$0xff] %v676
                  %v678 = vld [vmem:[%s474 + $0x650] sm:$0xff]
                  %679 = vst [vmem:[%s475 + $0x328] sm:$0xff] %v678
                  %v680 = vld [vmem:[%s474 + $0x660] sm:$0xff]
                  %681 = vst [vmem:[%s475 + $0x330] sm:$0xff] %v680
                  %v682 = vld [vmem:[%s474 + $0x670] sm:$0xff]
                  %683 = vst [vmem:[%s475 + $0x338] sm:$0xff] %v682
                  %v684 = vld [vmem:[%s474 + $0x680] sm:$0xff]
                  %685 = vst [vmem:[%s475 + $0x340] sm:$0xff] %v684
                  %v686 = vld [vmem:[%s474 + $0x690] sm:$0xff]
                  %687 = vst [vmem:[%s475 + $0x348] sm:$0xff] %v686
                  %v688 = vld [vmem:[%s474 + $0x6a0] sm:$0xff]
                  %689 = vst [vmem:[%s475 + $0x350] sm:$0xff] %v688
                  %v690 = vld [vmem:[%s474 + $0x6b0] sm:$0xff]
                  %691 = vst [vmem:[%s475 + $0x358] sm:$0xff] %v690
                  %v692 = vld [vmem:[%s474 + $0x6c0] sm:$0xff]
                  %693 = vst [vmem:[%s475 + $0x360] sm:$0xff] %v692
                  %v694 = vld [vmem:[%s474 + $0x6d0] sm:$0xff]
                  %695 = vst [vmem:[%s475 + $0x368] sm:$0xff] %v694
                  %v696 = vld [vmem:[%s474 + $0x6e0] sm:$0xff]
                  %697 = vst [vmem:[%s475 + $0x370] sm:$0xff] %v696
                  %v698 = vld [vmem:[%s474 + $0x6f0] sm:$0xff]
                  %699 = vst [vmem:[%s475 + $0x378] sm:$0xff] %v698
                  %v700 = vld [vmem:[%s474 + $0x700] sm:$0xff]
                  %701 = vst [vmem:[%s475 + $0x380] sm:$0xff] %v700
                  %v702 = vld [vmem:[%s474 + $0x710] sm:$0xff]
                  %703 = vst [vmem:[%s475 + $0x388] sm:$0xff] %v702
                  %v704 = vld [vmem:[%s474 + $0x720] sm:$0xff]
                  %705 = vst [vmem:[%s475 + $0x390] sm:$0xff] %v704
                  %v706 = vld [vmem:[%s474 + $0x730] sm:$0xff]
                  %707 = vst [vmem:[%s475 + $0x398] sm:$0xff] %v706
                  %v708 = vld [vmem:[%s474 + $0x740] sm:$0xff]
                  %709 = vst [vmem:[%s475 + $0x3a0] sm:$0xff] %v708
                  %v710 = vld [vmem:[%s474 + $0x750] sm:$0xff]
                  %711 = vst [vmem:[%s475 + $0x3a8] sm:$0xff] %v710
                  %v712 = vld [vmem:[%s474 + $0x760] sm:$0xff]
                  %713 = vst [vmem:[%s475 + $0x3b0] sm:$0xff] %v712
                  %v714 = vld [vmem:[%s474 + $0x770] sm:$0xff]
                  %715 = vst [vmem:[%s475 + $0x3b8] sm:$0xff] %v714
                  %v716 = vld [vmem:[%s474 + $0x780] sm:$0xff]
                  %717 = vst [vmem:[%s475 + $0x3c0] sm:$0xff] %v716
                  %v718 = vld [vmem:[%s474 + $0x790] sm:$0xff]
                  %719 = vst [vmem:[%s475 + $0x3c8] sm:$0xff] %v718
                  %v720 = vld [vmem:[%s474 + $0x7a0] sm:$0xff]
                  %721 = vst [vmem:[%s475 + $0x3d0] sm:$0xff] %v720
                  %v722 = vld [vmem:[%s474 + $0x7b0] sm:$0xff]
                  %723 = vst [vmem:[%s475 + $0x3d8] sm:$0xff] %v722
                  %v724 = vld [vmem:[%s474 + $0x7c0] sm:$0xff]
                  %725 = vst [vmem:[%s475 + $0x3e0] sm:$0xff] %v724
                  %v726 = vld [vmem:[%s474 + $0x7d0] sm:$0xff]
                  %727 = vst [vmem:[%s475 + $0x3e8] sm:$0xff] %v726
                  %v728 = vld [vmem:[%s474 + $0x7e0] sm:$0xff]
                  %729 = vst [vmem:[%s475 + $0x3f0] sm:$0xff] %v728
                  %v730 = vld [vmem:[%s474 + $0x7f0] sm:$0xff]
                  %731 = vst [vmem:[%s475 + $0x3f8] sm:$0xff] %v730
                $region52: #{generator32_forward.6} parent=46 // loop_footer
                  %s473 = sadd.s32 1, %s469
                $region53: #{generator32_forward.6} parent=46 // loop_footer_branch
                  %468 = sbr.rel target = $region49
                $region54: #{generator32_forward.6} parent=46 // loop_exit
                  _
              $region47: #{generator32_forward.6} parent=31 // pred_fallthru
                _
              // Predicated region
              $region55: #{generator32_forward.6} parent=31 // pred_check
                _
              $region56: #{generator32_forward.6} parent=31 // pred_check_branch
                %733 = sbr.rel target = $region58
              $region57: #{generator32_forward.6} parent=31 // pred_region
                _
              $region58: #{generator32_forward.6} parent=31 // pred_fallthru
                _
            $region32: #{generator32_forward.6} parent=27 // pred_fallthru
              _
            // Predicated region
            $region33: #{generator32_forward.6} parent=27 // pred_check
              _
            $region34: #{generator32_forward.6} parent=27 // pred_check_branch
              %199 = sbr.rel target = $region36
            $region35: #{generator32_forward.6} parent=27 // pred_region
              %s201 = ssub.s32 256, 1
              loop: start=0, step=1, limit=1
              $region37: #{generator32_forward.6} parent=35 // loop_pre_header
                _
              $region38: #{generator32_forward.6} parent=35 // loop_header
                %s203 = sphi 0, %s207
                %p204 = scmp.ge.s32.totalorder %s203, 1
                %s208 = sphi %s193, %s193
                %s209 = sphi %s189, %s189
              $region39: #{generator32_forward.6} parent=35 // loop_header_branch
                %206 = sbr.rel (%p204) target = $region43
              $region40: #{generator32_forward.6} parent=35 // loop_body
                %v210 = vld [vmem:[%s208] sm:%s201]
                %211 = vst [vmem:[%s209] sm:%s201] %v210
                %v212 = vld [vmem:[%s208 + $0x10] sm:%s201]
                %213 = vst [vmem:[%s209 + $0x8] sm:%s201] %v212
                %v214 = vld [vmem:[%s208 + $0x20] sm:%s201]
                %215 = vst [vmem:[%s209 + $0x10] sm:%s201] %v214
                %v216 = vld [vmem:[%s208 + $0x30] sm:%s201]
                %217 = vst [vmem:[%s209 + $0x18] sm:%s201] %v216
                %v218 = vld [vmem:[%s208 + $0x40] sm:%s201]
                %219 = vst [vmem:[%s209 + $0x20] sm:%s201] %v218
                %v220 = vld [vmem:[%s208 + $0x50] sm:%s201]
                %221 = vst [vmem:[%s209 + $0x28] sm:%s201] %v220
                %v222 = vld [vmem:[%s208 + $0x60] sm:%s201]
                %223 = vst [vmem:[%s209 + $0x30] sm:%s201] %v222
                %v224 = vld [vmem:[%s208 + $0x70] sm:%s201]
                %225 = vst [vmem:[%s209 + $0x38] sm:%s201] %v224
                %v226 = vld [vmem:[%s208 + $0x80] sm:%s201]
                %227 = vst [vmem:[%s209 + $0x40] sm:%s201] %v226
                %v228 = vld [vmem:[%s208 + $0x90] sm:%s201]
                %229 = vst [vmem:[%s209 + $0x48] sm:%s201] %v228
                %v230 = vld [vmem:[%s208 + $0xa0] sm:%s201]
                %231 = vst [vmem:[%s209 + $0x50] sm:%s201] %v230
                %v232 = vld [vmem:[%s208 + $0xb0] sm:%s201]
                %233 = vst [vmem:[%s209 + $0x58] sm:%s201] %v232
                %v234 = vld [vmem:[%s208 + $0xc0] sm:%s201]
                %235 = vst [vmem:[%s209 + $0x60] sm:%s201] %v234
                %v236 = vld [vmem:[%s208 + $0xd0] sm:%s201]
                %237 = vst [vmem:[%s209 + $0x68] sm:%s201] %v236
                %v238 = vld [vmem:[%s208 + $0xe0] sm:%s201]
                %239 = vst [vmem:[%s209 + $0x70] sm:%s201] %v238
                %v240 = vld [vmem:[%s208 + $0xf0] sm:%s201]
                %241 = vst [vmem:[%s209 + $0x78] sm:%s201] %v240
                %v242 = vld [vmem:[%s208 + $0x100] sm:%s201]
                %243 = vst [vmem:[%s209 + $0x80] sm:%s201] %v242
                %v244 = vld [vmem:[%s208 + $0x110] sm:%s201]
                %245 = vst [vmem:[%s209 + $0x88] sm:%s201] %v244
                %v246 = vld [vmem:[%s208 + $0x120] sm:%s201]
                %247 = vst [vmem:[%s209 + $0x90] sm:%s201] %v246
                %v248 = vld [vmem:[%s208 + $0x130] sm:%s201]
                %249 = vst [vmem:[%s209 + $0x98] sm:%s201] %v248
                %v250 = vld [vmem:[%s208 + $0x140] sm:%s201]
                %251 = vst [vmem:[%s209 + $0xa0] sm:%s201] %v250
                %v252 = vld [vmem:[%s208 + $0x150] sm:%s201]
                %253 = vst [vmem:[%s209 + $0xa8] sm:%s201] %v252
                %v254 = vld [vmem:[%s208 + $0x160] sm:%s201]
                %255 = vst [vmem:[%s209 + $0xb0] sm:%s201] %v254
                %v256 = vld [vmem:[%s208 + $0x170] sm:%s201]
                %257 = vst [vmem:[%s209 + $0xb8] sm:%s201] %v256
                %v258 = vld [vmem:[%s208 + $0x180] sm:%s201]
                %259 = vst [vmem:[%s209 + $0xc0] sm:%s201] %v258
                %v260 = vld [vmem:[%s208 + $0x190] sm:%s201]
                %261 = vst [vmem:[%s209 + $0xc8] sm:%s201] %v260
                %v262 = vld [vmem:[%s208 + $0x1a0] sm:%s201]
                %263 = vst [vmem:[%s209 + $0xd0] sm:%s201] %v262
                %v264 = vld [vmem:[%s208 + $0x1b0] sm:%s201]
                %265 = vst [vmem:[%s209 + $0xd8] sm:%s201] %v264
                %v266 = vld [vmem:[%s208 + $0x1c0] sm:%s201]
                %267 = vst [vmem:[%s209 + $0xe0] sm:%s201] %v266
                %v268 = vld [vmem:[%s208 + $0x1d0] sm:%s201]
                %269 = vst [vmem:[%s209 + $0xe8] sm:%s201] %v268
                %v270 = vld [vmem:[%s208 + $0x1e0] sm:%s201]
                %271 = vst [vmem:[%s209 + $0xf0] sm:%s201] %v270
                %v272 = vld [vmem:[%s208 + $0x1f0] sm:%s201]
                %273 = vst [vmem:[%s209 + $0xf8] sm:%s201] %v272
                %v274 = vld [vmem:[%s208 + $0x200] sm:%s201]
                %275 = vst [vmem:[%s209 + $0x100] sm:%s201] %v274
                %v276 = vld [vmem:[%s208 + $0x210] sm:%s201]
                %277 = vst [vmem:[%s209 + $0x108] sm:%s201] %v276
                %v278 = vld [vmem:[%s208 + $0x220] sm:%s201]
                %279 = vst [vmem:[%s209 + $0x110] sm:%s201] %v278
                %v280 = vld [vmem:[%s208 + $0x230] sm:%s201]
                %281 = vst [vmem:[%s209 + $0x118] sm:%s201] %v280
                %v282 = vld [vmem:[%s208 + $0x240] sm:%s201]
                %283 = vst [vmem:[%s209 + $0x120] sm:%s201] %v282
                %v284 = vld [vmem:[%s208 + $0x250] sm:%s201]
                %285 = vst [vmem:[%s209 + $0x128] sm:%s201] %v284
                %v286 = vld [vmem:[%s208 + $0x260] sm:%s201]
                %287 = vst [vmem:[%s209 + $0x130] sm:%s201] %v286
                %v288 = vld [vmem:[%s208 + $0x270] sm:%s201]
                %289 = vst [vmem:[%s209 + $0x138] sm:%s201] %v288
                %v290 = vld [vmem:[%s208 + $0x280] sm:%s201]
                %291 = vst [vmem:[%s209 + $0x140] sm:%s201] %v290
                %v292 = vld [vmem:[%s208 + $0x290] sm:%s201]
                %293 = vst [vmem:[%s209 + $0x148] sm:%s201] %v292
                %v294 = vld [vmem:[%s208 + $0x2a0] sm:%s201]
                %295 = vst [vmem:[%s209 + $0x150] sm:%s201] %v294
                %v296 = vld [vmem:[%s208 + $0x2b0] sm:%s201]
                %297 = vst [vmem:[%s209 + $0x158] sm:%s201] %v296
                %v298 = vld [vmem:[%s208 + $0x2c0] sm:%s201]
                %299 = vst [vmem:[%s209 + $0x160] sm:%s201] %v298
                %v300 = vld [vmem:[%s208 + $0x2d0] sm:%s201]
                %301 = vst [vmem:[%s209 + $0x168] sm:%s201] %v300
                %v302 = vld [vmem:[%s208 + $0x2e0] sm:%s201]
                %303 = vst [vmem:[%s209 + $0x170] sm:%s201] %v302
                %v304 = vld [vmem:[%s208 + $0x2f0] sm:%s201]
                %305 = vst [vmem:[%s209 + $0x178] sm:%s201] %v304
                %v306 = vld [vmem:[%s208 + $0x300] sm:%s201]
                %307 = vst [vmem:[%s209 + $0x180] sm:%s201] %v306
                %v308 = vld [vmem:[%s208 + $0x310] sm:%s201]
                %309 = vst [vmem:[%s209 + $0x188] sm:%s201] %v308
                %v310 = vld [vmem:[%s208 + $0x320] sm:%s201]
                %311 = vst [vmem:[%s209 + $0x190] sm:%s201] %v310
                %v312 = vld [vmem:[%s208 + $0x330] sm:%s201]
                %313 = vst [vmem:[%s209 + $0x198] sm:%s201] %v312
                %v314 = vld [vmem:[%s208 + $0x340] sm:%s201]
                %315 = vst [vmem:[%s209 + $0x1a0] sm:%s201] %v314
                %v316 = vld [vmem:[%s208 + $0x350] sm:%s201]
                %317 = vst [vmem:[%s209 + $0x1a8] sm:%s201] %v316
                %v318 = vld [vmem:[%s208 + $0x360] sm:%s201]
                %319 = vst [vmem:[%s209 + $0x1b0] sm:%s201] %v318
                %v320 = vld [vmem:[%s208 + $0x370] sm:%s201]
                %321 = vst [vmem:[%s209 + $0x1b8] sm:%s201] %v320
                %v322 = vld [vmem:[%s208 + $0x380] sm:%s201]
                %323 = vst [vmem:[%s209 + $0x1c0] sm:%s201] %v322
                %v324 = vld [vmem:[%s208 + $0x390] sm:%s201]
                %325 = vst [vmem:[%s209 + $0x1c8] sm:%s201] %v324
                %v326 = vld [vmem:[%s208 + $0x3a0] sm:%s201]
                %327 = vst [vmem:[%s209 + $0x1d0] sm:%s201] %v326
                %v328 = vld [vmem:[%s208 + $0x3b0] sm:%s201]
                %329 = vst [vmem:[%s209 + $0x1d8] sm:%s201] %v328
                %v330 = vld [vmem:[%s208 + $0x3c0] sm:%s201]
                %331 = vst [vmem:[%s209 + $0x1e0] sm:%s201] %v330
                %v332 = vld [vmem:[%s208 + $0x3d0] sm:%s201]
                %333 = vst [vmem:[%s209 + $0x1e8] sm:%s201] %v332
                %v334 = vld [vmem:[%s208 + $0x3e0] sm:%s201]
                %335 = vst [vmem:[%s209 + $0x1f0] sm:%s201] %v334
                %v336 = vld [vmem:[%s208 + $0x3f0] sm:%s201]
                %337 = vst [vmem:[%s209 + $0x1f8] sm:%s201] %v336
                %v338 = vld [vmem:[%s208 + $0x400] sm:%s201]
                %339 = vst [vmem:[%s209 + $0x200] sm:%s201] %v338
                %v340 = vld [vmem:[%s208 + $0x410] sm:%s201]
                %341 = vst [vmem:[%s209 + $0x208] sm:%s201] %v340
                %v342 = vld [vmem:[%s208 + $0x420] sm:%s201]
                %343 = vst [vmem:[%s209 + $0x210] sm:%s201] %v342
                %v344 = vld [vmem:[%s208 + $0x430] sm:%s201]
                %345 = vst [vmem:[%s209 + $0x218] sm:%s201] %v344
                %v346 = vld [vmem:[%s208 + $0x440] sm:%s201]
                %347 = vst [vmem:[%s209 + $0x220] sm:%s201] %v346
                %v348 = vld [vmem:[%s208 + $0x450] sm:%s201]
                %349 = vst [vmem:[%s209 + $0x228] sm:%s201] %v348
                %v350 = vld [vmem:[%s208 + $0x460] sm:%s201]
                %351 = vst [vmem:[%s209 + $0x230] sm:%s201] %v350
                %v352 = vld [vmem:[%s208 + $0x470] sm:%s201]
                %353 = vst [vmem:[%s209 + $0x238] sm:%s201] %v352
                %v354 = vld [vmem:[%s208 + $0x480] sm:%s201]
                %355 = vst [vmem:[%s209 + $0x240] sm:%s201] %v354
                %v356 = vld [vmem:[%s208 + $0x490] sm:%s201]
                %357 = vst [vmem:[%s209 + $0x248] sm:%s201] %v356
                %v358 = vld [vmem:[%s208 + $0x4a0] sm:%s201]
                %359 = vst [vmem:[%s209 + $0x250] sm:%s201] %v358
                %v360 = vld [vmem:[%s208 + $0x4b0] sm:%s201]
                %361 = vst [vmem:[%s209 + $0x258] sm:%s201] %v360
                %v362 = vld [vmem:[%s208 + $0x4c0] sm:%s201]
                %363 = vst [vmem:[%s209 + $0x260] sm:%s201] %v362
                %v364 = vld [vmem:[%s208 + $0x4d0] sm:%s201]
                %365 = vst [vmem:[%s209 + $0x268] sm:%s201] %v364
                %v366 = vld [vmem:[%s208 + $0x4e0] sm:%s201]
                %367 = vst [vmem:[%s209 + $0x270] sm:%s201] %v366
                %v368 = vld [vmem:[%s208 + $0x4f0] sm:%s201]
                %369 = vst [vmem:[%s209 + $0x278] sm:%s201] %v368
                %v370 = vld [vmem:[%s208 + $0x500] sm:%s201]
                %371 = vst [vmem:[%s209 + $0x280] sm:%s201] %v370
                %v372 = vld [vmem:[%s208 + $0x510] sm:%s201]
                %373 = vst [vmem:[%s209 + $0x288] sm:%s201] %v372
                %v374 = vld [vmem:[%s208 + $0x520] sm:%s201]
                %375 = vst [vmem:[%s209 + $0x290] sm:%s201] %v374
                %v376 = vld [vmem:[%s208 + $0x530] sm:%s201]
                %377 = vst [vmem:[%s209 + $0x298] sm:%s201] %v376
                %v378 = vld [vmem:[%s208 + $0x540] sm:%s201]
                %379 = vst [vmem:[%s209 + $0x2a0] sm:%s201] %v378
                %v380 = vld [vmem:[%s208 + $0x550] sm:%s201]
                %381 = vst [vmem:[%s209 + $0x2a8] sm:%s201] %v380
                %v382 = vld [vmem:[%s208 + $0x560] sm:%s201]
                %383 = vst [vmem:[%s209 + $0x2b0] sm:%s201] %v382
                %v384 = vld [vmem:[%s208 + $0x570] sm:%s201]
                %385 = vst [vmem:[%s209 + $0x2b8] sm:%s201] %v384
                %v386 = vld [vmem:[%s208 + $0x580] sm:%s201]
                %387 = vst [vmem:[%s209 + $0x2c0] sm:%s201] %v386
                %v388 = vld [vmem:[%s208 + $0x590] sm:%s201]
                %389 = vst [vmem:[%s209 + $0x2c8] sm:%s201] %v388
                %v390 = vld [vmem:[%s208 + $0x5a0] sm:%s201]
                %391 = vst [vmem:[%s209 + $0x2d0] sm:%s201] %v390
                %v392 = vld [vmem:[%s208 + $0x5b0] sm:%s201]
                %393 = vst [vmem:[%s209 + $0x2d8] sm:%s201] %v392
                %v394 = vld [vmem:[%s208 + $0x5c0] sm:%s201]
                %395 = vst [vmem:[%s209 + $0x2e0] sm:%s201] %v394
                %v396 = vld [vmem:[%s208 + $0x5d0] sm:%s201]
                %397 = vst [vmem:[%s209 + $0x2e8] sm:%s201] %v396
                %v398 = vld [vmem:[%s208 + $0x5e0] sm:%s201]
                %399 = vst [vmem:[%s209 + $0x2f0] sm:%s201] %v398
                %v400 = vld [vmem:[%s208 + $0x5f0] sm:%s201]
                %401 = vst [vmem:[%s209 + $0x2f8] sm:%s201] %v400
                %v402 = vld [vmem:[%s208 + $0x600] sm:%s201]
                %403 = vst [vmem:[%s209 + $0x300] sm:%s201] %v402
                %v404 = vld [vmem:[%s208 + $0x610] sm:%s201]
                %405 = vst [vmem:[%s209 + $0x308] sm:%s201] %v404
                %v406 = vld [vmem:[%s208 + $0x620] sm:%s201]
                %407 = vst [vmem:[%s209 + $0x310] sm:%s201] %v406
                %v408 = vld [vmem:[%s208 + $0x630] sm:%s201]
                %409 = vst [vmem:[%s209 + $0x318] sm:%s201] %v408
                %v410 = vld [vmem:[%s208 + $0x640] sm:%s201]
                %411 = vst [vmem:[%s209 + $0x320] sm:%s201] %v410
                %v412 = vld [vmem:[%s208 + $0x650] sm:%s201]
                %413 = vst [vmem:[%s209 + $0x328] sm:%s201] %v412
                %v414 = vld [vmem:[%s208 + $0x660] sm:%s201]
                %415 = vst [vmem:[%s209 + $0x330] sm:%s201] %v414
                %v416 = vld [vmem:[%s208 + $0x670] sm:%s201]
                %417 = vst [vmem:[%s209 + $0x338] sm:%s201] %v416
                %v418 = vld [vmem:[%s208 + $0x680] sm:%s201]
                %419 = vst [vmem:[%s209 + $0x340] sm:%s201] %v418
                %v420 = vld [vmem:[%s208 + $0x690] sm:%s201]
                %421 = vst [vmem:[%s209 + $0x348] sm:%s201] %v420
                %v422 = vld [vmem:[%s208 + $0x6a0] sm:%s201]
                %423 = vst [vmem:[%s209 + $0x350] sm:%s201] %v422
                %v424 = vld [vmem:[%s208 + $0x6b0] sm:%s201]
                %425 = vst [vmem:[%s209 + $0x358] sm:%s201] %v424
                %v426 = vld [vmem:[%s208 + $0x6c0] sm:%s201]
                %427 = vst [vmem:[%s209 + $0x360] sm:%s201] %v426
                %v428 = vld [vmem:[%s208 + $0x6d0] sm:%s201]
                %429 = vst [vmem:[%s209 + $0x368] sm:%s201] %v428
                %v430 = vld [vmem:[%s208 + $0x6e0] sm:%s201]
                %431 = vst [vmem:[%s209 + $0x370] sm:%s201] %v430
                %v432 = vld [vmem:[%s208 + $0x6f0] sm:%s201]
                %433 = vst [vmem:[%s209 + $0x378] sm:%s201] %v432
                %v434 = vld [vmem:[%s208 + $0x700] sm:%s201]
                %435 = vst [vmem:[%s209 + $0x380] sm:%s201] %v434
                %v436 = vld [vmem:[%s208 + $0x710] sm:%s201]
                %437 = vst [vmem:[%s209 + $0x388] sm:%s201] %v436
                %v438 = vld [vmem:[%s208 + $0x720] sm:%s201]
                %439 = vst [vmem:[%s209 + $0x390] sm:%s201] %v438
                %v440 = vld [vmem:[%s208 + $0x730] sm:%s201]
                %441 = vst [vmem:[%s209 + $0x398] sm:%s201] %v440
                %v442 = vld [vmem:[%s208 + $0x740] sm:%s201]
                %443 = vst [vmem:[%s209 + $0x3a0] sm:%s201] %v442
                %v444 = vld [vmem:[%s208 + $0x750] sm:%s201]
                %445 = vst [vmem:[%s209 + $0x3a8] sm:%s201] %v444
                %v446 = vld [vmem:[%s208 + $0x760] sm:%s201]
                %447 = vst [vmem:[%s209 + $0x3b0] sm:%s201] %v446
                %v448 = vld [vmem:[%s208 + $0x770] sm:%s201]
                %449 = vst [vmem:[%s209 + $0x3b8] sm:%s201] %v448
                %v450 = vld [vmem:[%s208 + $0x780] sm:%s201]
                %451 = vst [vmem:[%s209 + $0x3c0] sm:%s201] %v450
                %v452 = vld [vmem:[%s208 + $0x790] sm:%s201]
                %453 = vst [vmem:[%s209 + $0x3c8] sm:%s201] %v452
                %v454 = vld [vmem:[%s208 + $0x7a0] sm:%s201]
                %455 = vst [vmem:[%s209 + $0x3d0] sm:%s201] %v454
                %v456 = vld [vmem:[%s208 + $0x7b0] sm:%s201]
                %457 = vst [vmem:[%s209 + $0x3d8] sm:%s201] %v456
                %v458 = vld [vmem:[%s208 + $0x7c0] sm:%s201]
                %459 = vst [vmem:[%s209 + $0x3e0] sm:%s201] %v458
                %v460 = vld [vmem:[%s208 + $0x7d0] sm:%s201]
                %461 = vst [vmem:[%s209 + $0x3e8] sm:%s201] %v460
                %v462 = vld [vmem:[%s208 + $0x7e0] sm:%s201]
                %463 = vst [vmem:[%s209 + $0x3f0] sm:%s201] %v462
                %v464 = vld [vmem:[%s208 + $0x7f0] sm:%s201]
                %465 = vst [vmem:[%s209 + $0x3f8] sm:%s201] %v464
              $region41: #{generator32_forward.6} parent=35 // loop_footer
                %s207 = sadd.s32 1, %s203
              $region42: #{generator32_forward.6} parent=35 // loop_footer_branch
                %202 = sbr.rel target = $region38
              $region43: #{generator32_forward.6} parent=35 // loop_exit
                _
            $region36: #{generator32_forward.6} parent=27 // pred_fallthru
              _
          $region28: #{generator32_forward.6} parent=23 // pred_fallthru
            _
          %734 = vnop
        $region24: #{generator32_forward.6} parent=15 // pred_fallthru
          _
        // Predicated region
        $region59: #{generator32_forward.6} parent=15 // pred_check
          %p735 = pneg %p96
        $region60: #{generator32_forward.6} parent=15 // pred_check_branch
          %737 = sbr.rel (%p735) target = $region62
        $region61: #{generator32_forward.6} parent=15 // pred_region
          %p738 = scmp.lt.s32.totalorder %s18, 1
          %s739 = scalar_select %p738, %s18, 1
          %s740 = scalar_lea.vmem %s2, %s739
        $region62: #{generator32_forward.6} parent=15 // pred_fallthru
          _
        // Predicated region
        $region63: #{generator32_forward.6} parent=15 // pred_check
          %p741 = pneg %p122
        $region64: #{generator32_forward.6} parent=15 // pred_check_branch
          %743 = sbr.rel (%p741) target = $region66
        $region65: #{generator32_forward.6} parent=15 // pred_region
          %p744 = scmp.lt.s32.totalorder %s18, 1
          %s745 = scalar_select %p744, %s18, 1
          %s746 = scalar_lea.vmem %s3, %s745
        $region66: #{generator32_forward.6} parent=15 // pred_fallthru
          _
      $region16: #{generator32_forward.6} parent=5 // pred_fallthru
        _
      %p747 = scmp.le.s32.totalorder 1, %s10
      %p748 = scmp.lt.s32.totalorder %s10, 9
      %p749 = pnand %p747, %p748
      %p750 = pneg %p749
      // Predicated region
      $region67: #{generator32_forward.6} parent=5 // pred_check
        _
      $region68: #{generator32_forward.6} parent=5 // pred_check_branch
        %752 = sbr.rel (%p749) target = $region70
      $region69: #{generator32_forward.6} parent=5 // pred_region
        %s753 = ssub.s32 %s10, 1
        %s754 = sand.u32 %s63, 1
        %s755 = sand.u32 %s63, 1
        %s756 = smul.addr %s755, 1024
        %s757 = scalar_lea.vmem [#allocation2], %s756
        // Predicated region
        $region71: #{generator32_forward.6} parent=69 // pred_check
          %p758 = pneg %p76
        $region72: #{generator32_forward.6} parent=69 // pred_check_branch
          %760 = sbr.rel (%p758) target = $region74
        $region73: #{generator32_forward.6} parent=69 // pred_region
          _
        $region74: #{generator32_forward.6} parent=69 // pred_fallthru
          _
        %p761 = scmp.lt.s32.totalorder %s19, 3
        %s762 = scalar_select %p761, %s19, 3
        %s763 = smul.addr %s762, 8
        %s764 = smul.addr %s763, 8
        %s765 = scalar_lea.vmem %s0, %s764
        %p766 = pneg %p48
        %p767 = pneg %p45
        %s768 = sand.u32 %s63, 1
        %s769 = sand.u32 %s63, 1
        %s770 = smul.addr %s769, 1024
        %s771 = scalar_lea.vmem [#allocation2], %s770
        %p772 = pneg %p76
        %p773 = pneg %p73
        %p774 = scmp.lt.s32.totalorder %s20, 1
        %s775 = scalar_select %p774, %s20, 1
        %s776 = scalar_lea.vmem %s2, %s775
        %p777 = pneg %p102
        %p778 = pneg %p99
        %p779 = scmp.lt.s32.totalorder %s20, 1
        %s780 = scalar_select %p779, %s20, 1
        %s781 = scalar_lea.vmem %s3, %s780
        %p782 = pneg %p128
        %p783 = pneg %p125
        %p784 = pneg %p156
        %p785 = pneg %p153
        %p786 = scmp.lt.s32.totalorder %s19, 3
        %s787 = scalar_select %p786, %s19, 3
        %p788 = scmp.lt.s32.totalorder %s20, 1
        %s789 = scalar_select %p788, %s20, 1
        %s790 = smul.addr %s787, 2
        %s791 = sadd.s32 %s789, %s790
        %s792 = smul.addr %s791, 8
        %s793 = scalar_lea.vmem %s4, %s792
        %p794 = scmp.lt.s32.totalorder %s19, 3
        %s795 = scalar_select %p794, %s19, 3
        %s796 = smul.addr %s795, 8
        %s797 = smul.addr %s796, 8
        %s798 = scalar_lea.vmem %s0, %s797
        %p799 = scmp.lt.s32.totalorder %s20, 1
        %s800 = scalar_select %p799, %s20, 1
        %s801 = scalar_lea.vmem %s2, %s800
        %p802 = scmp.lt.s32.totalorder %s20, 1
        %s803 = scalar_select %p802, %s20, 1
        %s804 = scalar_lea.vmem %s3, %s803
        %p805 = scmp.lt.s32.totalorder %s19, 3
        %s806 = scalar_select %p805, %s19, 3
        %p807 = scmp.lt.s32.totalorder %s20, 1
        %s808 = scalar_select %p807, %s20, 1
        %s809 = smul.addr %s806, 2
        %s810 = sadd.s32 %s808, %s809
        %s811 = smul.addr %s810, 8
        %s812 = scalar_lea.vmem %s4, %s811
        %v813 = vld [vmem:[%s798] sm:$0xff]
        %v814 = vld [vmem:[%s798 + $0x8] sm:$0xff]
        %v815 = vld [vmem:[%s798 + $0x10] sm:$0xff]
        %v816 = vld [vmem:[%s798 + $0x18] sm:$0xff]
        %v817 = vld [vmem:[%s798 + $0x20] sm:$0xff]
        %v818 = vld [vmem:[%s798 + $0x28] sm:$0xff]
        %v819 = vld [vmem:[%s798 + $0x30] sm:$0xff]
        %v820 = vld [vmem:[%s798 + $0x38] sm:$0xff]
        %v821 = vld [vmem:[%s757] sm:$0xff]
        %v822 = vld [vmem:[%s757 + $0x8] sm:$0xff]
        %v823 = vld [vmem:[%s757 + $0x10] sm:$0xff]
        %v824 = vld [vmem:[%s757 + $0x18] sm:$0xff]
        %v825 = vld [vmem:[%s757 + $0x20] sm:$0xff]
        %v826 = vld [vmem:[%s757 + $0x28] sm:$0xff]
        %v827 = vld [vmem:[%s757 + $0x30] sm:$0xff]
        %v828 = vld [vmem:[%s757 + $0x38] sm:$0xff]
        %v829 = vld [vmem:[%s757 + $0x40] sm:$0xff]
        %v830 = vld [vmem:[%s757 + $0x48] sm:$0xff]
        %v831 = vld [vmem:[%s757 + $0x50] sm:$0xff]
        %v832 = vld [vmem:[%s757 + $0x58] sm:$0xff]
        %v833 = vld [vmem:[%s757 + $0x60] sm:$0xff]
        %v834 = vld [vmem:[%s757 + $0x68] sm:$0xff]
        %v835 = vld [vmem:[%s757 + $0x70] sm:$0xff]
        %v836 = vld [vmem:[%s757 + $0x78] sm:$0xff]
        %v837 = vld [vmem:[%s757 + $0x80] sm:$0xff]
        %v838 = vld [vmem:[%s757 + $0x88] sm:$0xff]
        %v839 = vld [vmem:[%s757 + $0x90] sm:$0xff]
        %v840 = vld [vmem:[%s757 + $0x98] sm:$0xff]
        %v841 = vld [vmem:[%s757 + $0xa0] sm:$0xff]
        %v842 = vld [vmem:[%s757 + $0xa8] sm:$0xff]
        %v843 = vld [vmem:[%s757 + $0xb0] sm:$0xff]
        %v844 = vld [vmem:[%s757 + $0xb8] sm:$0xff]
        %v845 = vld [vmem:[%s757 + $0xc0] sm:$0xff]
        %v846 = vld [vmem:[%s757 + $0xc8] sm:$0xff]
        %v847 = vld [vmem:[%s757 + $0xd0] sm:$0xff]
        %v848 = vld [vmem:[%s757 + $0xd8] sm:$0xff]
        %v849 = vld [vmem:[%s757 + $0xe0] sm:$0xff]
        %v850 = vld [vmem:[%s757 + $0xe8] sm:$0xff]
        %v851 = vld [vmem:[%s757 + $0xf0] sm:$0xff]
        %v852 = vld [vmem:[%s757 + $0xf8] sm:$0xff]
        %v853 = vld [vmem:[%s757 + $0x100] sm:$0xff]
        %v854 = vld [vmem:[%s757 + $0x108] sm:$0xff]
        %v855 = vld [vmem:[%s757 + $0x110] sm:$0xff]
        %v856 = vld [vmem:[%s757 + $0x118] sm:$0xff]
        %v857 = vld [vmem:[%s757 + $0x120] sm:$0xff]
        %v858 = vld [vmem:[%s757 + $0x128] sm:$0xff]
        %v859 = vld [vmem:[%s757 + $0x130] sm:$0xff]
        %v860 = vld [vmem:[%s757 + $0x138] sm:$0xff]
        %v861 = vld [vmem:[%s757 + $0x140] sm:$0xff]
        %v862 = vld [vmem:[%s757 + $0x148] sm:$0xff]
        %v863 = vld [vmem:[%s757 + $0x150] sm:$0xff]
        %v864 = vld [vmem:[%s757 + $0x158] sm:$0xff]
        %v865 = vld [vmem:[%s757 + $0x160] sm:$0xff]
        %v866 = vld [vmem:[%s757 + $0x168] sm:$0xff]
        %v867 = vld [vmem:[%s757 + $0x170] sm:$0xff]
        %v868 = vld [vmem:[%s757 + $0x178] sm:$0xff]
        %v869 = vld [vmem:[%s757 + $0x180] sm:$0xff]
        %v870 = vld [vmem:[%s757 + $0x188] sm:$0xff]
        %v871 = vld [vmem:[%s757 + $0x190] sm:$0xff]
        %v872 = vld [vmem:[%s757 + $0x198] sm:$0xff]
        %v873 = vld [vmem:[%s757 + $0x1a0] sm:$0xff]
        %v874 = vld [vmem:[%s757 + $0x1a8] sm:$0xff]
        %v875 = vld [vmem:[%s757 + $0x1b0] sm:$0xff]
        %v876 = vld [vmem:[%s757 + $0x1b8] sm:$0xff]
        %v877 = vld [vmem:[%s757 + $0x1c0] sm:$0xff]
        %v878 = vld [vmem:[%s757 + $0x1c8] sm:$0xff]
        %v879 = vld [vmem:[%s757 + $0x1d0] sm:$0xff]
        %v880 = vld [vmem:[%s757 + $0x1d8] sm:$0xff]
        %v881 = vld [vmem:[%s757 + $0x1e0] sm:$0xff]
        %v882 = vld [vmem:[%s757 + $0x1e8] sm:$0xff]
        %v883 = vld [vmem:[%s757 + $0x1f0] sm:$0xff]
        %v884 = vld [vmem:[%s757 + $0x1f8] sm:$0xff]
        %v885 = vld [vmem:[%s757 + $0x200] sm:$0xff]
        %v886 = vld [vmem:[%s757 + $0x208] sm:$0xff]
        %v887 = vld [vmem:[%s757 + $0x210] sm:$0xff]
        %v888 = vld [vmem:[%s757 + $0x218] sm:$0xff]
        %v889 = vld [vmem:[%s757 + $0x220] sm:$0xff]
        %v890 = vld [vmem:[%s757 + $0x228] sm:$0xff]
        %v891 = vld [vmem:[%s757 + $0x230] sm:$0xff]
        %v892 = vld [vmem:[%s757 + $0x238] sm:$0xff]
        %v893 = vld [vmem:[%s757 + $0x240] sm:$0xff]
        %v894 = vld [vmem:[%s757 + $0x248] sm:$0xff]
        %v895 = vld [vmem:[%s757 + $0x250] sm:$0xff]
        %v896 = vld [vmem:[%s757 + $0x258] sm:$0xff]
        %v897 = vld [vmem:[%s757 + $0x260] sm:$0xff]
        %v898 = vld [vmem:[%s757 + $0x268] sm:$0xff]
        %v899 = vld [vmem:[%s757 + $0x270] sm:$0xff]
        %v900 = vld [vmem:[%s757 + $0x278] sm:$0xff]
        %v901 = vld [vmem:[%s757 + $0x280] sm:$0xff]
        %v902 = vld [vmem:[%s757 + $0x288] sm:$0xff]
        %v903 = vld [vmem:[%s757 + $0x290] sm:$0xff]
        %v904 = vld [vmem:[%s757 + $0x298] sm:$0xff]
        %v905 = vld [vmem:[%s757 + $0x2a0] sm:$0xff]
        %v906 = vld [vmem:[%s757 + $0x2a8] sm:$0xff]
        %v907 = vld [vmem:[%s757 + $0x2b0] sm:$0xff]
        %v908 = vld [vmem:[%s757 + $0x2b8] sm:$0xff]
        %v909 = vld [vmem:[%s757 + $0x2c0] sm:$0xff]
        %v910 = vld [vmem:[%s757 + $0x2c8] sm:$0xff]
        %v911 = vld [vmem:[%s757 + $0x2d0] sm:$0xff]
        %v912 = vld [vmem:[%s757 + $0x2d8] sm:$0xff]
        %v913 = vld [vmem:[%s757 + $0x2e0] sm:$0xff]
        %v914 = vld [vmem:[%s757 + $0x2e8] sm:$0xff]
        %v915 = vld [vmem:[%s757 + $0x2f0] sm:$0xff]
        %v916 = vld [vmem:[%s757 + $0x2f8] sm:$0xff]
        %v917 = vld [vmem:[%s757 + $0x300] sm:$0xff]
        %v918 = vld [vmem:[%s757 + $0x308] sm:$0xff]
        %v919 = vld [vmem:[%s757 + $0x310] sm:$0xff]
        %v920 = vld [vmem:[%s757 + $0x318] sm:$0xff]
        %v921 = vld [vmem:[%s757 + $0x320] sm:$0xff]
        %v922 = vld [vmem:[%s757 + $0x328] sm:$0xff]
        %v923 = vld [vmem:[%s757 + $0x330] sm:$0xff]
        %v924 = vld [vmem:[%s757 + $0x338] sm:$0xff]
        %v925 = vld [vmem:[%s757 + $0x340] sm:$0xff]
        %v926 = vld [vmem:[%s757 + $0x348] sm:$0xff]
        %v927 = vld [vmem:[%s757 + $0x350] sm:$0xff]
        %v928 = vld [vmem:[%s757 + $0x358] sm:$0xff]
        %v929 = vld [vmem:[%s757 + $0x360] sm:$0xff]
        %v930 = vld [vmem:[%s757 + $0x368] sm:$0xff]
        %v931 = vld [vmem:[%s757 + $0x370] sm:$0xff]
        %v932 = vld [vmem:[%s757 + $0x378] sm:$0xff]
        %v933 = vld [vmem:[%s757 + $0x380] sm:$0xff]
        %v934 = vld [vmem:[%s757 + $0x388] sm:$0xff]
        %v935 = vld [vmem:[%s757 + $0x390] sm:$0xff]
        %v936 = vld [vmem:[%s757 + $0x398] sm:$0xff]
        %v937 = vld [vmem:[%s757 + $0x3a0] sm:$0xff]
        %v938 = vld [vmem:[%s757 + $0x3a8] sm:$0xff]
        %v939 = vld [vmem:[%s757 + $0x3b0] sm:$0xff]
        %v940 = vld [vmem:[%s757 + $0x3b8] sm:$0xff]
        %v941 = vld [vmem:[%s757 + $0x3c0] sm:$0xff]
        %v942 = vld [vmem:[%s757 + $0x3c8] sm:$0xff]
        %v943 = vld [vmem:[%s757 + $0x3d0] sm:$0xff]
        %v944 = vld [vmem:[%s757 + $0x3d8] sm:$0xff]
        %v945 = vld [vmem:[%s757 + $0x3e0] sm:$0xff]
        %v946 = vld [vmem:[%s757 + $0x3e8] sm:$0xff]
        %v947 = vld [vmem:[%s757 + $0x3f0] sm:$0xff]
        %v948 = vld [vmem:[%s757 + $0x3f8] sm:$0xff]
        %949 = vmatpush.msra.mxu0 %v836
        %950 = vmatpush.msra.mxu0 %v835
        %951 = vmatpush.msra.mxu0 %v834
        %952 = vmatpush.msra.mxu0 %v833
        %953 = vmatpush.msra.mxu0 %v832
        %954 = vmatpush.msra.mxu0 %v831
        %955 = vmatpush.msra.mxu0 %v830
        %956 = vmatpush.msra.mxu0 %v829
        %957 = vmatpush.msra.mxu0 %v828
        %958 = vmatpush.msra.mxu0 %v827
        %959 = vmatpush.msra.mxu0 %v826
        %960 = vmatpush.msra.mxu0 %v825
        %961 = vmatpush.msra.mxu0 %v824
        %962 = vmatpush.msra.mxu0 %v823
        %963 = vmatpush.msra.mxu0 %v822
        %964 = vmatpush.msra.mxu0 %v821
        %965 = vmatmul.f32.gmra.mxu0 %v813
        %v966 = vpop.f32.mrf.mxu0
        %v967 = vadd.f32 0.0, %v966
        %968 = vdwg.mxu0
        %969 = vmatpush.msra.mxu0 %v852
        %970 = vmatpush.msra.mxu0 %v851
        %971 = vmatpush.msra.mxu0 %v850
        %972 = vmatpush.msra.mxu0 %v849
        %973 = vmatpush.msra.mxu0 %v848
        %974 = vmatpush.msra.mxu0 %v847
        %975 = vmatpush.msra.mxu0 %v846
        %976 = vmatpush.msra.mxu0 %v845
        %977 = vmatpush.msra.mxu0 %v844
        %978 = vmatpush.msra.mxu0 %v843
        %979 = vmatpush.msra.mxu0 %v842
        %980 = vmatpush.msra.mxu0 %v841
        %981 = vmatpush.msra.mxu0 %v840
        %982 = vmatpush.msra.mxu0 %v839
        %983 = vmatpush.msra.mxu0 %v838
        %984 = vmatpush.msra.mxu0 %v837
        %985 = vmatmul.f32.gmra.mxu0 %v814
        %v986 = vpop.f32.mrf.mxu0
        %v987 = vadd.f32 %v967, %v986
        %988 = vdwg.mxu0
        %989 = vmatpush.msra.mxu0 %v868
        %990 = vmatpush.msra.mxu0 %v867
        %991 = vmatpush.msra.mxu0 %v866
        %992 = vmatpush.msra.mxu0 %v865
        %993 = vmatpush.msra.mxu0 %v864
        %994 = vmatpush.msra.mxu0 %v863
        %995 = vmatpush.msra.mxu0 %v862
        %996 = vmatpush.msra.mxu0 %v861
        %997 = vmatpush.msra.mxu0 %v860
        %998 = vmatpush.msra.mxu0 %v859
        %999 = vmatpush.msra.mxu0 %v858
        %1000 = vmatpush.msra.mxu0 %v857
        %1001 = vmatpush.msra.mxu0 %v856
        %1002 = vmatpush.msra.mxu0 %v855
        %1003 = vmatpush.msra.mxu0 %v854
        %1004 = vmatpush.msra.mxu0 %v853
        %1005 = vmatmul.f32.gmra.mxu0 %v815
        %v1006 = vpop.f32.mrf.mxu0
        %v1007 = vadd.f32 %v987, %v1006
        %1008 = vdwg.mxu0
        %1009 = vmatpush.msra.mxu0 %v884
        %1010 = vmatpush.msra.mxu0 %v883
        %1011 = vmatpush.msra.mxu0 %v882
        %1012 = vmatpush.msra.mxu0 %v881
        %1013 = vmatpush.msra.mxu0 %v880
        %1014 = vmatpush.msra.mxu0 %v879
        %1015 = vmatpush.msra.mxu0 %v878
        %1016 = vmatpush.msra.mxu0 %v877
        %1017 = vmatpush.msra.mxu0 %v876
        %1018 = vmatpush.msra.mxu0 %v875
        %1019 = vmatpush.msra.mxu0 %v874
        %1020 = vmatpush.msra.mxu0 %v873
        %1021 = vmatpush.msra.mxu0 %v872
        %1022 = vmatpush.msra.mxu0 %v871
        %1023 = vmatpush.msra.mxu0 %v870
        %1024 = vmatpush.msra.mxu0 %v869
        %1025 = vmatmul.f32.gmra.mxu0 %v816
        %v1026 = vpop.f32.mrf.mxu0
        %v1027 = vadd.f32 %v1007, %v1026
        %1028 = vdwg.mxu0
        %1029 = vmatpush.msra.mxu0 %v900
        %1030 = vmatpush.msra.mxu0 %v899
        %1031 = vmatpush.msra.mxu0 %v898
        %1032 = vmatpush.msra.mxu0 %v897
        %1033 = vmatpush.msra.mxu0 %v896
        %1034 = vmatpush.msra.mxu0 %v895
        %1035 = vmatpush.msra.mxu0 %v894
        %1036 = vmatpush.msra.mxu0 %v893
        %1037 = vmatpush.msra.mxu0 %v892
        %1038 = vmatpush.msra.mxu0 %v891
        %1039 = vmatpush.msra.mxu0 %v890
        %1040 = vmatpush.msra.mxu0 %v889
        %1041 = vmatpush.msra.mxu0 %v888
        %1042 = vmatpush.msra.mxu0 %v887
        %1043 = vmatpush.msra.mxu0 %v886
        %1044 = vmatpush.msra.mxu0 %v885
        %1045 = vmatmul.f32.gmra.mxu0 %v817
        %v1046 = vpop.f32.mrf.mxu0
        %v1047 = vadd.f32 %v1027, %v1046
        %1048 = vdwg.mxu0
        %1049 = vmatpush.msra.mxu0 %v916
        %1050 = vmatpush.msra.mxu0 %v915
        %1051 = vmatpush.msra.mxu0 %v914
        %1052 = vmatpush.msra.mxu0 %v913
        %1053 = vmatpush.msra.mxu0 %v912
        %1054 = vmatpush.msra.mxu0 %v911
        %1055 = vmatpush.msra.mxu0 %v910
        %1056 = vmatpush.msra.mxu0 %v909
        %1057 = vmatpush.msra.mxu0 %v908
        %1058 = vmatpush.msra.mxu0 %v907
        %1059 = vmatpush.msra.mxu0 %v906
        %1060 = vmatpush.msra.mxu0 %v905
        %1061 = vmatpush.msra.mxu0 %v904
        %1062 = vmatpush.msra.mxu0 %v903
        %1063 = vmatpush.msra.mxu0 %v902
        %1064 = vmatpush.msra.mxu0 %v901
        %1065 = vmatmul.f32.gmra.mxu0 %v818
        %v1066 = vpop.f32.mrf.mxu0
        %v1067 = vadd.f32 %v1047, %v1066
        %1068 = vdwg.mxu0
        %1069 = vmatpush.msra.mxu0 %v932
        %1070 = vmatpush.msra.mxu0 %v931
        %1071 = vmatpush.msra.mxu0 %v930
        %1072 = vmatpush.msra.mxu0 %v929
        %1073 = vmatpush.msra.mxu0 %v928
        %1074 = vmatpush.msra.mxu0 %v927
        %1075 = vmatpush.msra.mxu0 %v926
        %1076 = vmatpush.msra.mxu0 %v925
        %1077 = vmatpush.msra.mxu0 %v924
        %1078 = vmatpush.msra.mxu0 %v923
        %1079 = vmatpush.msra.mxu0 %v922
        %1080 = vmatpush.msra.mxu0 %v921
        %1081 = vmatpush.msra.mxu0 %v920
        %1082 = vmatpush.msra.mxu0 %v919
        %1083 = vmatpush.msra.mxu0 %v918
        %1084 = vmatpush.msra.mxu0 %v917
        %1085 = vmatmul.f32.gmra.mxu0 %v819
        %v1086 = vpop.f32.mrf.mxu0
        %v1087 = vadd.f32 %v1067, %v1086
        %1088 = vdwg.mxu0
        %1089 = vmatpush.msra.mxu0 %v948
        %1090 = vmatpush.msra.mxu0 %v947
        %1091 = vmatpush.msra.mxu0 %v946
        %1092 = vmatpush.msra.mxu0 %v945
        %1093 = vmatpush.msra.mxu0 %v944
        %1094 = vmatpush.msra.mxu0 %v943
        %1095 = vmatpush.msra.mxu0 %v942
        %1096 = vmatpush.msra.mxu0 %v941
        %1097 = vmatpush.msra.mxu0 %v940
        %1098 = vmatpush.msra.mxu0 %v939
        %1099 = vmatpush.msra.mxu0 %v938
        %1100 = vmatpush.msra.mxu0 %v937
        %1101 = vmatpush.msra.mxu0 %v936
        %1102 = vmatpush.msra.mxu0 %v935
        %1103 = vmatpush.msra.mxu0 %v934
        %1104 = vmatpush.msra.mxu0 %v933
        %1105 = vmatmul.f32.gmra.mxu0 %v820
        %v1106 = vpop.f32.mrf.mxu0
        %v1107 = vadd.f32 %v1087, %v1106
        %1108 = vdwg.mxu0
        %vm1109 = vcmp.ge.f32.partialorder %v1107, 0.0
        %v1110 = vmul.f32 %v1107, 0.01
        %v1111 = vsel %vm1109, %v1107, %v1110
        %v1112 = vld [vmem:[%s801] sm:$0x1]
        %v1114 = vperm.slane %v1112, 0
        %v1116 = vmul.f32 %v1111, %v1114
        %v1117 = vld [vmem:[%s804] sm:$0x1]
        %v1119 = vperm.slane %v1117, 0
        %v1121 = vadd.f32 %v1116, %v1119
        %1122 = vst [vmem:[%s812] sm:$0xff] %v1121
        %p1123 = scmp.lt.s32.totalorder %s19, 3
        %s1124 = scalar_select %p1123, %s19, 3
        %p1125 = scmp.lt.s32.totalorder %s20, 1
        %s1126 = scalar_select %p1125, %s20, 1
        %s1127 = smul.addr %s1124, 2
        %s1128 = sadd.s32 %s1126, %s1127
        %s1129 = smul.addr %s1128, 8
        %s1130 = scalar_lea.vmem %s4, %s1129
        // Predicated region
        $region75: #{generator32_forward.6} parent=69 // pred_check
          %p1131 = pneg %p153
        $region76: #{generator32_forward.6} parent=69 // pred_check_branch
          %1133 = sbr.rel (%p1131) target = $region78
        $region77: #{generator32_forward.6} parent=69 // pred_region
          _
        $region78: #{generator32_forward.6} parent=69 // pred_fallthru
          _
      $region70: #{generator32_forward.6} parent=5 // pred_fallthru
        _
      %p1134 = scmp.le.s32.totalorder 2, %s10
      // Predicated region
      $region79: #{generator32_forward.6} parent=5 // pred_check
        %p1135 = pneg %p1134
      $region80: #{generator32_forward.6} parent=5 // pred_check_branch
        %1137 = sbr.rel (%p1135) target = $region82
      $region81: #{generator32_forward.6} parent=5 // pred_region
        %s1138 = ssub.s32 %s10, 2
        // Predicated region
        $region83: #{generator32_forward.6} parent=81 // pred_check
          %p1139 = pneg %p159
        $region84: #{generator32_forward.6} parent=81 // pred_check_branch
          %1141 = sbr.rel (%p1139) target = $region86
        $region85: #{generator32_forward.6} parent=81 // pred_region
          %p1142 = scmp.lt.s32.totalorder %s21, 3
          %s1143 = scalar_select %p1142, %s21, 3
          %p1144 = scmp.lt.s32.totalorder %s22, 1
          %s1145 = scalar_select %p1144, %s22, 1
          %s1146 = smul.addr %s1143, 2
          %s1147 = sadd.s32 %s1145, %s1146
          %s1148 = smul.addr %s1147, 8
          %s1149 = scalar_lea.vmem %s4, %s1148
        $region86: #{generator32_forward.6} parent=81 // pred_fallthru
          _
      $region82: #{generator32_forward.6} parent=5 // pred_fallthru
        _
    $region6: #{generator32_forward.6} parent=1 // loop_footer
      %s14 = sadd.s32 1, %s10
    $region7: #{generator32_forward.6} parent=1 // loop_footer_branch
      %9 = sbr.rel target = $region3
    $region8: #{generator32_forward.6} parent=1 // loop_exit
      _

// kernel: generator32_forward.7
$region0: #{generator32_forward.7}
  #allocation0 [shape = 'u32[]', space=smem, size = 0x4, offset = 0x4, fixed_abs, tag = 'smem constant byte address 0x4 - core index']
  #allocation1 [shape = 'u32[72,128]{1,0:T(1,128)}', space=vmem, size = 0x9000, scoped, tag = 'internal scratch']
  %s0 = inlined_call_operand.vmem [shape: f32[4,32,1024], index: 0, kind: input, shape index: {}]
  %s1 = inlined_call_operand.vmem [shape: f32[4,1024,128], index: 1, kind: input, shape index: {}]
  %s2 = inlined_call_operand.vmem [shape: f32[1,128], index: 2, kind: input, shape index: {}]
  %s3 = inlined_call_operand.vmem [shape: f32[1,128], index: 3, kind: input, shape index: {}]
  %s4 = inlined_call_operand.vmem [shape: f32[4,32,128], index: 4, kind: output, shape index: {}]
  %s5 = sld [smem:[#allocation0]]
  $region49: #{generator32_forward.7} parent=0
    _
  %s7 = ssub.s32 1, %s5
  %s8 = scalar_select 0, %s7, %s5
  loop: start=0, step=1, limit=6
  $region2: #{generator32_forward.7} parent=0 // loop_pre_header
    _
  $region3: #{generator32_forward.7} parent=0 // loop_header
    %s10 = sphi 0, %s14
    %p11 = scmp.ge.s32.totalorder %s10, 6
    %s17 = sphi 0, %s29
    %s18 = sphi 0, %s25
    %s19 = sphi 0, %s17
    %s20 = sphi 0, %s18
    %s21 = sphi 0, %s19
    %s22 = sphi 0, %s20
    %s32 = sphi 0, %s34
    %s35 = sphi 0, %s32
    %s36 = sphi 0, %s35
    %s52 = sphi 0, %s36
    %s60 = sphi 0, %s62
    %s63 = sphi 0, %s60
    %s64 = sphi 0, %s63
    %s80 = sphi 0, %s64
    %s86 = sphi 0, %s88
    %s89 = sphi 0, %s86
    %s90 = sphi 0, %s89
    %s106 = sphi 0, %s90
    %s112 = sphi 0, %s114
    %s115 = sphi 0, %s112
    %s116 = sphi 0, %s115
    %s132 = sphi 0, %s116
    %s140 = sphi 0, %s142
    %s143 = sphi 0, %s140
    %s144 = sphi 0, %s143
    %s160 = sphi 0, %s144
  $region4: #{generator32_forward.7} parent=0 // loop_header_branch
    %13 = sbr.rel (%p11) target = $region8
  $region5: #{generator32_forward.7} parent=0 // loop_body
    %s15 = ssub.s32 %s10, 1
    %s16 = ssub.s32 %s10, 2
    %s23 = sadd.s32 1, %s18
    %p24 = scmp.ge.s32.totalorder %s23, 1
    %s25 = scalar_select %p24, 0, %s23
    %s26 = sadd.s32 1, %s17
    %s27 = scalar_select %p24, %s26, %s17
    %p28 = scmp.ge.s32.totalorder %s27, 4
    %s29 = scalar_select %p28, 0, %s27
    %s30 = ssub.s32 %s17, %s29
    %p31 = scmp.eq.s32.totalorder %s30, 0
    %s33 = sadd.s32 %s32, 1
    %s34 = scalar_select %p31, %s32, %s33
    %p37 = pneg %p31
    %p38 = scmp.eq.s32.totalorder %s10, 3
    %p39 = por %p37, %p38
    %p40 = scmp.ne.s32.totalorder %s32, %s35
    %p41 = scmp.eq.s32.totalorder %s10, 0
    %p42 = por %p40, %p41
    %p43 = scmp.ne.s32.totalorder %s32, %s35
    %p44 = scmp.eq.s32.totalorder %s15, 3
    %p45 = por %p43, %p44
    %p46 = scmp.ne.s32.totalorder %s35, %s36
    %p47 = scmp.eq.s32.totalorder %s15, 0
    %p48 = por %p46, %p47
    %p49 = scmp.ne.s32.totalorder %s35, %s36
    %p50 = scmp.eq.s32.totalorder %s16, 3
    %p51 = por %p49, %p50
    %p53 = scmp.ne.s32.totalorder %s36, %s52
    %p54 = scmp.eq.s32.totalorder %s16, 0
    %p55 = por %p53, %p54
    %s56 = ssub.s32 %s17, %s29
    %s57 = ssub.s32 %s18, %s25
    %s58 = sor.u32 %s56, %s57
    %p59 = scmp.eq.s32.totalorder %s58, 0
    %s61 = sadd.s32 %s60, 1
    %s62 = scalar_select %p59, %s60, %s61
    %p65 = pneg %p59
    %p66 = scmp.eq.s32.totalorder %s10, 3
    %p67 = por %p65, %p66
    %p68 = scmp.ne.s32.totalorder %s60, %s63
    %p69 = scmp.eq.s32.totalorder %s10, 0
    %p70 = por %p68, %p69
    %p71 = scmp.ne.s32.totalorder %s60, %s63
    %p72 = scmp.eq.s32.totalorder %s15, 3
    %p73 = por %p71, %p72
    %p74 = scmp.ne.s32.totalorder %s63, %s64
    %p75 = scmp.eq.s32.totalorder %s15, 0
    %p76 = por %p74, %p75
    %p77 = scmp.ne.s32.totalorder %s63, %s64
    %p78 = scmp.eq.s32.totalorder %s16, 3
    %p79 = por %p77, %p78
    %p81 = scmp.ne.s32.totalorder %s64, %s80
    %p82 = scmp.eq.s32.totalorder %s16, 0
    %p83 = por %p81, %p82
    %s84 = ssub.s32 %s18, %s25
    %p85 = scmp.eq.s32.totalorder %s84, 0
    %s87 = sadd.s32 %s86, 1
    %s88 = scalar_select %p85, %s86, %s87
    %p91 = pneg %p85
    %p92 = scmp.eq.s32.totalorder %s10, 3
    %p93 = por %p91, %p92
    %p94 = scmp.ne.s32.totalorder %s86, %s89
    %p95 = scmp.eq.s32.totalorder %s10, 0
    %p96 = por %p94, %p95
    %p97 = scmp.ne.s32.totalorder %s86, %s89
    %p98 = scmp.eq.s32.totalorder %s15, 3
    %p99 = por %p97, %p98
    %p100 = scmp.ne.s32.totalorder %s89, %s90
    %p101 = scmp.eq.s32.totalorder %s15, 0
    %p102 = por %p100, %p101
    %p103 = scmp.ne.s32.totalorder %s89, %s90
    %p104 = scmp.eq.s32.totalorder %s16, 3
    %p105 = por %p103, %p104
    %p107 = scmp.ne.s32.totalorder %s90, %s106
    %p108 = scmp.eq.s32.totalorder %s16, 0
    %p109 = por %p107, %p108
    %s110 = ssub.s32 %s18, %s25
    %p111 = scmp.eq.s32.totalorder %s110, 0
    %s113 = sadd.s32 %s112, 1
    %s114 = scalar_select %p111, %s112, %s113
    %p117 = pneg %p111
    %p118 = scmp.eq.s32.totalorder %s10, 3
    %p119 = por %p117, %p118
    %p120 = scmp.ne.s32.totalorder %s112, %s115
    %p121 = scmp.eq.s32.totalorder %s10, 0
    %p122 = por %p120, %p121
    %p123 = scmp.ne.s32.totalorder %s112, %s115
    %p124 = scmp.eq.s32.totalorder %s15, 3
    %p125 = por %p123, %p124
    %p126 = scmp.ne.s32.totalorder %s115, %s116
    %p127 = scmp.eq.s32.totalorder %s15, 0
    %p128 = por %p126, %p127
    %p129 = scmp.ne.s32.totalorder %s115, %s116
    %p130 = scmp.eq.s32.totalorder %s16, 3
    %p131 = por %p129, %p130
    %p133 = scmp.ne.s32.totalorder %s116, %s132
    %p134 = scmp.eq.s32.totalorder %s16, 0
    %p135 = por %p133, %p134
    %s136 = ssub.s32 %s17, %s29
    %s137 = ssub.s32 %s18, %s25
    %s138 = sor.u32 %s136, %s137
    %p139 = scmp.eq.s32.totalorder %s138, 0
    %s141 = sadd.s32 %s140, 1
    %s142 = scalar_select %p139, %s140, %s141
    %p145 = pneg %p139
    %p146 = scmp.eq.s32.totalorder %s10, 3
    %p147 = por %p145, %p146
    %p148 = scmp.ne.s32.totalorder %s140, %s143
    %p149 = scmp.eq.s32.totalorder %s10, 0
    %p150 = por %p148, %p149
    %p151 = scmp.ne.s32.totalorder %s140, %s143
    %p152 = scmp.eq.s32.totalorder %s15, 3
    %p153 = por %p151, %p152
    %p154 = scmp.ne.s32.totalorder %s143, %s144
    %p155 = scmp.eq.s32.totalorder %s15, 0
    %p156 = por %p154, %p155
    %p157 = scmp.ne.s32.totalorder %s143, %s144
    %p158 = scmp.eq.s32.totalorder %s16, 3
    %p159 = por %p157, %p158
    %p161 = scmp.ne.s32.totalorder %s144, %s160
    %p162 = scmp.eq.s32.totalorder %s16, 0
    %p163 = por %p161, %p162
    %p164 = scmp.le.s32.totalorder 1, %s10
    %p165 = scmp.lt.s32.totalorder %s10, 5
    %p166 = pnand %p164, %p165
    %p167 = pneg %p166
    // Predicated region
    $region9: #{generator32_forward.7} parent=5 // pred_check
      _
    $region10: #{generator32_forward.7} parent=5 // pred_check_branch
      %169 = sbr.rel (%p166) target = $region12
    $region11: #{generator32_forward.7} parent=5 // pred_region
      %s170 = ssub.s32 %s10, 1
      // Predicated region
      $region13: #{generator32_forward.7} parent=11 // pred_check
        %p171 = pneg %p102
      $region14: #{generator32_forward.7} parent=11 // pred_check_branch
        %173 = sbr.rel (%p171) target = $region16
      $region15: #{generator32_forward.7} parent=11 // pred_region
        %p174 = scmp.lt.s32.totalorder %s20, 0
        %s175 = scalar_select %p174, %s20, 0
        %s176 = scalar_lea.vmem %s2, %s175
      $region16: #{generator32_forward.7} parent=11 // pred_fallthru
        _
      // Predicated region
      $region17: #{generator32_forward.7} parent=11 // pred_check
        %p177 = pneg %p128
      $region18: #{generator32_forward.7} parent=11 // pred_check_branch
        %179 = sbr.rel (%p177) target = $region20
      $region19: #{generator32_forward.7} parent=11 // pred_region
        %p180 = scmp.lt.s32.totalorder %s20, 0
        %s181 = scalar_select %p180, %s20, 0
        %s182 = scalar_lea.vmem %s3, %s181
      $region20: #{generator32_forward.7} parent=11 // pred_fallthru
        _
    $region12: #{generator32_forward.7} parent=5 // pred_fallthru
      _
    %p183 = scmp.lt.s32.totalorder %s10, 4
    // Predicated region
    $region21: #{generator32_forward.7} parent=5 // pred_check
      %p184 = pneg %p183
    $region22: #{generator32_forward.7} parent=5 // pred_check_branch
      %186 = sbr.rel (%p184) target = $region24
    $region23: #{generator32_forward.7} parent=5 // pred_region
      // Predicated region
      $region25: #{generator32_forward.7} parent=23 // pred_check
        %p187 = pneg %p42
      $region26: #{generator32_forward.7} parent=23 // pred_check_branch
        %189 = sbr.rel (%p187) target = $region28
      $region27: #{generator32_forward.7} parent=23 // pred_region
        %p190 = scmp.lt.s32.totalorder %s17, 3
        %s191 = scalar_select %p190, %s17, 3
        %s192 = smul.addr %s191, 32
        %s193 = smul.addr %s192, 8
        %s194 = scalar_lea.vmem %s0, %s193
      $region28: #{generator32_forward.7} parent=23 // pred_fallthru
        _
      // Predicated region
      $region29: #{generator32_forward.7} parent=23 // pred_check
        %p195 = pneg %p70
      $region30: #{generator32_forward.7} parent=23 // pred_check_branch
        %197 = sbr.rel (%p195) target = $region32
      $region31: #{generator32_forward.7} parent=23 // pred_region
        %p198 = scmp.lt.s32.totalorder %s17, 3
        %s199 = scalar_select %p198, %s17, 3
        %p200 = scmp.lt.s32.totalorder %s18, 0
        %s201 = scalar_select %p200, %s18, 0
        %s202 = smul.addr %s199, 128
        %s203 = sadd.s32 %s201, %s202
        %s204 = smul.addr %s203, 8
        %s205 = scalar_lea.vmem %s1, %s204
      $region32: #{generator32_forward.7} parent=23 // pred_fallthru
        _
    $region24: #{generator32_forward.7} parent=5 // pred_fallthru
      _
    %p206 = scmp.le.s32.totalorder 1, %s10
    %p207 = scmp.lt.s32.totalorder %s10, 5
    %p208 = pnand %p206, %p207
    %p209 = pneg %p208
    // Predicated region
    $region33: #{generator32_forward.7} parent=5 // pred_check
      _
    $region34: #{generator32_forward.7} parent=5 // pred_check_branch
      %211 = sbr.rel (%p208) target = $region36
    $region35: #{generator32_forward.7} parent=5 // pred_region
      %s212 = ssub.s32 %s10, 1
      %p213 = scmp.lt.s32.totalorder %s19, 3
      %s214 = scalar_select %p213, %s19, 3
      %s215 = smul.addr %s214, 32
      %s216 = smul.addr %s215, 8
      %s217 = scalar_lea.vmem %s0, %s216
      %p218 = pneg %p48
      %p219 = pneg %p45
      %p220 = scmp.lt.s32.totalorder %s19, 3
      %s221 = scalar_select %p220, %s19, 3
      %p222 = scmp.lt.s32.totalorder %s20, 0
      %s223 = scalar_select %p222, %s20, 0
      %s224 = smul.addr %s221, 128
      %s225 = sadd.s32 %s223, %s224
      %s226 = smul.addr %s225, 8
      %s227 = scalar_lea.vmem %s1, %s226
      %p228 = pneg %p76
      %p229 = pneg %p73
      %p230 = scmp.lt.s32.totalorder %s20, 0
      %s231 = scalar_select %p230, %s20, 0
      %s232 = scalar_lea.vmem %s2, %s231
      %p233 = pneg %p102
      %p234 = pneg %p99
      %p235 = scmp.lt.s32.totalorder %s20, 0
      %s236 = scalar_select %p235, %s20, 0
      %s237 = scalar_lea.vmem %s3, %s236
      %p238 = pneg %p128
      %p239 = pneg %p125
      %p240 = pneg %p156
      %p241 = pneg %p153
      %p242 = scmp.lt.s32.totalorder %s19, 3
      %s243 = scalar_select %p242, %s19, 3
      %p244 = scmp.lt.s32.totalorder %s20, 0
      %s245 = scalar_select %p244, %s20, 0
      %s246 = smul.addr %s243, 4
      %s247 = sadd.s32 %s245, %s246
      %s248 = smul.addr %s247, 8
      %s249 = scalar_lea.vmem %s4, %s248
      %p250 = scmp.lt.s32.totalorder %s19, 3
      %s251 = scalar_select %p250, %s19, 3
      %s252 = smul.addr %s251, 32
      %s253 = smul.addr %s252, 8
      %s254 = scalar_lea.vmem %s0, %s253
      %p255 = scmp.lt.s32.totalorder %s19, 3
      %s256 = scalar_select %p255, %s19, 3
      %p257 = scmp.lt.s32.totalorder %s20, 0
      %s258 = scalar_select %p257, %s20, 0
      %s259 = smul.addr %s256, 128
      %s260 = sadd.s32 %s258, %s259
      %s261 = smul.addr %s260, 8
      %s262 = scalar_lea.vmem %s1, %s261
      %p263 = scmp.lt.s32.totalorder %s20, 0
      %s264 = scalar_select %p263, %s20, 0
      %s265 = scalar_lea.vmem %s2, %s264
      %p266 = scmp.lt.s32.totalorder %s20, 0
      %s267 = scalar_select %p266, %s20, 0
      %s268 = scalar_lea.vmem %s3, %s267
      %p269 = scmp.lt.s32.totalorder %s19, 3
      %s270 = scalar_select %p269, %s19, 3
      %p271 = scmp.lt.s32.totalorder %s20, 0
      %s272 = scalar_select %p271, %s20, 0
      %s273 = smul.addr %s270, 4
      %s274 = sadd.s32 %s272, %s273
      %s275 = smul.addr %s274, 8
      %s276 = scalar_lea.vmem %s4, %s275
      %v277 = vld [vmem:[%s254] sm:$0xff]
      %v278 = vld [vmem:[%s254 + $0x8] sm:$0xff]
      %v279 = vld [vmem:[%s254 + $0x10] sm:$0xff]
      %v280 = vld [vmem:[%s254 + $0x18] sm:$0xff]
      %v281 = vld [vmem:[%s254 + $0x20] sm:$0xff]
      %v282 = vld [vmem:[%s254 + $0x28] sm:$0xff]
      %v283 = vld [vmem:[%s254 + $0x30] sm:$0xff]
      %v284 = vld [vmem:[%s254 + $0x38] sm:$0xff]
      %v285 = vld [vmem:[%s254 + $0x40] sm:$0xff]
      %v286 = vld [vmem:[%s254 + $0x48] sm:$0xff]
      %v287 = vld [vmem:[%s254 + $0x50] sm:$0xff]
      %v288 = vld [vmem:[%s254 + $0x58] sm:$0xff]
      %v289 = vld [vmem:[%s254 + $0x60] sm:$0xff]
      %v290 = vld [vmem:[%s254 + $0x68] sm:$0xff]
      %v291 = vld [vmem:[%s254 + $0x70] sm:$0xff]
      %v292 = vld [vmem:[%s254 + $0x78] sm:$0xff]
      %v293 = vld [vmem:[%s254 + $0x80] sm:$0xff]
      %v294 = vld [vmem:[%s254 + $0x88] sm:$0xff]
      %v295 = vld [vmem:[%s254 + $0x90] sm:$0xff]
      %v296 = vld [vmem:[%s254 + $0x98] sm:$0xff]
      %v297 = vld [vmem:[%s254 + $0xa0] sm:$0xff]
      %v298 = vld [vmem:[%s254 + $0xa8] sm:$0xff]
      %v299 = vld [vmem:[%s254 + $0xb0] sm:$0xff]
      %v300 = vld [vmem:[%s254 + $0xb8] sm:$0xff]
      %v301 = vld [vmem:[%s254 + $0xc0] sm:$0xff]
      %v302 = vld [vmem:[%s254 + $0xc8] sm:$0xff]
      %v303 = vld [vmem:[%s254 + $0xd0] sm:$0xff]
      %v304 = vld [vmem:[%s254 + $0xd8] sm:$0xff]
      %v305 = vld [vmem:[%s254 + $0xe0] sm:$0xff]
      %v306 = vld [vmem:[%s254 + $0xe8] sm:$0xff]
      %v307 = vld [vmem:[%s254 + $0xf0] sm:$0xff]
      %v308 = vld [vmem:[%s254 + $0xf8] sm:$0xff]
      %v309 = vld [vmem:[%s262] sm:$0xff]
      %v310 = vld [vmem:[%s262 + $0x8] sm:$0xff]
      %v311 = vld [vmem:[%s262 + $0x10] sm:$0xff]
      %v312 = vld [vmem:[%s262 + $0x18] sm:$0xff]
      %v313 = vld [vmem:[%s262 + $0x20] sm:$0xff]
      %v314 = vld [vmem:[%s262 + $0x28] sm:$0xff]
      %v315 = vld [vmem:[%s262 + $0x30] sm:$0xff]
      %v316 = vld [vmem:[%s262 + $0x38] sm:$0xff]
      %v317 = vld [vmem:[%s262 + $0x40] sm:$0xff]
      %v318 = vld [vmem:[%s262 + $0x48] sm:$0xff]
      %v319 = vld [vmem:[%s262 + $0x50] sm:$0xff]
      %v320 = vld [vmem:[%s262 + $0x58] sm:$0xff]
      %v321 = vld [vmem:[%s262 + $0x60] sm:$0xff]
      %v322 = vld [vmem:[%s262 + $0x68] sm:$0xff]
      %v323 = vld [vmem:[%s262 + $0x70] sm:$0xff]
      %v324 = vld [vmem:[%s262 + $0x78] sm:$0xff]
      %v325 = vld [vmem:[%s262 + $0x80] sm:$0xff]
      %v326 = vld [vmem:[%s262 + $0x88] sm:$0xff]
      %v327 = vld [vmem:[%s262 + $0x90] sm:$0xff]
      %v328 = vld [vmem:[%s262 + $0x98] sm:$0xff]
      %v329 = vld [vmem:[%s262 + $0xa0] sm:$0xff]
      %v330 = vld [vmem:[%s262 + $0xa8] sm:$0xff]
      %v331 = vld [vmem:[%s262 + $0xb0] sm:$0xff]
      %v332 = vld [vmem:[%s262 + $0xb8] sm:$0xff]
      %v333 = vld [vmem:[%s262 + $0xc0] sm:$0xff]
      %v334 = vld [vmem:[%s262 + $0xc8] sm:$0xff]
      %v335 = vld [vmem:[%s262 + $0xd0] sm:$0xff]
      %v336 = vld [vmem:[%s262 + $0xd8] sm:$0xff]
      %v337 = vld [vmem:[%s262 + $0xe0] sm:$0xff]
      %v338 = vld [vmem:[%s262 + $0xe8] sm:$0xff]
      %v339 = vld [vmem:[%s262 + $0xf0] sm:$0xff]
      %v340 = vld [vmem:[%s262 + $0xf8] sm:$0xff]
      %v341 = vld [vmem:[%s262 + $0x100] sm:$0xff]
      %v342 = vld [vmem:[%s262 + $0x108] sm:$0xff]
      %v343 = vld [vmem:[%s262 + $0x110] sm:$0xff]
      %v344 = vld [vmem:[%s262 + $0x118] sm:$0xff]
      %v345 = vld [vmem:[%s262 + $0x120] sm:$0xff]
      %v346 = vld [vmem:[%s262 + $0x128] sm:$0xff]
      %v347 = vld [vmem:[%s262 + $0x130] sm:$0xff]
      %v348 = vld [vmem:[%s262 + $0x138] sm:$0xff]
      %v349 = vld [vmem:[%s262 + $0x140] sm:$0xff]
      %v350 = vld [vmem:[%s262 + $0x148] sm:$0xff]
      %v351 = vld [vmem:[%s262 + $0x150] sm:$0xff]
      %v352 = vld [vmem:[%s262 + $0x158] sm:$0xff]
      %v353 = vld [vmem:[%s262 + $0x160] sm:$0xff]
      %v354 = vld [vmem:[%s262 + $0x168] sm:$0xff]
      %v355 = vld [vmem:[%s262 + $0x170] sm:$0xff]
      %v356 = vld [vmem:[%s262 + $0x178] sm:$0xff]
      %v357 = vld [vmem:[%s262 + $0x180] sm:$0xff]
      %v358 = vld [vmem:[%s262 + $0x188] sm:$0xff]
      %v359 = vld [vmem:[%s262 + $0x190] sm:$0xff]
      %v360 = vld [vmem:[%s262 + $0x198] sm:$0xff]
      %v361 = vld [vmem:[%s262 + $0x1a0] sm:$0xff]
      %v362 = vld [vmem:[%s262 + $0x1a8] sm:$0xff]
      %v363 = vld [vmem:[%s262 + $0x1b0] sm:$0xff]
      %v364 = vld [vmem:[%s262 + $0x1b8] sm:$0xff]
      %v365 = vld [vmem:[%s262 + $0x1c0] sm:$0xff]
      %v366 = vld [vmem:[%s262 + $0x1c8] sm:$0xff]
      %v367 = vld [vmem:[%s262 + $0x1d0] sm:$0xff]
      %v368 = vld [vmem:[%s262 + $0x1d8] sm:$0xff]
      %v369 = vld [vmem:[%s262 + $0x1e0] sm:$0xff]
      %v370 = vld [vmem:[%s262 + $0x1e8] sm:$0xff]
      %v371 = vld [vmem:[%s262 + $0x1f0] sm:$0xff]
      %v372 = vld [vmem:[%s262 + $0x1f8] sm:$0xff]
      %v373 = vld [vmem:[%s262 + $0x200] sm:$0xff]
      %v374 = vld [vmem:[%s262 + $0x208] sm:$0xff]
      %v375 = vld [vmem:[%s262 + $0x210] sm:$0xff]
      %v376 = vld [vmem:[%s262 + $0x218] sm:$0xff]
      %v377 = vld [vmem:[%s262 + $0x220] sm:$0xff]
      %v378 = vld [vmem:[%s262 + $0x228] sm:$0xff]
      %v379 = vld [vmem:[%s262 + $0x230] sm:$0xff]
      %v380 = vld [vmem:[%s262 + $0x238] sm:$0xff]
      %v381 = vld [vmem:[%s262 + $0x240] sm:$0xff]
      %v382 = vld [vmem:[%s262 + $0x248] sm:$0xff]
      %v383 = vld [vmem:[%s262 + $0x250] sm:$0xff]
      %v384 = vld [vmem:[%s262 + $0x258] sm:$0xff]
      %v385 = vld [vmem:[%s262 + $0x260] sm:$0xff]
      %v386 = vld [vmem:[%s262 + $0x268] sm:$0xff]
      %v387 = vld [vmem:[%s262 + $0x270] sm:$0xff]
      %v388 = vld [vmem:[%s262 + $0x278] sm:$0xff]
      %v389 = vld [vmem:[%s262 + $0x280] sm:$0xff]
      %v390 = vld [vmem:[%s262 + $0x288] sm:$0xff]
      %v391 = vld [vmem:[%s262 + $0x290] sm:$0xff]
      %v392 = vld [vmem:[%s262 + $0x298] sm:$0xff]
      %v393 = vld [vmem:[%s262 + $0x2a0] sm:$0xff]
      %v394 = vld [vmem:[%s262 + $0x2a8] sm:$0xff]
      %v395 = vld [vmem:[%s262 + $0x2b0] sm:$0xff]
      %v396 = vld [vmem:[%s262 + $0x2b8] sm:$0xff]
      %v397 = vld [vmem:[%s262 + $0x2c0] sm:$0xff]
      %v398 = vld [vmem:[%s262 + $0x2c8] sm:$0xff]
      %v399 = vld [vmem:[%s262 + $0x2d0] sm:$0xff]
      %v400 = vld [vmem:[%s262 + $0x2d8] sm:$0xff]
      %v401 = vld [vmem:[%s262 + $0x2e0] sm:$0xff]
      %v402 = vld [vmem:[%s262 + $0x2e8] sm:$0xff]
      %v403 = vld [vmem:[%s262 + $0x2f0] sm:$0xff]
      %v404 = vld [vmem:[%s262 + $0x2f8] sm:$0xff]
      %v405 = vld [vmem:[%s262 + $0x300] sm:$0xff]
      %v406 = vld [vmem:[%s262 + $0x308] sm:$0xff]
      %v407 = vld [vmem:[%s262 + $0x310] sm:$0xff]
      %v408 = vld [vmem:[%s262 + $0x318] sm:$0xff]
      %v409 = vld [vmem:[%s262 + $0x320] sm:$0xff]
      %v410 = vld [vmem:[%s262 + $0x328] sm:$0xff]
      %v411 = vld [vmem:[%s262 + $0x330] sm:$0xff]
      %v412 = vld [vmem:[%s262 + $0x338] sm:$0xff]
      %v413 = vld [vmem:[%s262 + $0x340] sm:$0xff]
      %v414 = vld [vmem:[%s262 + $0x348] sm:$0xff]
      %v415 = vld [vmem:[%s262 + $0x350] sm:$0xff]
      %v416 = vld [vmem:[%s262 + $0x358] sm:$0xff]
      %v417 = vld [vmem:[%s262 + $0x360] sm:$0xff]
      %v418 = vld [vmem:[%s262 + $0x368] sm:$0xff]
      %v419 = vld [vmem:[%s262 + $0x370] sm:$0xff]
      %v420 = vld [vmem:[%s262 + $0x378] sm:$0xff]
      %v421 = vld [vmem:[%s262 + $0x380] sm:$0xff]
      %v422 = vld [vmem:[%s262 + $0x388] sm:$0xff]
      %v423 = vld [vmem:[%s262 + $0x390] sm:$0xff]
      %v424 = vld [vmem:[%s262 + $0x398] sm:$0xff]
      %v425 = vld [vmem:[%s262 + $0x3a0] sm:$0xff]
      %v426 = vld [vmem:[%s262 + $0x3a8] sm:$0xff]
      %v427 = vld [vmem:[%s262 + $0x3b0] sm:$0xff]
      %v428 = vld [vmem:[%s262 + $0x3b8] sm:$0xff]
      %v429 = vld [vmem:[%s262 + $0x3c0] sm:$0xff]
      %v430 = vld [vmem:[%s262 + $0x3c8] sm:$0xff]
      %v431 = vld [vmem:[%s262 + $0x3d0] sm:$0xff]
      %v432 = vld [vmem:[%s262 + $0x3d8] sm:$0xff]
      %v433 = vld [vmem:[%s262 + $0x3e0] sm:$0xff]
      %v434 = vld [vmem:[%s262 + $0x3e8] sm:$0xff]
      %v435 = vld [vmem:[%s262 + $0x3f0] sm:$0xff]
      %v436 = vld [vmem:[%s262 + $0x3f8] sm:$0xff]
      %437 = vmatpush.msra.mxu0 %v324
      %438 = vmatpush.msra.mxu0 %v323
      %439 = vmatpush.msra.mxu0 %v322
      %440 = vmatpush.msra.mxu0 %v321
      %441 = vmatpush.msra.mxu0 %v320
      %442 = vmatpush.msra.mxu0 %v319
      %443 = vmatpush.msra.mxu0 %v318
      %444 = vmatpush.msra.mxu0 %v317
      %445 = vmatpush.msra.mxu0 %v316
      %446 = vmatpush.msra.mxu0 %v315
      %447 = vmatpush.msra.mxu0 %v314
      %448 = vmatpush.msra.mxu0 %v313
      %449 = vmatpush.msra.mxu0 %v312
      %450 = vmatpush.msra.mxu0 %v311
      %451 = vmatpush.msra.mxu0 %v310
      %452 = vmatpush.msra.mxu0 %v309
      %453 = vmatmul.f32.gmra.mxu0 %v277
      %v454 = vpop.f32.mrf.mxu0
      %v455 = vadd.f32 0.0, %v454
      %456 = vmatmul.f32.gmra.mxu0 %v285
      %v457 = vpop.f32.mrf.mxu0
      %v458 = vadd.f32 0.0, %v457
      %459 = vmatmul.f32.gmra.mxu0 %v293
      %v460 = vpop.f32.mrf.mxu0
      %v461 = vadd.f32 0.0, %v460
      %462 = vmatmul.f32.gmra.mxu0 %v301
      %v463 = vpop.f32.mrf.mxu0
      %v464 = vadd.f32 0.0, %v463
      %465 = vdwg.mxu0
      %466 = vmatpush.msra.mxu0 %v340
      %467 = vmatpush.msra.mxu0 %v339
      %468 = vmatpush.msra.mxu0 %v338
      %469 = vmatpush.msra.mxu0 %v337
      %470 = vmatpush.msra.mxu0 %v336
      %471 = vmatpush.msra.mxu0 %v335
      %472 = vmatpush.msra.mxu0 %v334
      %473 = vmatpush.msra.mxu0 %v333
      %474 = vmatpush.msra.mxu0 %v332
      %475 = vmatpush.msra.mxu0 %v331
      %476 = vmatpush.msra.mxu0 %v330
      %477 = vmatpush.msra.mxu0 %v329
      %478 = vmatpush.msra.mxu0 %v328
      %479 = vmatpush.msra.mxu0 %v327
      %480 = vmatpush.msra.mxu0 %v326
      %481 = vmatpush.msra.mxu0 %v325
      %482 = vmatmul.f32.gmra.mxu0 %v278
      %v483 = vpop.f32.mrf.mxu0
      %v484 = vadd.f32 %v455, %v483
      %485 = vmatmul.f32.gmra.mxu0 %v286
      %v486 = vpop.f32.mrf.mxu0
      %v487 = vadd.f32 %v458, %v486
      %488 = vmatmul.f32.gmra.mxu0 %v294
      %v489 = vpop.f32.mrf.mxu0
      %v490 = vadd.f32 %v461, %v489
      %491 = vmatmul.f32.gmra.mxu0 %v302
      %v492 = vpop.f32.mrf.mxu0
      %v493 = vadd.f32 %v464, %v492
      %494 = vdwg.mxu0
      %495 = vmatpush.msra.mxu0 %v356
      %496 = vmatpush.msra.mxu0 %v355
      %497 = vmatpush.msra.mxu0 %v354
      %498 = vmatpush.msra.mxu0 %v353
      %499 = vmatpush.msra.mxu0 %v352
      %500 = vmatpush.msra.mxu0 %v351
      %501 = vmatpush.msra.mxu0 %v350
      %502 = vmatpush.msra.mxu0 %v349
      %503 = vmatpush.msra.mxu0 %v348
      %504 = vmatpush.msra.mxu0 %v347
      %505 = vmatpush.msra.mxu0 %v346
      %506 = vmatpush.msra.mxu0 %v345
      %507 = vmatpush.msra.mxu0 %v344
      %508 = vmatpush.msra.mxu0 %v343
      %509 = vmatpush.msra.mxu0 %v342
      %510 = vmatpush.msra.mxu0 %v341
      %511 = vmatmul.f32.gmra.mxu0 %v279
      %v512 = vpop.f32.mrf.mxu0
      %v513 = vadd.f32 %v484, %v512
      %514 = vmatmul.f32.gmra.mxu0 %v287
      %v515 = vpop.f32.mrf.mxu0
      %v516 = vadd.f32 %v487, %v515
      %517 = vmatmul.f32.gmra.mxu0 %v295
      %v518 = vpop.f32.mrf.mxu0
      %v519 = vadd.f32 %v490, %v518
      %520 = vmatmul.f32.gmra.mxu0 %v303
      %v521 = vpop.f32.mrf.mxu0
      %v522 = vadd.f32 %v493, %v521
      %523 = vdwg.mxu0
      %524 = vmatpush.msra.mxu0 %v372
      %525 = vmatpush.msra.mxu0 %v371
      %526 = vmatpush.msra.mxu0 %v370
      %527 = vmatpush.msra.mxu0 %v369
      %528 = vmatpush.msra.mxu0 %v368
      %529 = vmatpush.msra.mxu0 %v367
      %530 = vmatpush.msra.mxu0 %v366
      %531 = vmatpush.msra.mxu0 %v365
      %532 = vmatpush.msra.mxu0 %v364
      %533 = vmatpush.msra.mxu0 %v363
      %534 = vmatpush.msra.mxu0 %v362
      %535 = vmatpush.msra.mxu0 %v361
      %536 = vmatpush.msra.mxu0 %v360
      %537 = vmatpush.msra.mxu0 %v359
      %538 = vmatpush.msra.mxu0 %v358
      %539 = vmatpush.msra.mxu0 %v357
      %540 = vmatmul.f32.gmra.mxu0 %v280
      %v541 = vpop.f32.mrf.mxu0
      %v542 = vadd.f32 %v513, %v541
      %543 = vmatmul.f32.gmra.mxu0 %v288
      %v544 = vpop.f32.mrf.mxu0
      %v545 = vadd.f32 %v516, %v544
      %546 = vmatmul.f32.gmra.mxu0 %v296
      %v547 = vpop.f32.mrf.mxu0
      %v548 = vadd.f32 %v519, %v547
      %549 = vmatmul.f32.gmra.mxu0 %v304
      %v550 = vpop.f32.mrf.mxu0
      %v551 = vadd.f32 %v522, %v550
      %552 = vdwg.mxu0
      %553 = vmatpush.msra.mxu0 %v388
      %554 = vmatpush.msra.mxu0 %v387
      %555 = vmatpush.msra.mxu0 %v386
      %556 = vmatpush.msra.mxu0 %v385
      %557 = vmatpush.msra.mxu0 %v384
      %558 = vmatpush.msra.mxu0 %v383
      %559 = vmatpush.msra.mxu0 %v382
      %560 = vmatpush.msra.mxu0 %v381
      %561 = vmatpush.msra.mxu0 %v380
      %562 = vmatpush.msra.mxu0 %v379
      %563 = vmatpush.msra.mxu0 %v378
      %564 = vmatpush.msra.mxu0 %v377
      %565 = vmatpush.msra.mxu0 %v376
      %566 = vmatpush.msra.mxu0 %v375
      %567 = vmatpush.msra.mxu0 %v374
      %568 = vmatpush.msra.mxu0 %v373
      %569 = vmatmul.f32.gmra.mxu0 %v281
      %v570 = vpop.f32.mrf.mxu0
      %v571 = vadd.f32 %v542, %v570
      %572 = vmatmul.f32.gmra.mxu0 %v289
      %v573 = vpop.f32.mrf.mxu0
      %v574 = vadd.f32 %v545, %v573
      %575 = vmatmul.f32.gmra.mxu0 %v297
      %v576 = vpop.f32.mrf.mxu0
      %v577 = vadd.f32 %v548, %v576
      %578 = vmatmul.f32.gmra.mxu0 %v305
      %v579 = vpop.f32.mrf.mxu0
      %v580 = vadd.f32 %v551, %v579
      %581 = vdwg.mxu0
      %582 = vmatpush.msra.mxu0 %v404
      %583 = vmatpush.msra.mxu0 %v403
      %584 = vmatpush.msra.mxu0 %v402
      %585 = vmatpush.msra.mxu0 %v401
      %586 = vmatpush.msra.mxu0 %v400
      %587 = vmatpush.msra.mxu0 %v399
      %588 = vmatpush.msra.mxu0 %v398
      %589 = vmatpush.msra.mxu0 %v397
      %590 = vmatpush.msra.mxu0 %v396
      %591 = vmatpush.msra.mxu0 %v395
      %592 = vmatpush.msra.mxu0 %v394
      %593 = vmatpush.msra.mxu0 %v393
      %594 = vmatpush.msra.mxu0 %v392
      %595 = vmatpush.msra.mxu0 %v391
      %596 = vmatpush.msra.mxu0 %v390
      %597 = vmatpush.msra.mxu0 %v389
      %598 = vmatmul.f32.gmra.mxu0 %v282
      %v599 = vpop.f32.mrf.mxu0
      %v600 = vadd.f32 %v571, %v599
      %601 = vmatmul.f32.gmra.mxu0 %v290
      %v602 = vpop.f32.mrf.mxu0
      %v603 = vadd.f32 %v574, %v602
      %604 = vmatmul.f32.gmra.mxu0 %v298
      %v605 = vpop.f32.mrf.mxu0
      %v606 = vadd.f32 %v577, %v605
      %607 = vmatmul.f32.gmra.mxu0 %v306
      %v608 = vpop.f32.mrf.mxu0
      %v609 = vadd.f32 %v580, %v608
      %610 = vdwg.mxu0
      %611 = vmatpush.msra.mxu0 %v420
      %612 = vmatpush.msra.mxu0 %v419
      %613 = vmatpush.msra.mxu0 %v418
      %614 = vmatpush.msra.mxu0 %v417
      %615 = vmatpush.msra.mxu0 %v416
      %616 = vmatpush.msra.mxu0 %v415
      %617 = vmatpush.msra.mxu0 %v414
      %618 = vmatpush.msra.mxu0 %v413
      %619 = vmatpush.msra.mxu0 %v412
      %620 = vmatpush.msra.mxu0 %v411
      %621 = vmatpush.msra.mxu0 %v410
      %622 = vmatpush.msra.mxu0 %v409
      %623 = vmatpush.msra.mxu0 %v408
      %624 = vmatpush.msra.mxu0 %v407
      %625 = vmatpush.msra.mxu0 %v406
      %626 = vmatpush.msra.mxu0 %v405
      %627 = vmatmul.f32.gmra.mxu0 %v283
      %v628 = vpop.f32.mrf.mxu0
      %v629 = vadd.f32 %v600, %v628
      %630 = vmatmul.f32.gmra.mxu0 %v291
      %v631 = vpop.f32.mrf.mxu0
      %v632 = vadd.f32 %v603, %v631
      %633 = vmatmul.f32.gmra.mxu0 %v299
      %v634 = vpop.f32.mrf.mxu0
      %v635 = vadd.f32 %v606, %v634
      %636 = vmatmul.f32.gmra.mxu0 %v307
      %v637 = vpop.f32.mrf.mxu0
      %v638 = vadd.f32 %v609, %v637
      %639 = vdwg.mxu0
      %640 = vmatpush.msra.mxu0 %v436
      %641 = vmatpush.msra.mxu0 %v435
      %642 = vmatpush.msra.mxu0 %v434
      %643 = vmatpush.msra.mxu0 %v433
      %644 = vmatpush.msra.mxu0 %v432
      %645 = vmatpush.msra.mxu0 %v431
      %646 = vmatpush.msra.mxu0 %v430
      %647 = vmatpush.msra.mxu0 %v429
      %648 = vmatpush.msra.mxu0 %v428
      %649 = vmatpush.msra.mxu0 %v427
      %650 = vmatpush.msra.mxu0 %v426
      %651 = vmatpush.msra.mxu0 %v425
      %652 = vmatpush.msra.mxu0 %v424
      %653 = vmatpush.msra.mxu0 %v423
      %654 = vmatpush.msra.mxu0 %v422
      %655 = vmatpush.msra.mxu0 %v421
      %656 = vmatmul.f32.gmra.mxu0 %v284
      %v657 = vpop.f32.mrf.mxu0
      %v658 = vadd.f32 %v629, %v657
      %659 = vmatmul.f32.gmra.mxu0 %v292
      %v660 = vpop.f32.mrf.mxu0
      %v661 = vadd.f32 %v632, %v660
      %662 = vmatmul.f32.gmra.mxu0 %v300
      %v663 = vpop.f32.mrf.mxu0
      %v664 = vadd.f32 %v635, %v663
      %665 = vmatmul.f32.gmra.mxu0 %v308
      %v666 = vpop.f32.mrf.mxu0
      %v667 = vadd.f32 %v638, %v666
      %668 = vdwg.mxu0
      %vm669 = vcmp.ge.f32.partialorder %v658, 0.0
      %vm670 = vcmp.ge.f32.partialorder %v661, 0.0
      %vm671 = vcmp.ge.f32.partialorder %v664, 0.0
      %vm672 = vcmp.ge.f32.partialorder %v667, 0.0
      %v673 = vmul.f32 %v658, 0.01
      %v674 = vmul.f32 %v661, 0.01
      %v675 = vmul.f32 %v664, 0.01
      %v676 = vmul.f32 %v667, 0.01
      %v677 = vsel %vm669, %v658, %v673
      %v678 = vsel %vm670, %v661, %v674
      %v679 = vsel %vm671, %v664, %v675
      %v680 = vsel %vm672, %v667, %v676
      %v681 = vld [vmem:[%s265] sm:$0x1]
      %v683 = vperm.slane %v681, 0
      %v685 = vmul.f32 %v677, %v683
      %v686 = vmul.f32 %v678, %v683
      %v687 = vmul.f32 %v679, %v683
      %v688 = vmul.f32 %v680, %v683
      %v689 = vld [vmem:[%s268] sm:$0x1]
      %v691 = vperm.slane %v689, 0
      %v693 = vadd.f32 %v685, %v691
      %v694 = vadd.f32 %v686, %v691
      %v695 = vadd.f32 %v687, %v691
      %v696 = vadd.f32 %v688, %v691
      %697 = vst [vmem:[%s276] sm:$0xff] %v693
      %698 = vst [vmem:[%s276 + $0x8] sm:$0xff] %v694
      %699 = vst [vmem:[%s276 + $0x10] sm:$0xff] %v695
      %700 = vst [vmem:[%s276 + $0x18] sm:$0xff] %v696
      %p701 = scmp.lt.s32.totalorder %s19, 3
      %s702 = scalar_select %p701, %s19, 3
      %p703 = scmp.lt.s32.totalorder %s20, 0
      %s704 = scalar_select %p703, %s20, 0
      %s705 = smul.addr %s702, 4
      %s706 = sadd.s32 %s704, %s705
      %s707 = smul.addr %s706, 8
      %s708 = scalar_lea.vmem %s4, %s707
      // Predicated region
      $region37: #{generator32_forward.7} parent=35 // pred_check
        %p709 = pneg %p153
      $region38: #{generator32_forward.7} parent=35 // pred_check_branch
        %711 = sbr.rel (%p709) target = $region40
      $region39: #{generator32_forward.7} parent=35 // pred_region
        _
      $region40: #{generator32_forward.7} parent=35 // pred_fallthru
        _
    $region36: #{generator32_forward.7} parent=5 // pred_fallthru
      _
    %p712 = scmp.le.s32.totalorder 2, %s10
    // Predicated region
    $region41: #{generator32_forward.7} parent=5 // pred_check
      %p713 = pneg %p712
    $region42: #{generator32_forward.7} parent=5 // pred_check_branch
      %715 = sbr.rel (%p713) target = $region44
    $region43: #{generator32_forward.7} parent=5 // pred_region
      %s716 = ssub.s32 %s10, 2
      // Predicated region
      $region45: #{generator32_forward.7} parent=43 // pred_check
        %p717 = pneg %p159
      $region46: #{generator32_forward.7} parent=43 // pred_check_branch
        %719 = sbr.rel (%p717) target = $region48
      $region47: #{generator32_forward.7} parent=43 // pred_region
        %p720 = scmp.lt.s32.totalorder %s21, 3
        %s721 = scalar_select %p720, %s21, 3
        %p722 = scmp.lt.s32.totalorder %s22, 0
        %s723 = scalar_select %p722, %s22, 0
        %s724 = smul.addr %s721, 4
        %s725 = sadd.s32 %s723, %s724
        %s726 = smul.addr %s725, 8
        %s727 = scalar_lea.vmem %s4, %s726
      $region48: #{generator32_forward.7} parent=43 // pred_fallthru
        _
    $region44: #{generator32_forward.7} parent=5 // pred_fallthru
      _
  $region6: #{generator32_forward.7} parent=0 // loop_footer
    %s14 = sadd.s32 1, %s10
  $region7: #{generator32_forward.7} parent=0 // loop_footer_branch
    %9 = sbr.rel target = $region3
  $region8: #{generator32_forward.7} parent=0 // loop_exit
    _

// kernel: generator32_forward.8
$region0: #{generator32_forward.8}
  #allocation0 [shape = 'u32[]', space=smem, size = 0x4, offset = 0x4, fixed_abs, tag = 'smem constant byte address 0x4 - core index']
  #allocation1 [shape = 'u32[72,128]{1,0:T(1,128)}', space=vmem, size = 0x9000, scoped, tag = 'internal scratch']
  %s0 = inlined_call_operand.vmem [shape: f32[4,128,512], index: 0, kind: input, shape index: {}]
  %s1 = inlined_call_operand.vmem [shape: f32[4,512,128], index: 1, kind: input, shape index: {}]
  %s2 = inlined_call_operand.vmem [shape: f32[1,128], index: 2, kind: input, shape index: {}]
  %s3 = inlined_call_operand.vmem [shape: f32[1,128], index: 3, kind: input, shape index: {}]
  %s4 = inlined_call_operand.vmem [shape: f32[4,128,128], index: 4, kind: output, shape index: {}]
  %s5 = sld [smem:[#allocation0]]
  $region49: #{generator32_forward.8} parent=0
    _
  %s7 = ssub.s32 1, %s5
  %s8 = scalar_select 0, %s7, %s5
  loop: start=0, step=1, limit=6
  $region2: #{generator32_forward.8} parent=0 // loop_pre_header
    _
  $region3: #{generator32_forward.8} parent=0 // loop_header
    %s10 = sphi 0, %s14
    %p11 = scmp.ge.s32.totalorder %s10, 6
    %s17 = sphi 0, %s29
    %s18 = sphi 0, %s25
    %s19 = sphi 0, %s17
    %s20 = sphi 0, %s18
    %s21 = sphi 0, %s19
    %s22 = sphi 0, %s20
    %s32 = sphi 0, %s34
    %s35 = sphi 0, %s32
    %s36 = sphi 0, %s35
    %s52 = sphi 0, %s36
    %s60 = sphi 0, %s62
    %s63 = sphi 0, %s60
    %s64 = sphi 0, %s63
    %s80 = sphi 0, %s64
    %s86 = sphi 0, %s88
    %s89 = sphi 0, %s86
    %s90 = sphi 0, %s89
    %s106 = sphi 0, %s90
    %s112 = sphi 0, %s114
    %s115 = sphi 0, %s112
    %s116 = sphi 0, %s115
    %s132 = sphi 0, %s116
    %s140 = sphi 0, %s142
    %s143 = sphi 0, %s140
    %s144 = sphi 0, %s143
    %s160 = sphi 0, %s144
  $region4: #{generator32_forward.8} parent=0 // loop_header_branch
    %13 = sbr.rel (%p11) target = $region8
  $region5: #{generator32_forward.8} parent=0 // loop_body
    %s15 = ssub.s32 %s10, 1
    %s16 = ssub.s32 %s10, 2
    %s23 = sadd.s32 1, %s18
    %p24 = scmp.ge.s32.totalorder %s23, 1
    %s25 = scalar_select %p24, 0, %s23
    %s26 = sadd.s32 1, %s17
    %s27 = scalar_select %p24, %s26, %s17
    %p28 = scmp.ge.s32.totalorder %s27, 4
    %s29 = scalar_select %p28, 0, %s27
    %s30 = ssub.s32 %s17, %s29
    %p31 = scmp.eq.s32.totalorder %s30, 0
    %s33 = sadd.s32 %s32, 1
    %s34 = scalar_select %p31, %s32, %s33
    %p37 = pneg %p31
    %p38 = scmp.eq.s32.totalorder %s10, 3
    %p39 = por %p37, %p38
    %p40 = scmp.ne.s32.totalorder %s32, %s35
    %p41 = scmp.eq.s32.totalorder %s10, 0
    %p42 = por %p40, %p41
    %p43 = scmp.ne.s32.totalorder %s32, %s35
    %p44 = scmp.eq.s32.totalorder %s15, 3
    %p45 = por %p43, %p44
    %p46 = scmp.ne.s32.totalorder %s35, %s36
    %p47 = scmp.eq.s32.totalorder %s15, 0
    %p48 = por %p46, %p47
    %p49 = scmp.ne.s32.totalorder %s35, %s36
    %p50 = scmp.eq.s32.totalorder %s16, 3
    %p51 = por %p49, %p50
    %p53 = scmp.ne.s32.totalorder %s36, %s52
    %p54 = scmp.eq.s32.totalorder %s16, 0
    %p55 = por %p53, %p54
    %s56 = ssub.s32 %s17, %s29
    %s57 = ssub.s32 %s18, %s25
    %s58 = sor.u32 %s56, %s57
    %p59 = scmp.eq.s32.totalorder %s58, 0
    %s61 = sadd.s32 %s60, 1
    %s62 = scalar_select %p59, %s60, %s61
    %p65 = pneg %p59
    %p66 = scmp.eq.s32.totalorder %s10, 3
    %p67 = por %p65, %p66
    %p68 = scmp.ne.s32.totalorder %s60, %s63
    %p69 = scmp.eq.s32.totalorder %s10, 0
    %p70 = por %p68, %p69
    %p71 = scmp.ne.s32.totalorder %s60, %s63
    %p72 = scmp.eq.s32.totalorder %s15, 3
    %p73 = por %p71, %p72
    %p74 = scmp.ne.s32.totalorder %s63, %s64
    %p75 = scmp.eq.s32.totalorder %s15, 0
    %p76 = por %p74, %p75
    %p77 = scmp.ne.s32.totalorder %s63, %s64
    %p78 = scmp.eq.s32.totalorder %s16, 3
    %p79 = por %p77, %p78
    %p81 = scmp.ne.s32.totalorder %s64, %s80
    %p82 = scmp.eq.s32.totalorder %s16, 0
    %p83 = por %p81, %p82
    %s84 = ssub.s32 %s18, %s25
    %p85 = scmp.eq.s32.totalorder %s84, 0
    %s87 = sadd.s32 %s86, 1
    %s88 = scalar_select %p85, %s86, %s87
    %p91 = pneg %p85
    %p92 = scmp.eq.s32.totalorder %s10, 3
    %p93 = por %p91, %p92
    %p94 = scmp.ne.s32.totalorder %s86, %s89
    %p95 = scmp.eq.s32.totalorder %s10, 0
    %p96 = por %p94, %p95
    %p97 = scmp.ne.s32.totalorder %s86, %s89
    %p98 = scmp.eq.s32.totalorder %s15, 3
    %p99 = por %p97, %p98
    %p100 = scmp.ne.s32.totalorder %s89, %s90
    %p101 = scmp.eq.s32.totalorder %s15, 0
    %p102 = por %p100, %p101
    %p103 = scmp.ne.s32.totalorder %s89, %s90
    %p104 = scmp.eq.s32.totalorder %s16, 3
    %p105 = por %p103, %p104
    %p107 = scmp.ne.s32.totalorder %s90, %s106
    %p108 = scmp.eq.s32.totalorder %s16, 0
    %p109 = por %p107, %p108
    %s110 = ssub.s32 %s18, %s25
    %p111 = scmp.eq.s32.totalorder %s110, 0
    %s113 = sadd.s32 %s112, 1
    %s114 = scalar_select %p111, %s112, %s113
    %p117 = pneg %p111
    %p118 = scmp.eq.s32.totalorder %s10, 3
    %p119 = por %p117, %p118
    %p120 = scmp.ne.s32.totalorder %s112, %s115
    %p121 = scmp.eq.s32.totalorder %s10, 0
    %p122 = por %p120, %p121
    %p123 = scmp.ne.s32.totalorder %s112, %s115
    %p124 = scmp.eq.s32.totalorder %s15, 3
    %p125 = por %p123, %p124
    %p126 = scmp.ne.s32.totalorder %s115, %s116
    %p127 = scmp.eq.s32.totalorder %s15, 0
    %p128 = por %p126, %p127
    %p129 = scmp.ne.s32.totalorder %s115, %s116
    %p130 = scmp.eq.s32.totalorder %s16, 3
    %p131 = por %p129, %p130
    %p133 = scmp.ne.s32.totalorder %s116, %s132
    %p134 = scmp.eq.s32.totalorder %s16, 0
    %p135 = por %p133, %p134
    %s136 = ssub.s32 %s17, %s29
    %s137 = ssub.s32 %s18, %s25
    %s138 = sor.u32 %s136, %s137
    %p139 = scmp.eq.s32.totalorder %s138, 0
    %s141 = sadd.s32 %s140, 1
    %s142 = scalar_select %p139, %s140, %s141
    %p145 = pneg %p139
    %p146 = scmp.eq.s32.totalorder %s10, 3
    %p147 = por %p145, %p146
    %p148 = scmp.ne.s32.totalorder %s140, %s143
    %p149 = scmp.eq.s32.totalorder %s10, 0
    %p150 = por %p148, %p149
    %p151 = scmp.ne.s32.totalorder %s140, %s143
    %p152 = scmp.eq.s32.totalorder %s15, 3
    %p153 = por %p151, %p152
    %p154 = scmp.ne.s32.totalorder %s143, %s144
    %p155 = scmp.eq.s32.totalorder %s15, 0
    %p156 = por %p154, %p155
    %p157 = scmp.ne.s32.totalorder %s143, %s144
    %p158 = scmp.eq.s32.totalorder %s16, 3
    %p159 = por %p157, %p158
    %p161 = scmp.ne.s32.totalorder %s144, %s160
    %p162 = scmp.eq.s32.totalorder %s16, 0
    %p163 = por %p161, %p162
    %p164 = scmp.le.s32.totalorder 1, %s10
    %p165 = scmp.lt.s32.totalorder %s10, 5
    %p166 = pnand %p164, %p165
    %p167 = pneg %p166
    // Predicated region
    $region9: #{generator32_forward.8} parent=5 // pred_check
      _
    $region10: #{generator32_forward.8} parent=5 // pred_check_branch
      %169 = sbr.rel (%p166) target = $region12
    $region11: #{generator32_forward.8} parent=5 // pred_region
      %s170 = ssub.s32 %s10, 1
      // Predicated region
      $region13: #{generator32_forward.8} parent=11 // pred_check
        %p171 = pneg %p102
      $region14: #{generator32_forward.8} parent=11 // pred_check_branch
        %173 = sbr.rel (%p171) target = $region16
      $region15: #{generator32_forward.8} parent=11 // pred_region
        %p174 = scmp.lt.s32.totalorder %s20, 0
        %s175 = scalar_select %p174, %s20, 0
        %s176 = scalar_lea.vmem %s2, %s175
      $region16: #{generator32_forward.8} parent=11 // pred_fallthru
        _
      // Predicated region
      $region17: #{generator32_forward.8} parent=11 // pred_check
        %p177 = pneg %p128
      $region18: #{generator32_forward.8} parent=11 // pred_check_branch
        %179 = sbr.rel (%p177) target = $region20
      $region19: #{generator32_forward.8} parent=11 // pred_region
        %p180 = scmp.lt.s32.totalorder %s20, 0
        %s181 = scalar_select %p180, %s20, 0
        %s182 = scalar_lea.vmem %s3, %s181
      $region20: #{generator32_forward.8} parent=11 // pred_fallthru
        _
    $region12: #{generator32_forward.8} parent=5 // pred_fallthru
      _
    %p183 = scmp.lt.s32.totalorder %s10, 4
    // Predicated region
    $region21: #{generator32_forward.8} parent=5 // pred_check
      %p184 = pneg %p183
    $region22: #{generator32_forward.8} parent=5 // pred_check_branch
      %186 = sbr.rel (%p184) target = $region24
    $region23: #{generator32_forward.8} parent=5 // pred_region
      // Predicated region
      $region25: #{generator32_forward.8} parent=23 // pred_check
        %p187 = pneg %p42
      $region26: #{generator32_forward.8} parent=23 // pred_check_branch
        %189 = sbr.rel (%p187) target = $region28
      $region27: #{generator32_forward.8} parent=23 // pred_region
        %p190 = scmp.lt.s32.totalorder %s17, 3
        %s191 = scalar_select %p190, %s17, 3
        %s192 = smul.addr %s191, 64
        %s193 = smul.addr %s192, 8
        %s194 = scalar_lea.vmem %s0, %s193
      $region28: #{generator32_forward.8} parent=23 // pred_fallthru
        _
      // Predicated region
      $region29: #{generator32_forward.8} parent=23 // pred_check
        %p195 = pneg %p70
      $region30: #{generator32_forward.8} parent=23 // pred_check_branch
        %197 = sbr.rel (%p195) target = $region32
      $region31: #{generator32_forward.8} parent=23 // pred_region
        %p198 = scmp.lt.s32.totalorder %s17, 3
        %s199 = scalar_select %p198, %s17, 3
        %p200 = scmp.lt.s32.totalorder %s18, 0
        %s201 = scalar_select %p200, %s18, 0
        %s202 = smul.addr %s199, 64
        %s203 = sadd.s32 %s201, %s202
        %s204 = smul.addr %s203, 8
        %s205 = scalar_lea.vmem %s1, %s204
      $region32: #{generator32_forward.8} parent=23 // pred_fallthru
        _
    $region24: #{generator32_forward.8} parent=5 // pred_fallthru
      _
    %p206 = scmp.le.s32.totalorder 1, %s10
    %p207 = scmp.lt.s32.totalorder %s10, 5
    %p208 = pnand %p206, %p207
    %p209 = pneg %p208
    // Predicated region
    $region33: #{generator32_forward.8} parent=5 // pred_check
      _
    $region34: #{generator32_forward.8} parent=5 // pred_check_branch
      %211 = sbr.rel (%p208) target = $region36
    $region35: #{generator32_forward.8} parent=5 // pred_region
      %s212 = ssub.s32 %s10, 1
      %p213 = scmp.lt.s32.totalorder %s19, 3
      %s214 = scalar_select %p213, %s19, 3
      %s215 = smul.addr %s214, 64
      %s216 = smul.addr %s215, 8
      %s217 = scalar_lea.vmem %s0, %s216
      %p218 = pneg %p48
      %p219 = pneg %p45
      %p220 = scmp.lt.s32.totalorder %s19, 3
      %s221 = scalar_select %p220, %s19, 3
      %p222 = scmp.lt.s32.totalorder %s20, 0
      %s223 = scalar_select %p222, %s20, 0
      %s224 = smul.addr %s221, 64
      %s225 = sadd.s32 %s223, %s224
      %s226 = smul.addr %s225, 8
      %s227 = scalar_lea.vmem %s1, %s226
      %p228 = pneg %p76
      %p229 = pneg %p73
      %p230 = scmp.lt.s32.totalorder %s20, 0
      %s231 = scalar_select %p230, %s20, 0
      %s232 = scalar_lea.vmem %s2, %s231
      %p233 = pneg %p102
      %p234 = pneg %p99
      %p235 = scmp.lt.s32.totalorder %s20, 0
      %s236 = scalar_select %p235, %s20, 0
      %s237 = scalar_lea.vmem %s3, %s236
      %p238 = pneg %p128
      %p239 = pneg %p125
      %p240 = pneg %p156
      %p241 = pneg %p153
      %p242 = scmp.lt.s32.totalorder %s19, 3
      %s243 = scalar_select %p242, %s19, 3
      %p244 = scmp.lt.s32.totalorder %s20, 0
      %s245 = scalar_select %p244, %s20, 0
      %s246 = smul.addr %s243, 16
      %s247 = sadd.s32 %s245, %s246
      %s248 = smul.addr %s247, 8
      %s249 = scalar_lea.vmem %s4, %s248
      %p250 = scmp.lt.s32.totalorder %s19, 3
      %s251 = scalar_select %p250, %s19, 3
      %s252 = smul.addr %s251, 64
      %s253 = smul.addr %s252, 8
      %s254 = scalar_lea.vmem %s0, %s253
      %p255 = scmp.lt.s32.totalorder %s19, 3
      %s256 = scalar_select %p255, %s19, 3
      %p257 = scmp.lt.s32.totalorder %s20, 0
      %s258 = scalar_select %p257, %s20, 0
      %s259 = smul.addr %s256, 64
      %s260 = sadd.s32 %s258, %s259
      %s261 = smul.addr %s260, 8
      %s262 = scalar_lea.vmem %s1, %s261
      %p263 = scmp.lt.s32.totalorder %s20, 0
      %s264 = scalar_select %p263, %s20, 0
      %s265 = scalar_lea.vmem %s2, %s264
      %p266 = scmp.lt.s32.totalorder %s20, 0
      %s267 = scalar_select %p266, %s20, 0
      %s268 = scalar_lea.vmem %s3, %s267
      %p269 = scmp.lt.s32.totalorder %s19, 3
      %s270 = scalar_select %p269, %s19, 3
      %p271 = scmp.lt.s32.totalorder %s20, 0
      %s272 = scalar_select %p271, %s20, 0
      %s273 = smul.addr %s270, 16
      %s274 = sadd.s32 %s272, %s273
      %s275 = smul.addr %s274, 8
      %s276 = scalar_lea.vmem %s4, %s275
      %v277 = vld [vmem:[%s254] sm:$0xff]
      %v278 = vld [vmem:[%s254 + $0x8] sm:$0xff]
      %v279 = vld [vmem:[%s254 + $0x10] sm:$0xff]
      %v280 = vld [vmem:[%s254 + $0x18] sm:$0xff]
      %v281 = vld [vmem:[%s254 + $0x20] sm:$0xff]
      %v282 = vld [vmem:[%s254 + $0x28] sm:$0xff]
      %v283 = vld [vmem:[%s254 + $0x30] sm:$0xff]
      %v284 = vld [vmem:[%s254 + $0x38] sm:$0xff]
      %v285 = vld [vmem:[%s254 + $0x40] sm:$0xff]
      %v286 = vld [vmem:[%s254 + $0x48] sm:$0xff]
      %v287 = vld [vmem:[%s254 + $0x50] sm:$0xff]
      %v288 = vld [vmem:[%s254 + $0x58] sm:$0xff]
      %v289 = vld [vmem:[%s254 + $0x60] sm:$0xff]
      %v290 = vld [vmem:[%s254 + $0x68] sm:$0xff]
      %v291 = vld [vmem:[%s254 + $0x70] sm:$0xff]
      %v292 = vld [vmem:[%s254 + $0x78] sm:$0xff]
      %v293 = vld [vmem:[%s254 + $0x80] sm:$0xff]
      %v294 = vld [vmem:[%s254 + $0x88] sm:$0xff]
      %v295 = vld [vmem:[%s254 + $0x90] sm:$0xff]
      %v296 = vld [vmem:[%s254 + $0x98] sm:$0xff]
      %v297 = vld [vmem:[%s254 + $0xa0] sm:$0xff]
      %v298 = vld [vmem:[%s254 + $0xa8] sm:$0xff]
      %v299 = vld [vmem:[%s254 + $0xb0] sm:$0xff]
      %v300 = vld [vmem:[%s254 + $0xb8] sm:$0xff]
      %v301 = vld [vmem:[%s254 + $0xc0] sm:$0xff]
      %v302 = vld [vmem:[%s254 + $0xc8] sm:$0xff]
      %v303 = vld [vmem:[%s254 + $0xd0] sm:$0xff]
      %v304 = vld [vmem:[%s254 + $0xd8] sm:$0xff]
      %v305 = vld [vmem:[%s254 + $0xe0] sm:$0xff]
      %v306 = vld [vmem:[%s254 + $0xe8] sm:$0xff]
      %v307 = vld [vmem:[%s254 + $0xf0] sm:$0xff]
      %v308 = vld [vmem:[%s254 + $0xf8] sm:$0xff]
      %v309 = vld [vmem:[%s254 + $0x100] sm:$0xff]
      %v310 = vld [vmem:[%s254 + $0x108] sm:$0xff]
      %v311 = vld [vmem:[%s254 + $0x110] sm:$0xff]
      %v312 = vld [vmem:[%s254 + $0x118] sm:$0xff]
      %v313 = vld [vmem:[%s254 + $0x120] sm:$0xff]
      %v314 = vld [vmem:[%s254 + $0x128] sm:$0xff]
      %v315 = vld [vmem:[%s254 + $0x130] sm:$0xff]
      %v316 = vld [vmem:[%s254 + $0x138] sm:$0xff]
      %v317 = vld [vmem:[%s254 + $0x140] sm:$0xff]
      %v318 = vld [vmem:[%s254 + $0x148] sm:$0xff]
      %v319 = vld [vmem:[%s254 + $0x150] sm:$0xff]
      %v320 = vld [vmem:[%s254 + $0x158] sm:$0xff]
      %v321 = vld [vmem:[%s254 + $0x160] sm:$0xff]
      %v322 = vld [vmem:[%s254 + $0x168] sm:$0xff]
      %v323 = vld [vmem:[%s254 + $0x170] sm:$0xff]
      %v324 = vld [vmem:[%s254 + $0x178] sm:$0xff]
      %v325 = vld [vmem:[%s254 + $0x180] sm:$0xff]
      %v326 = vld [vmem:[%s254 + $0x188] sm:$0xff]
      %v327 = vld [vmem:[%s254 + $0x190] sm:$0xff]
      %v328 = vld [vmem:[%s254 + $0x198] sm:$0xff]
      %v329 = vld [vmem:[%s254 + $0x1a0] sm:$0xff]
      %v330 = vld [vmem:[%s254 + $0x1a8] sm:$0xff]
      %v331 = vld [vmem:[%s254 + $0x1b0] sm:$0xff]
      %v332 = vld [vmem:[%s254 + $0x1b8] sm:$0xff]
      %v333 = vld [vmem:[%s254 + $0x1c0] sm:$0xff]
      %v334 = vld [vmem:[%s254 + $0x1c8] sm:$0xff]
      %v335 = vld [vmem:[%s254 + $0x1d0] sm:$0xff]
      %v336 = vld [vmem:[%s254 + $0x1d8] sm:$0xff]
      %v337 = vld [vmem:[%s254 + $0x1e0] sm:$0xff]
      %v338 = vld [vmem:[%s254 + $0x1e8] sm:$0xff]
      %v339 = vld [vmem:[%s254 + $0x1f0] sm:$0xff]
      %v340 = vld [vmem:[%s254 + $0x1f8] sm:$0xff]
      %v341 = vld [vmem:[%s262] sm:$0xff]
      %v342 = vld [vmem:[%s262 + $0x8] sm:$0xff]
      %v343 = vld [vmem:[%s262 + $0x10] sm:$0xff]
      %v344 = vld [vmem:[%s262 + $0x18] sm:$0xff]
      %v345 = vld [vmem:[%s262 + $0x20] sm:$0xff]
      %v346 = vld [vmem:[%s262 + $0x28] sm:$0xff]
      %v347 = vld [vmem:[%s262 + $0x30] sm:$0xff]
      %v348 = vld [vmem:[%s262 + $0x38] sm:$0xff]
      %v349 = vld [vmem:[%s262 + $0x40] sm:$0xff]
      %v350 = vld [vmem:[%s262 + $0x48] sm:$0xff]
      %v351 = vld [vmem:[%s262 + $0x50] sm:$0xff]
      %v352 = vld [vmem:[%s262 + $0x58] sm:$0xff]
      %v353 = vld [vmem:[%s262 + $0x60] sm:$0xff]
      %v354 = vld [vmem:[%s262 + $0x68] sm:$0xff]
      %v355 = vld [vmem:[%s262 + $0x70] sm:$0xff]
      %v356 = vld [vmem:[%s262 + $0x78] sm:$0xff]
      %v357 = vld [vmem:[%s262 + $0x80] sm:$0xff]
      %v358 = vld [vmem:[%s262 + $0x88] sm:$0xff]
      %v359 = vld [vmem:[%s262 + $0x90] sm:$0xff]
      %v360 = vld [vmem:[%s262 + $0x98] sm:$0xff]
      %v361 = vld [vmem:[%s262 + $0xa0] sm:$0xff]
      %v362 = vld [vmem:[%s262 + $0xa8] sm:$0xff]
      %v363 = vld [vmem:[%s262 + $0xb0] sm:$0xff]
      %v364 = vld [vmem:[%s262 + $0xb8] sm:$0xff]
      %v365 = vld [vmem:[%s262 + $0xc0] sm:$0xff]
      %v366 = vld [vmem:[%s262 + $0xc8] sm:$0xff]
      %v367 = vld [vmem:[%s262 + $0xd0] sm:$0xff]
      %v368 = vld [vmem:[%s262 + $0xd8] sm:$0xff]
      %v369 = vld [vmem:[%s262 + $0xe0] sm:$0xff]
      %v370 = vld [vmem:[%s262 + $0xe8] sm:$0xff]
      %v371 = vld [vmem:[%s262 + $0xf0] sm:$0xff]
      %v372 = vld [vmem:[%s262 + $0xf8] sm:$0xff]
      %v373 = vld [vmem:[%s262 + $0x100] sm:$0xff]
      %v374 = vld [vmem:[%s262 + $0x108] sm:$0xff]
      %v375 = vld [vmem:[%s262 + $0x110] sm:$0xff]
      %v376 = vld [vmem:[%s262 + $0x118] sm:$0xff]
      %v377 = vld [vmem:[%s262 + $0x120] sm:$0xff]
      %v378 = vld [vmem:[%s262 + $0x128] sm:$0xff]
      %v379 = vld [vmem:[%s262 + $0x130] sm:$0xff]
      %v380 = vld [vmem:[%s262 + $0x138] sm:$0xff]
      %v381 = vld [vmem:[%s262 + $0x140] sm:$0xff]
      %v382 = vld [vmem:[%s262 + $0x148] sm:$0xff]
      %v383 = vld [vmem:[%s262 + $0x150] sm:$0xff]
      %v384 = vld [vmem:[%s262 + $0x158] sm:$0xff]
      %v385 = vld [vmem:[%s262 + $0x160] sm:$0xff]
      %v386 = vld [vmem:[%s262 + $0x168] sm:$0xff]
      %v387 = vld [vmem:[%s262 + $0x170] sm:$0xff]
      %v388 = vld [vmem:[%s262 + $0x178] sm:$0xff]
      %v389 = vld [vmem:[%s262 + $0x180] sm:$0xff]
      %v390 = vld [vmem:[%s262 + $0x188] sm:$0xff]
      %v391 = vld [vmem:[%s262 + $0x190] sm:$0xff]
      %v392 = vld [vmem:[%s262 + $0x198] sm:$0xff]
      %v393 = vld [vmem:[%s262 + $0x1a0] sm:$0xff]
      %v394 = vld [vmem:[%s262 + $0x1a8] sm:$0xff]
      %v395 = vld [vmem:[%s262 + $0x1b0] sm:$0xff]
      %v396 = vld [vmem:[%s262 + $0x1b8] sm:$0xff]
      %v397 = vld [vmem:[%s262 + $0x1c0] sm:$0xff]
      %v398 = vld [vmem:[%s262 + $0x1c8] sm:$0xff]
      %v399 = vld [vmem:[%s262 + $0x1d0] sm:$0xff]
      %v400 = vld [vmem:[%s262 + $0x1d8] sm:$0xff]
      %v401 = vld [vmem:[%s262 + $0x1e0] sm:$0xff]
      %v402 = vld [vmem:[%s262 + $0x1e8] sm:$0xff]
      %v403 = vld [vmem:[%s262 + $0x1f0] sm:$0xff]
      %v404 = vld [vmem:[%s262 + $0x1f8] sm:$0xff]
      %405 = vmatpush.msra.mxu0 %v356
      %406 = vmatpush.msra.mxu0 %v355
      %407 = vmatpush.msra.mxu0 %v354
      %408 = vmatpush.msra.mxu0 %v353
      %409 = vmatpush.msra.mxu0 %v352
      %410 = vmatpush.msra.mxu0 %v351
      %411 = vmatpush.msra.mxu0 %v350
      %412 = vmatpush.msra.mxu0 %v349
      %413 = vmatpush.msra.mxu0 %v348
      %414 = vmatpush.msra.mxu0 %v347
      %415 = vmatpush.msra.mxu0 %v346
      %416 = vmatpush.msra.mxu0 %v345
      %417 = vmatpush.msra.mxu0 %v344
      %418 = vmatpush.msra.mxu0 %v343
      %419 = vmatpush.msra.mxu0 %v342
      %420 = vmatpush.msra.mxu0 %v341
      %421 = vmatmul.f32.gmra.mxu0 %v277
      %v422 = vpop.f32.mrf.mxu0
      %v423 = vadd.f32 0.0, %v422
      %424 = vmatmul.f32.gmra.mxu0 %v281
      %v425 = vpop.f32.mrf.mxu0
      %v426 = vadd.f32 0.0, %v425
      %427 = vmatmul.f32.gmra.mxu0 %v285
      %v428 = vpop.f32.mrf.mxu0
      %v429 = vadd.f32 0.0, %v428
      %430 = vmatmul.f32.gmra.mxu0 %v289
      %v431 = vpop.f32.mrf.mxu0
      %v432 = vadd.f32 0.0, %v431
      %433 = vmatmul.f32.gmra.mxu0 %v293
      %v434 = vpop.f32.mrf.mxu0
      %v435 = vadd.f32 0.0, %v434
      %436 = vmatmul.f32.gmra.mxu0 %v297
      %v437 = vpop.f32.mrf.mxu0
      %v438 = vadd.f32 0.0, %v437
      %439 = vmatmul.f32.gmra.mxu0 %v301
      %v440 = vpop.f32.mrf.mxu0
      %v441 = vadd.f32 0.0, %v440
      %442 = vmatmul.f32.gmra.mxu0 %v305
      %v443 = vpop.f32.mrf.mxu0
      %v444 = vadd.f32 0.0, %v443
      %445 = vmatmul.f32.gmra.mxu0 %v309
      %v446 = vpop.f32.mrf.mxu0
      %v447 = vadd.f32 0.0, %v446
      %448 = vmatmul.f32.gmra.mxu0 %v313
      %v449 = vpop.f32.mrf.mxu0
      %v450 = vadd.f32 0.0, %v449
      %451 = vmatmul.f32.gmra.mxu0 %v317
      %v452 = vpop.f32.mrf.mxu0
      %v453 = vadd.f32 0.0, %v452
      %454 = vmatmul.f32.gmra.mxu0 %v321
      %v455 = vpop.f32.mrf.mxu0
      %v456 = vadd.f32 0.0, %v455
      %457 = vmatmul.f32.gmra.mxu0 %v325
      %v458 = vpop.f32.mrf.mxu0
      %v459 = vadd.f32 0.0, %v458
      %460 = vmatmul.f32.gmra.mxu0 %v329
      %v461 = vpop.f32.mrf.mxu0
      %v462 = vadd.f32 0.0, %v461
      %463 = vmatmul.f32.gmra.mxu0 %v333
      %v464 = vpop.f32.mrf.mxu0
      %v465 = vadd.f32 0.0, %v464
      %466 = vmatmul.f32.gmra.mxu0 %v337
      %v467 = vpop.f32.mrf.mxu0
      %v468 = vadd.f32 0.0, %v467
      %469 = vdwg.mxu0
      %470 = vmatpush.msra.mxu0 %v372
      %471 = vmatpush.msra.mxu0 %v371
      %472 = vmatpush.msra.mxu0 %v370
      %473 = vmatpush.msra.mxu0 %v369
      %474 = vmatpush.msra.mxu0 %v368
      %475 = vmatpush.msra.mxu0 %v367
      %476 = vmatpush.msra.mxu0 %v366
      %477 = vmatpush.msra.mxu0 %v365
      %478 = vmatpush.msra.mxu0 %v364
      %479 = vmatpush.msra.mxu0 %v363
      %480 = vmatpush.msra.mxu0 %v362
      %481 = vmatpush.msra.mxu0 %v361
      %482 = vmatpush.msra.mxu0 %v360
      %483 = vmatpush.msra.mxu0 %v359
      %484 = vmatpush.msra.mxu0 %v358
      %485 = vmatpush.msra.mxu0 %v357
      %486 = vmatmul.f32.gmra.mxu0 %v278
      %v487 = vpop.f32.mrf.mxu0
      %v488 = vadd.f32 %v423, %v487
      %489 = vmatmul.f32.gmra.mxu0 %v282
      %v490 = vpop.f32.mrf.mxu0
      %v491 = vadd.f32 %v426, %v490
      %492 = vmatmul.f32.gmra.mxu0 %v286
      %v493 = vpop.f32.mrf.mxu0
      %v494 = vadd.f32 %v429, %v493
      %495 = vmatmul.f32.gmra.mxu0 %v290
      %v496 = vpop.f32.mrf.mxu0
      %v497 = vadd.f32 %v432, %v496
      %498 = vmatmul.f32.gmra.mxu0 %v294
      %v499 = vpop.f32.mrf.mxu0
      %v500 = vadd.f32 %v435, %v499
      %501 = vmatmul.f32.gmra.mxu0 %v298
      %v502 = vpop.f32.mrf.mxu0
      %v503 = vadd.f32 %v438, %v502
      %504 = vmatmul.f32.gmra.mxu0 %v302
      %v505 = vpop.f32.mrf.mxu0
      %v506 = vadd.f32 %v441, %v505
      %507 = vmatmul.f32.gmra.mxu0 %v306
      %v508 = vpop.f32.mrf.mxu0
      %v509 = vadd.f32 %v444, %v508
      %510 = vmatmul.f32.gmra.mxu0 %v310
      %v511 = vpop.f32.mrf.mxu0
      %v512 = vadd.f32 %v447, %v511
      %513 = vmatmul.f32.gmra.mxu0 %v314
      %v514 = vpop.f32.mrf.mxu0
      %v515 = vadd.f32 %v450, %v514
      %516 = vmatmul.f32.gmra.mxu0 %v318
      %v517 = vpop.f32.mrf.mxu0
      %v518 = vadd.f32 %v453, %v517
      %519 = vmatmul.f32.gmra.mxu0 %v322
      %v520 = vpop.f32.mrf.mxu0
      %v521 = vadd.f32 %v456, %v520
      %522 = vmatmul.f32.gmra.mxu0 %v326
      %v523 = vpop.f32.mrf.mxu0
      %v524 = vadd.f32 %v459, %v523
      %525 = vmatmul.f32.gmra.mxu0 %v330
      %v526 = vpop.f32.mrf.mxu0
      %v527 = vadd.f32 %v462, %v526
      %528 = vmatmul.f32.gmra.mxu0 %v334
      %v529 = vpop.f32.mrf.mxu0
      %v530 = vadd.f32 %v465, %v529
      %531 = vmatmul.f32.gmra.mxu0 %v338
      %v532 = vpop.f32.mrf.mxu0
      %v533 = vadd.f32 %v468, %v532
      %534 = vdwg.mxu0
      %535 = vmatpush.msra.mxu0 %v388
      %536 = vmatpush.msra.mxu0 %v387
      %537 = vmatpush.msra.mxu0 %v386
      %538 = vmatpush.msra.mxu0 %v385
      %539 = vmatpush.msra.mxu0 %v384
      %540 = vmatpush.msra.mxu0 %v383
      %541 = vmatpush.msra.mxu0 %v382
      %542 = vmatpush.msra.mxu0 %v381
      %543 = vmatpush.msra.mxu0 %v380
      %544 = vmatpush.msra.mxu0 %v379
      %545 = vmatpush.msra.mxu0 %v378
      %546 = vmatpush.msra.mxu0 %v377
      %547 = vmatpush.msra.mxu0 %v376
      %548 = vmatpush.msra.mxu0 %v375
      %549 = vmatpush.msra.mxu0 %v374
      %550 = vmatpush.msra.mxu0 %v373
      %551 = vmatmul.f32.gmra.mxu0 %v279
      %v552 = vpop.f32.mrf.mxu0
      %v553 = vadd.f32 %v488, %v552
      %554 = vmatmul.f32.gmra.mxu0 %v283
      %v555 = vpop.f32.mrf.mxu0
      %v556 = vadd.f32 %v491, %v555
      %557 = vmatmul.f32.gmra.mxu0 %v287
      %v558 = vpop.f32.mrf.mxu0
      %v559 = vadd.f32 %v494, %v558
      %560 = vmatmul.f32.gmra.mxu0 %v291
      %v561 = vpop.f32.mrf.mxu0
      %v562 = vadd.f32 %v497, %v561
      %563 = vmatmul.f32.gmra.mxu0 %v295
      %v564 = vpop.f32.mrf.mxu0
      %v565 = vadd.f32 %v500, %v564
      %566 = vmatmul.f32.gmra.mxu0 %v299
      %v567 = vpop.f32.mrf.mxu0
      %v568 = vadd.f32 %v503, %v567
      %569 = vmatmul.f32.gmra.mxu0 %v303
      %v570 = vpop.f32.mrf.mxu0
      %v571 = vadd.f32 %v506, %v570
      %572 = vmatmul.f32.gmra.mxu0 %v307
      %v573 = vpop.f32.mrf.mxu0
      %v574 = vadd.f32 %v509, %v573
      %575 = vmatmul.f32.gmra.mxu0 %v311
      %v576 = vpop.f32.mrf.mxu0
      %v577 = vadd.f32 %v512, %v576
      %578 = vmatmul.f32.gmra.mxu0 %v315
      %v579 = vpop.f32.mrf.mxu0
      %v580 = vadd.f32 %v515, %v579
      %581 = vmatmul.f32.gmra.mxu0 %v319
      %v582 = vpop.f32.mrf.mxu0
      %v583 = vadd.f32 %v518, %v582
      %584 = vmatmul.f32.gmra.mxu0 %v323
      %v585 = vpop.f32.mrf.mxu0
      %v586 = vadd.f32 %v521, %v585
      %587 = vmatmul.f32.gmra.mxu0 %v327
      %v588 = vpop.f32.mrf.mxu0
      %v589 = vadd.f32 %v524, %v588
      %590 = vmatmul.f32.gmra.mxu0 %v331
      %v591 = vpop.f32.mrf.mxu0
      %v592 = vadd.f32 %v527, %v591
      %593 = vmatmul.f32.gmra.mxu0 %v335
      %v594 = vpop.f32.mrf.mxu0
      %v595 = vadd.f32 %v530, %v594
      %596 = vmatmul.f32.gmra.mxu0 %v339
      %v597 = vpop.f32.mrf.mxu0
      %v598 = vadd.f32 %v533, %v597
      %599 = vdwg.mxu0
      %600 = vmatpush.msra.mxu0 %v404
      %601 = vmatpush.msra.mxu0 %v403
      %602 = vmatpush.msra.mxu0 %v402
      %603 = vmatpush.msra.mxu0 %v401
      %604 = vmatpush.msra.mxu0 %v400
      %605 = vmatpush.msra.mxu0 %v399
      %606 = vmatpush.msra.mxu0 %v398
      %607 = vmatpush.msra.mxu0 %v397
      %608 = vmatpush.msra.mxu0 %v396
      %609 = vmatpush.msra.mxu0 %v395
      %610 = vmatpush.msra.mxu0 %v394
      %611 = vmatpush.msra.mxu0 %v393
      %612 = vmatpush.msra.mxu0 %v392
      %613 = vmatpush.msra.mxu0 %v391
      %614 = vmatpush.msra.mxu0 %v390
      %615 = vmatpush.msra.mxu0 %v389
      %616 = vmatmul.f32.gmra.mxu0 %v280
      %v617 = vpop.f32.mrf.mxu0
      %v618 = vadd.f32 %v553, %v617
      %619 = vmatmul.f32.gmra.mxu0 %v284
      %v620 = vpop.f32.mrf.mxu0
      %v621 = vadd.f32 %v556, %v620
      %622 = vmatmul.f32.gmra.mxu0 %v288
      %v623 = vpop.f32.mrf.mxu0
      %v624 = vadd.f32 %v559, %v623
      %625 = vmatmul.f32.gmra.mxu0 %v292
      %v626 = vpop.f32.mrf.mxu0
      %v627 = vadd.f32 %v562, %v626
      %628 = vmatmul.f32.gmra.mxu0 %v296
      %v629 = vpop.f32.mrf.mxu0
      %v630 = vadd.f32 %v565, %v629
      %631 = vmatmul.f32.gmra.mxu0 %v300
      %v632 = vpop.f32.mrf.mxu0
      %v633 = vadd.f32 %v568, %v632
      %634 = vmatmul.f32.gmra.mxu0 %v304
      %v635 = vpop.f32.mrf.mxu0
      %v636 = vadd.f32 %v571, %v635
      %637 = vmatmul.f32.gmra.mxu0 %v308
      %v638 = vpop.f32.mrf.mxu0
      %v639 = vadd.f32 %v574, %v638
      %640 = vmatmul.f32.gmra.mxu0 %v312
      %v641 = vpop.f32.mrf.mxu0
      %v642 = vadd.f32 %v577, %v641
      %643 = vmatmul.f32.gmra.mxu0 %v316
      %v644 = vpop.f32.mrf.mxu0
      %v645 = vadd.f32 %v580, %v644
      %646 = vmatmul.f32.gmra.mxu0 %v320
      %v647 = vpop.f32.mrf.mxu0
      %v648 = vadd.f32 %v583, %v647
      %649 = vmatmul.f32.gmra.mxu0 %v324
      %v650 = vpop.f32.mrf.mxu0
      %v651 = vadd.f32 %v586, %v650
      %652 = vmatmul.f32.gmra.mxu0 %v328
      %v653 = vpop.f32.mrf.mxu0
      %v654 = vadd.f32 %v589, %v653
      %655 = vmatmul.f32.gmra.mxu0 %v332
      %v656 = vpop.f32.mrf.mxu0
      %v657 = vadd.f32 %v592, %v656
      %658 = vmatmul.f32.gmra.mxu0 %v336
      %v659 = vpop.f32.mrf.mxu0
      %v660 = vadd.f32 %v595, %v659
      %661 = vmatmul.f32.gmra.mxu0 %v340
      %v662 = vpop.f32.mrf.mxu0
      %v663 = vadd.f32 %v598, %v662
      %664 = vdwg.mxu0
      %vm665 = vcmp.ge.f32.partialorder %v618, 0.0
      %vm666 = vcmp.ge.f32.partialorder %v621, 0.0
      %vm667 = vcmp.ge.f32.partialorder %v624, 0.0
      %vm668 = vcmp.ge.f32.partialorder %v627, 0.0
      %vm669 = vcmp.ge.f32.partialorder %v630, 0.0
      %vm670 = vcmp.ge.f32.partialorder %v633, 0.0
      %vm671 = vcmp.ge.f32.partialorder %v636, 0.0
      %vm672 = vcmp.ge.f32.partialorder %v639, 0.0
      %vm673 = vcmp.ge.f32.partialorder %v642, 0.0
      %vm674 = vcmp.ge.f32.partialorder %v645, 0.0
      %vm675 = vcmp.ge.f32.partialorder %v648, 0.0
      %vm676 = vcmp.ge.f32.partialorder %v651, 0.0
      %vm677 = vcmp.ge.f32.partialorder %v654, 0.0
      %vm678 = vcmp.ge.f32.partialorder %v657, 0.0
      %vm679 = vcmp.ge.f32.partialorder %v660, 0.0
      %vm680 = vcmp.ge.f32.partialorder %v663, 0.0
      %v681 = vmul.f32 %v618, 0.01
      %v682 = vmul.f32 %v621, 0.01
      %v683 = vmul.f32 %v624, 0.01
      %v684 = vmul.f32 %v627, 0.01
      %v685 = vmul.f32 %v630, 0.01
      %v686 = vmul.f32 %v633, 0.01
      %v687 = vmul.f32 %v636, 0.01
      %v688 = vmul.f32 %v639, 0.01
      %v689 = vmul.f32 %v642, 0.01
      %v690 = vmul.f32 %v645, 0.01
      %v691 = vmul.f32 %v648, 0.01
      %v692 = vmul.f32 %v651, 0.01
      %v693 = vmul.f32 %v654, 0.01
      %v694 = vmul.f32 %v657, 0.01
      %v695 = vmul.f32 %v660, 0.01
      %v696 = vmul.f32 %v663, 0.01
      %v697 = vsel %vm665, %v618, %v681
      %v698 = vsel %vm666, %v621, %v682
      %v699 = vsel %vm667, %v624, %v683
      %v700 = vsel %vm668, %v627, %v684
      %v701 = vsel %vm669, %v630, %v685
      %v702 = vsel %vm670, %v633, %v686
      %v703 = vsel %vm671, %v636, %v687
      %v704 = vsel %vm672, %v639, %v688
      %v705 = vsel %vm673, %v642, %v689
      %v706 = vsel %vm674, %v645, %v690
      %v707 = vsel %vm675, %v648, %v691
      %v708 = vsel %vm676, %v651, %v692
      %v709 = vsel %vm677, %v654, %v693
      %v710 = vsel %vm678, %v657, %v694
      %v711 = vsel %vm679, %v660, %v695
      %v712 = vsel %vm680, %v663, %v696
      %v713 = vld [vmem:[%s265] sm:$0x1]
      %v715 = vperm.slane %v713, 0
      %v717 = vmul.f32 %v697, %v715
      %v718 = vmul.f32 %v698, %v715
      %v719 = vmul.f32 %v699, %v715
      %v720 = vmul.f32 %v700, %v715
      %v721 = vmul.f32 %v701, %v715
      %v722 = vmul.f32 %v702, %v715
      %v723 = vmul.f32 %v703, %v715
      %v724 = vmul.f32 %v704, %v715
      %v725 = vmul.f32 %v705, %v715
      %v726 = vmul.f32 %v706, %v715
      %v727 = vmul.f32 %v707, %v715
      %v728 = vmul.f32 %v708, %v715
      %v729 = vmul.f32 %v709, %v715
      %v730 = vmul.f32 %v710, %v715
      %v731 = vmul.f32 %v711, %v715
      %v732 = vmul.f32 %v712, %v715
      %v733 = vld [vmem:[%s268] sm:$0x1]
      %v735 = vperm.slane %v733, 0
      %v737 = vadd.f32 %v717, %v735
      %v738 = vadd.f32 %v718, %v735
      %v739 = vadd.f32 %v719, %v735
      %v740 = vadd.f32 %v720, %v735
      %v741 = vadd.f32 %v721, %v735
      %v742 = vadd.f32 %v722, %v735
      %v743 = vadd.f32 %v723, %v735
      %v744 = vadd.f32 %v724, %v735
      %v745 = vadd.f32 %v725, %v735
      %v746 = vadd.f32 %v726, %v735
      %v747 = vadd.f32 %v727, %v735
      %v748 = vadd.f32 %v728, %v735
      %v749 = vadd.f32 %v729, %v735
      %v750 = vadd.f32 %v730, %v735
      %v751 = vadd.f32 %v731, %v735
      %v752 = vadd.f32 %v732, %v735
      %753 = vst [vmem:[%s276] sm:$0xff] %v737
      %754 = vst [vmem:[%s276 + $0x8] sm:$0xff] %v738
      %755 = vst [vmem:[%s276 + $0x10] sm:$0xff] %v739
      %756 = vst [vmem:[%s276 + $0x18] sm:$0xff] %v740
      %757 = vst [vmem:[%s276 + $0x20] sm:$0xff] %v741
      %758 = vst [vmem:[%s276 + $0x28] sm:$0xff] %v742
      %759 = vst [vmem:[%s276 + $0x30] sm:$0xff] %v743
      %760 = vst [vmem:[%s276 + $0x38] sm:$0xff] %v744
      %761 = vst [vmem:[%s276 + $0x40] sm:$0xff] %v745
      %762 = vst [vmem:[%s276 + $0x48] sm:$0xff] %v746
      %763 = vst [vmem:[%s276 + $0x50] sm:$0xff] %v747
      %764 = vst [vmem:[%s276 + $0x58] sm:$0xff] %v748
      %765 = vst [vmem:[%s276 + $0x60] sm:$0xff] %v749
      %766 = vst [vmem:[%s276 + $0x68] sm:$0xff] %v750
      %767 = vst [vmem:[%s276 + $0x70] sm:$0xff] %v751
      %768 = vst [vmem:[%s276 + $0x78] sm:$0xff] %v752
      %p769 = scmp.lt.s32.totalorder %s19, 3
      %s770 = scalar_select %p769, %s19, 3
      %p771 = scmp.lt.s32.totalorder %s20, 0
      %s772 = scalar_select %p771, %s20, 0
      %s773 = smul.addr %s770, 16
      %s774 = sadd.s32 %s772, %s773
      %s775 = smul.addr %s774, 8
      %s776 = scalar_lea.vmem %s4, %s775
      // Predicated region
      $region37: #{generator32_forward.8} parent=35 // pred_check
        %p777 = pneg %p153
      $region38: #{generator32_forward.8} parent=35 // pred_check_branch
        %779 = sbr.rel (%p777) target = $region40
      $region39: #{generator32_forward.8} parent=35 // pred_region
        _
      $region40: #{generator32_forward.8} parent=35 // pred_fallthru
        _
    $region36: #{generator32_forward.8} parent=5 // pred_fallthru
      _
    %p780 = scmp.le.s32.totalorder 2, %s10
    // Predicated region
    $region41: #{generator32_forward.8} parent=5 // pred_check
      %p781 = pneg %p780
    $region42: #{generator32_forward.8} parent=5 // pred_check_branch
      %783 = sbr.rel (%p781) target = $region44
    $region43: #{generator32_forward.8} parent=5 // pred_region
      %s784 = ssub.s32 %s10, 2
      // Predicated region
      $region45: #{generator32_forward.8} parent=43 // pred_check
        %p785 = pneg %p159
      $region46: #{generator32_forward.8} parent=43 // pred_check_branch
        %787 = sbr.rel (%p785) target = $region48
      $region47: #{generator32_forward.8} parent=43 // pred_region
        %p788 = scmp.lt.s32.totalorder %s21, 3
        %s789 = scalar_select %p788, %s21, 3
        %p790 = scmp.lt.s32.totalorder %s22, 0
        %s791 = scalar_select %p790, %s22, 0
        %s792 = smul.addr %s789, 16
        %s793 = sadd.s32 %s791, %s792
        %s794 = smul.addr %s793, 8
        %s795 = scalar_lea.vmem %s4, %s794
      $region48: #{generator32_forward.8} parent=43 // pred_fallthru
        _
    $region44: #{generator32_forward.8} parent=5 // pred_fallthru
      _
  $region6: #{generator32_forward.8} parent=0 // loop_footer
    %s14 = sadd.s32 1, %s10
  $region7: #{generator32_forward.8} parent=0 // loop_footer_branch
    %9 = sbr.rel target = $region3
  $region8: #{generator32_forward.8} parent=0 // loop_exit
    _

// kernel: generator32_forward.9
$region0: #{generator32_forward.9}
  #allocation0 [shape = 'u32[]', space=smem, size = 0x4, offset = 0x4, fixed_abs, tag = 'smem constant byte address 0x4 - core index']
  #allocation1 [shape = 'u32[72,128]{1,0:T(1,128)}', space=vmem, size = 0x9000, scoped, tag = 'internal scratch']
  %s0 = inlined_call_operand.vmem [shape: f32[4,512,512], index: 0, kind: input, shape index: {}]
  %s1 = inlined_call_operand.vmem [shape: f32[4,512,128], index: 1, kind: input, shape index: {}]
  %s2 = inlined_call_operand.vmem [shape: f32[1,128], index: 2, kind: input, shape index: {}]
  %s3 = inlined_call_operand.vmem [shape: f32[4,512,128], index: 3, kind: output, shape index: {}]
  %s4 = sld [smem:[#allocation0]]
  $region45: #{generator32_forward.9} parent=0
    _
  %s6 = ssub.s32 1, %s4
  %s7 = scalar_select 0, %s6, %s4
  loop: start=0, step=1, limit=6
  $region2: #{generator32_forward.9} parent=0 // loop_pre_header
    _
  $region3: #{generator32_forward.9} parent=0 // loop_header
    %s9 = sphi 0, %s13
    %p10 = scmp.ge.s32.totalorder %s9, 6
    %s16 = sphi 0, %s28
    %s17 = sphi 0, %s24
    %s18 = sphi 0, %s16
    %s19 = sphi 0, %s17
    %s20 = sphi 0, %s18
    %s21 = sphi 0, %s19
    %s31 = sphi 0, %s33
    %s34 = sphi 0, %s31
    %s35 = sphi 0, %s34
    %s51 = sphi 0, %s35
    %s59 = sphi 0, %s61
    %s62 = sphi 0, %s59
    %s63 = sphi 0, %s62
    %s79 = sphi 0, %s63
    %s85 = sphi 0, %s87
    %s88 = sphi 0, %s85
    %s89 = sphi 0, %s88
    %s105 = sphi 0, %s89
    %s113 = sphi 0, %s115
    %s116 = sphi 0, %s113
    %s117 = sphi 0, %s116
    %s133 = sphi 0, %s117
  $region4: #{generator32_forward.9} parent=0 // loop_header_branch
    %12 = sbr.rel (%p10) target = $region8
  $region5: #{generator32_forward.9} parent=0 // loop_body
    %s14 = ssub.s32 %s9, 1
    %s15 = ssub.s32 %s9, 2
    %s22 = sadd.s32 1, %s17
    %p23 = scmp.ge.s32.totalorder %s22, 1
    %s24 = scalar_select %p23, 0, %s22
    %s25 = sadd.s32 1, %s16
    %s26 = scalar_select %p23, %s25, %s16
    %p27 = scmp.ge.s32.totalorder %s26, 4
    %s28 = scalar_select %p27, 0, %s26
    %s29 = ssub.s32 %s16, %s28
    %p30 = scmp.eq.s32.totalorder %s29, 0
    %s32 = sadd.s32 %s31, 1
    %s33 = scalar_select %p30, %s31, %s32
    %p36 = pneg %p30
    %p37 = scmp.eq.s32.totalorder %s9, 3
    %p38 = por %p36, %p37
    %p39 = scmp.ne.s32.totalorder %s31, %s34
    %p40 = scmp.eq.s32.totalorder %s9, 0
    %p41 = por %p39, %p40
    %p42 = scmp.ne.s32.totalorder %s31, %s34
    %p43 = scmp.eq.s32.totalorder %s14, 3
    %p44 = por %p42, %p43
    %p45 = scmp.ne.s32.totalorder %s34, %s35
    %p46 = scmp.eq.s32.totalorder %s14, 0
    %p47 = por %p45, %p46
    %p48 = scmp.ne.s32.totalorder %s34, %s35
    %p49 = scmp.eq.s32.totalorder %s15, 3
    %p50 = por %p48, %p49
    %p52 = scmp.ne.s32.totalorder %s35, %s51
    %p53 = scmp.eq.s32.totalorder %s15, 0
    %p54 = por %p52, %p53
    %s55 = ssub.s32 %s16, %s28
    %s56 = ssub.s32 %s17, %s24
    %s57 = sor.u32 %s55, %s56
    %p58 = scmp.eq.s32.totalorder %s57, 0
    %s60 = sadd.s32 %s59, 1
    %s61 = scalar_select %p58, %s59, %s60
    %p64 = pneg %p58
    %p65 = scmp.eq.s32.totalorder %s9, 3
    %p66 = por %p64, %p65
    %p67 = scmp.ne.s32.totalorder %s59, %s62
    %p68 = scmp.eq.s32.totalorder %s9, 0
    %p69 = por %p67, %p68
    %p70 = scmp.ne.s32.totalorder %s59, %s62
    %p71 = scmp.eq.s32.totalorder %s14, 3
    %p72 = por %p70, %p71
    %p73 = scmp.ne.s32.totalorder %s62, %s63
    %p74 = scmp.eq.s32.totalorder %s14, 0
    %p75 = por %p73, %p74
    %p76 = scmp.ne.s32.totalorder %s62, %s63
    %p77 = scmp.eq.s32.totalorder %s15, 3
    %p78 = por %p76, %p77
    %p80 = scmp.ne.s32.totalorder %s63, %s79
    %p81 = scmp.eq.s32.totalorder %s15, 0
    %p82 = por %p80, %p81
    %s83 = ssub.s32 %s17, %s24
    %p84 = scmp.eq.s32.totalorder %s83, 0
    %s86 = sadd.s32 %s85, 1
    %s87 = scalar_select %p84, %s85, %s86
    %p90 = pneg %p84
    %p91 = scmp.eq.s32.totalorder %s9, 3
    %p92 = por %p90, %p91
    %p93 = scmp.ne.s32.totalorder %s85, %s88
    %p94 = scmp.eq.s32.totalorder %s9, 0
    %p95 = por %p93, %p94
    %p96 = scmp.ne.s32.totalorder %s85, %s88
    %p97 = scmp.eq.s32.totalorder %s14, 3
    %p98 = por %p96, %p97
    %p99 = scmp.ne.s32.totalorder %s88, %s89
    %p100 = scmp.eq.s32.totalorder %s14, 0
    %p101 = por %p99, %p100
    %p102 = scmp.ne.s32.totalorder %s88, %s89
    %p103 = scmp.eq.s32.totalorder %s15, 3
    %p104 = por %p102, %p103
    %p106 = scmp.ne.s32.totalorder %s89, %s105
    %p107 = scmp.eq.s32.totalorder %s15, 0
    %p108 = por %p106, %p107
    %s109 = ssub.s32 %s16, %s28
    %s110 = ssub.s32 %s17, %s24
    %s111 = sor.u32 %s109, %s110
    %p112 = scmp.eq.s32.totalorder %s111, 0
    %s114 = sadd.s32 %s113, 1
    %s115 = scalar_select %p112, %s113, %s114
    %p118 = pneg %p112
    %p119 = scmp.eq.s32.totalorder %s9, 3
    %p120 = por %p118, %p119
    %p121 = scmp.ne.s32.totalorder %s113, %s116
    %p122 = scmp.eq.s32.totalorder %s9, 0
    %p123 = por %p121, %p122
    %p124 = scmp.ne.s32.totalorder %s113, %s116
    %p125 = scmp.eq.s32.totalorder %s14, 3
    %p126 = por %p124, %p125
    %p127 = scmp.ne.s32.totalorder %s116, %s117
    %p128 = scmp.eq.s32.totalorder %s14, 0
    %p129 = por %p127, %p128
    %p130 = scmp.ne.s32.totalorder %s116, %s117
    %p131 = scmp.eq.s32.totalorder %s15, 3
    %p132 = por %p130, %p131
    %p134 = scmp.ne.s32.totalorder %s117, %s133
    %p135 = scmp.eq.s32.totalorder %s15, 0
    %p136 = por %p134, %p135
    %p137 = scmp.le.s32.totalorder 1, %s9
    %p138 = scmp.lt.s32.totalorder %s9, 5
    %p139 = pnand %p137, %p138
    %p140 = pneg %p139
    // Predicated region
    $region9: #{generator32_forward.9} parent=5 // pred_check
      _
    $region10: #{generator32_forward.9} parent=5 // pred_check_branch
      %142 = sbr.rel (%p139) target = $region12
    $region11: #{generator32_forward.9} parent=5 // pred_region
      %s143 = ssub.s32 %s9, 1
      // Predicated region
      $region13: #{generator32_forward.9} parent=11 // pred_check
        %p144 = pneg %p101
      $region14: #{generator32_forward.9} parent=11 // pred_check_branch
        %146 = sbr.rel (%p144) target = $region16
      $region15: #{generator32_forward.9} parent=11 // pred_region
        %p147 = scmp.lt.s32.totalorder %s19, 0
        %s148 = scalar_select %p147, %s19, 0
        %s149 = scalar_lea.vmem %s2, %s148
      $region16: #{generator32_forward.9} parent=11 // pred_fallthru
        _
    $region12: #{generator32_forward.9} parent=5 // pred_fallthru
      _
    %p150 = scmp.lt.s32.totalorder %s9, 4
    // Predicated region
    $region17: #{generator32_forward.9} parent=5 // pred_check
      %p151 = pneg %p150
    $region18: #{generator32_forward.9} parent=5 // pred_check_branch
      %153 = sbr.rel (%p151) target = $region20
    $region19: #{generator32_forward.9} parent=5 // pred_region
      // Predicated region
      $region21: #{generator32_forward.9} parent=19 // pred_check
        %p154 = pneg %p41
      $region22: #{generator32_forward.9} parent=19 // pred_check_branch
        %156 = sbr.rel (%p154) target = $region24
      $region23: #{generator32_forward.9} parent=19 // pred_region
        %p157 = scmp.lt.s32.totalorder %s16, 3
        %s158 = scalar_select %p157, %s16, 3
        %s159 = smul.addr %s158, 256
        %s160 = smul.addr %s159, 8
        %s161 = scalar_lea.vmem %s0, %s160
      $region24: #{generator32_forward.9} parent=19 // pred_fallthru
        _
      // Predicated region
      $region25: #{generator32_forward.9} parent=19 // pred_check
        %p162 = pneg %p69
      $region26: #{generator32_forward.9} parent=19 // pred_check_branch
        %164 = sbr.rel (%p162) target = $region28
      $region27: #{generator32_forward.9} parent=19 // pred_region
        %p165 = scmp.lt.s32.totalorder %s16, 3
        %s166 = scalar_select %p165, %s16, 3
        %p167 = scmp.lt.s32.totalorder %s17, 0
        %s168 = scalar_select %p167, %s17, 0
        %s169 = smul.addr %s166, 64
        %s170 = sadd.s32 %s168, %s169
        %s171 = smul.addr %s170, 8
        %s172 = scalar_lea.vmem %s1, %s171
      $region28: #{generator32_forward.9} parent=19 // pred_fallthru
        _
    $region20: #{generator32_forward.9} parent=5 // pred_fallthru
      _
    %p173 = scmp.le.s32.totalorder 1, %s9
    %p174 = scmp.lt.s32.totalorder %s9, 5
    %p175 = pnand %p173, %p174
    %p176 = pneg %p175
    // Predicated region
    $region29: #{generator32_forward.9} parent=5 // pred_check
      _
    $region30: #{generator32_forward.9} parent=5 // pred_check_branch
      %178 = sbr.rel (%p175) target = $region32
    $region31: #{generator32_forward.9} parent=5 // pred_region
      %s179 = ssub.s32 %s9, 1
      %p180 = scmp.lt.s32.totalorder %s18, 3
      %s181 = scalar_select %p180, %s18, 3
      %s182 = smul.addr %s181, 256
      %s183 = smul.addr %s182, 8
      %s184 = scalar_lea.vmem %s0, %s183
      %p185 = pneg %p47
      %p186 = pneg %p44
      %p187 = scmp.lt.s32.totalorder %s18, 3
      %s188 = scalar_select %p187, %s18, 3
      %p189 = scmp.lt.s32.totalorder %s19, 0
      %s190 = scalar_select %p189, %s19, 0
      %s191 = smul.addr %s188, 64
      %s192 = sadd.s32 %s190, %s191
      %s193 = smul.addr %s192, 8
      %s194 = scalar_lea.vmem %s1, %s193
      %p195 = pneg %p75
      %p196 = pneg %p72
      %p197 = scmp.lt.s32.totalorder %s19, 0
      %s198 = scalar_select %p197, %s19, 0
      %s199 = scalar_lea.vmem %s2, %s198
      %p200 = pneg %p101
      %p201 = pneg %p98
      %p202 = pneg %p129
      %p203 = pneg %p126
      %p204 = scmp.lt.s32.totalorder %s18, 3
      %s205 = scalar_select %p204, %s18, 3
      %p206 = scmp.lt.s32.totalorder %s19, 0
      %s207 = scalar_select %p206, %s19, 0
      %s208 = smul.addr %s205, 64
      %s209 = sadd.s32 %s207, %s208
      %s210 = smul.addr %s209, 8
      %s211 = scalar_lea.vmem %s3, %s210
      %p212 = scmp.lt.s32.totalorder %s18, 3
      %s213 = scalar_select %p212, %s18, 3
      %s214 = smul.addr %s213, 256
      %s215 = smul.addr %s214, 8
      %s216 = scalar_lea.vmem %s0, %s215
      %p217 = scmp.lt.s32.totalorder %s18, 3
      %s218 = scalar_select %p217, %s18, 3
      %p219 = scmp.lt.s32.totalorder %s19, 0
      %s220 = scalar_select %p219, %s19, 0
      %s221 = smul.addr %s218, 64
      %s222 = sadd.s32 %s220, %s221
      %s223 = smul.addr %s222, 8
      %s224 = scalar_lea.vmem %s1, %s223
      %p225 = scmp.lt.s32.totalorder %s19, 0
      %s226 = scalar_select %p225, %s19, 0
      %s227 = scalar_lea.vmem %s2, %s226
      %p228 = scmp.lt.s32.totalorder %s18, 3
      %s229 = scalar_select %p228, %s18, 3
      %p230 = scmp.lt.s32.totalorder %s19, 0
      %s231 = scalar_select %p230, %s19, 0
      %s232 = smul.addr %s229, 64
      %s233 = sadd.s32 %s231, %s232
      %s234 = smul.addr %s233, 8
      %s235 = scalar_lea.vmem %s3, %s234
      %v236 = vld [vmem:[%s216] sm:$0xff]
      %v237 = vld [vmem:[%s216 + $0x8] sm:$0xff]
      %v238 = vld [vmem:[%s216 + $0x10] sm:$0xff]
      %v239 = vld [vmem:[%s216 + $0x18] sm:$0xff]
      %v240 = vld [vmem:[%s216 + $0x20] sm:$0xff]
      %v241 = vld [vmem:[%s216 + $0x28] sm:$0xff]
      %v242 = vld [vmem:[%s216 + $0x30] sm:$0xff]
      %v243 = vld [vmem:[%s216 + $0x38] sm:$0xff]
      %v244 = vld [vmem:[%s216 + $0x40] sm:$0xff]
      %v245 = vld [vmem:[%s216 + $0x48] sm:$0xff]
      %v246 = vld [vmem:[%s216 + $0x50] sm:$0xff]
      %v247 = vld [vmem:[%s216 + $0x58] sm:$0xff]
      %v248 = vld [vmem:[%s216 + $0x60] sm:$0xff]
      %v249 = vld [vmem:[%s216 + $0x68] sm:$0xff]
      %v250 = vld [vmem:[%s216 + $0x70] sm:$0xff]
      %v251 = vld [vmem:[%s216 + $0x78] sm:$0xff]
      %v252 = vld [vmem:[%s216 + $0x80] sm:$0xff]
      %v253 = vld [vmem:[%s216 + $0x88] sm:$0xff]
      %v254 = vld [vmem:[%s216 + $0x90] sm:$0xff]
      %v255 = vld [vmem:[%s216 + $0x98] sm:$0xff]
      %v256 = vld [vmem:[%s216 + $0xa0] sm:$0xff]
      %v257 = vld [vmem:[%s216 + $0xa8] sm:$0xff]
      %v258 = vld [vmem:[%s216 + $0xb0] sm:$0xff]
      %v259 = vld [vmem:[%s216 + $0xb8] sm:$0xff]
      %v260 = vld [vmem:[%s216 + $0xc0] sm:$0xff]
      %v261 = vld [vmem:[%s216 + $0xc8] sm:$0xff]
      %v262 = vld [vmem:[%s216 + $0xd0] sm:$0xff]
      %v263 = vld [vmem:[%s216 + $0xd8] sm:$0xff]
      %v264 = vld [vmem:[%s216 + $0xe0] sm:$0xff]
      %v265 = vld [vmem:[%s216 + $0xe8] sm:$0xff]
      %v266 = vld [vmem:[%s216 + $0xf0] sm:$0xff]
      %v267 = vld [vmem:[%s216 + $0xf8] sm:$0xff]
      %v268 = vld [vmem:[%s216 + $0x100] sm:$0xff]
      %v269 = vld [vmem:[%s216 + $0x108] sm:$0xff]
      %v270 = vld [vmem:[%s216 + $0x110] sm:$0xff]
      %v271 = vld [vmem:[%s216 + $0x118] sm:$0xff]
      %v272 = vld [vmem:[%s216 + $0x120] sm:$0xff]
      %v273 = vld [vmem:[%s216 + $0x128] sm:$0xff]
      %v274 = vld [vmem:[%s216 + $0x130] sm:$0xff]
      %v275 = vld [vmem:[%s216 + $0x138] sm:$0xff]
      %v276 = vld [vmem:[%s216 + $0x140] sm:$0xff]
      %v277 = vld [vmem:[%s216 + $0x148] sm:$0xff]
      %v278 = vld [vmem:[%s216 + $0x150] sm:$0xff]
      %v279 = vld [vmem:[%s216 + $0x158] sm:$0xff]
      %v280 = vld [vmem:[%s216 + $0x160] sm:$0xff]
      %v281 = vld [vmem:[%s216 + $0x168] sm:$0xff]
      %v282 = vld [vmem:[%s216 + $0x170] sm:$0xff]
      %v283 = vld [vmem:[%s216 + $0x178] sm:$0xff]
      %v284 = vld [vmem:[%s216 + $0x180] sm:$0xff]
      %v285 = vld [vmem:[%s216 + $0x188] sm:$0xff]
      %v286 = vld [vmem:[%s216 + $0x190] sm:$0xff]
      %v287 = vld [vmem:[%s216 + $0x198] sm:$0xff]
      %v288 = vld [vmem:[%s216 + $0x1a0] sm:$0xff]
      %v289 = vld [vmem:[%s216 + $0x1a8] sm:$0xff]
      %v290 = vld [vmem:[%s216 + $0x1b0] sm:$0xff]
      %v291 = vld [vmem:[%s216 + $0x1b8] sm:$0xff]
      %v292 = vld [vmem:[%s216 + $0x1c0] sm:$0xff]
      %v293 = vld [vmem:[%s216 + $0x1c8] sm:$0xff]
      %v294 = vld [vmem:[%s216 + $0x1d0] sm:$0xff]
      %v295 = vld [vmem:[%s216 + $0x1d8] sm:$0xff]
      %v296 = vld [vmem:[%s216 + $0x1e0] sm:$0xff]
      %v297 = vld [vmem:[%s216 + $0x1e8] sm:$0xff]
      %v298 = vld [vmem:[%s216 + $0x1f0] sm:$0xff]
      %v299 = vld [vmem:[%s216 + $0x1f8] sm:$0xff]
      %v300 = vld [vmem:[%s216 + $0x200] sm:$0xff]
      %v301 = vld [vmem:[%s216 + $0x208] sm:$0xff]
      %v302 = vld [vmem:[%s216 + $0x210] sm:$0xff]
      %v303 = vld [vmem:[%s216 + $0x218] sm:$0xff]
      %v304 = vld [vmem:[%s216 + $0x220] sm:$0xff]
      %v305 = vld [vmem:[%s216 + $0x228] sm:$0xff]
      %v306 = vld [vmem:[%s216 + $0x230] sm:$0xff]
      %v307 = vld [vmem:[%s216 + $0x238] sm:$0xff]
      %v308 = vld [vmem:[%s216 + $0x240] sm:$0xff]
      %v309 = vld [vmem:[%s216 + $0x248] sm:$0xff]
      %v310 = vld [vmem:[%s216 + $0x250] sm:$0xff]
      %v311 = vld [vmem:[%s216 + $0x258] sm:$0xff]
      %v312 = vld [vmem:[%s216 + $0x260] sm:$0xff]
      %v313 = vld [vmem:[%s216 + $0x268] sm:$0xff]
      %v314 = vld [vmem:[%s216 + $0x270] sm:$0xff]
      %v315 = vld [vmem:[%s216 + $0x278] sm:$0xff]
      %v316 = vld [vmem:[%s216 + $0x280] sm:$0xff]
      %v317 = vld [vmem:[%s216 + $0x288] sm:$0xff]
      %v318 = vld [vmem:[%s216 + $0x290] sm:$0xff]
      %v319 = vld [vmem:[%s216 + $0x298] sm:$0xff]
      %v320 = vld [vmem:[%s216 + $0x2a0] sm:$0xff]
      %v321 = vld [vmem:[%s216 + $0x2a8] sm:$0xff]
      %v322 = vld [vmem:[%s216 + $0x2b0] sm:$0xff]
      %v323 = vld [vmem:[%s216 + $0x2b8] sm:$0xff]
      %v324 = vld [vmem:[%s216 + $0x2c0] sm:$0xff]
      %v325 = vld [vmem:[%s216 + $0x2c8] sm:$0xff]
      %v326 = vld [vmem:[%s216 + $0x2d0] sm:$0xff]
      %v327 = vld [vmem:[%s216 + $0x2d8] sm:$0xff]
      %v328 = vld [vmem:[%s216 + $0x2e0] sm:$0xff]
      %v329 = vld [vmem:[%s216 + $0x2e8] sm:$0xff]
      %v330 = vld [vmem:[%s216 + $0x2f0] sm:$0xff]
      %v331 = vld [vmem:[%s216 + $0x2f8] sm:$0xff]
      %v332 = vld [vmem:[%s216 + $0x300] sm:$0xff]
      %v333 = vld [vmem:[%s216 + $0x308] sm:$0xff]
      %v334 = vld [vmem:[%s216 + $0x310] sm:$0xff]
      %v335 = vld [vmem:[%s216 + $0x318] sm:$0xff]
      %v336 = vld [vmem:[%s216 + $0x320] sm:$0xff]
      %v337 = vld [vmem:[%s216 + $0x328] sm:$0xff]
      %v338 = vld [vmem:[%s216 + $0x330] sm:$0xff]
      %v339 = vld [vmem:[%s216 + $0x338] sm:$0xff]
      %v340 = vld [vmem:[%s216 + $0x340] sm:$0xff]
      %v341 = vld [vmem:[%s216 + $0x348] sm:$0xff]
      %v342 = vld [vmem:[%s216 + $0x350] sm:$0xff]
      %v343 = vld [vmem:[%s216 + $0x358] sm:$0xff]
      %v344 = vld [vmem:[%s216 + $0x360] sm:$0xff]
      %v345 = vld [vmem:[%s216 + $0x368] sm:$0xff]
      %v346 = vld [vmem:[%s216 + $0x370] sm:$0xff]
      %v347 = vld [vmem:[%s216 + $0x378] sm:$0xff]
      %v348 = vld [vmem:[%s216 + $0x380] sm:$0xff]
      %v349 = vld [vmem:[%s216 + $0x388] sm:$0xff]
      %v350 = vld [vmem:[%s216 + $0x390] sm:$0xff]
      %v351 = vld [vmem:[%s216 + $0x398] sm:$0xff]
      %v352 = vld [vmem:[%s216 + $0x3a0] sm:$0xff]
      %v353 = vld [vmem:[%s216 + $0x3a8] sm:$0xff]
      %v354 = vld [vmem:[%s216 + $0x3b0] sm:$0xff]
      %v355 = vld [vmem:[%s216 + $0x3b8] sm:$0xff]
      %v356 = vld [vmem:[%s216 + $0x3c0] sm:$0xff]
      %v357 = vld [vmem:[%s216 + $0x3c8] sm:$0xff]
      %v358 = vld [vmem:[%s216 + $0x3d0] sm:$0xff]
      %v359 = vld [vmem:[%s216 + $0x3d8] sm:$0xff]
      %v360 = vld [vmem:[%s216 + $0x3e0] sm:$0xff]
      %v361 = vld [vmem:[%s216 + $0x3e8] sm:$0xff]
      %v362 = vld [vmem:[%s216 + $0x3f0] sm:$0xff]
      %v363 = vld [vmem:[%s216 + $0x3f8] sm:$0xff]
      %v364 = vld [vmem:[%s216 + $0x400] sm:$0xff]
      %v365 = vld [vmem:[%s216 + $0x408] sm:$0xff]
      %v366 = vld [vmem:[%s216 + $0x410] sm:$0xff]
      %v367 = vld [vmem:[%s216 + $0x418] sm:$0xff]
      %v368 = vld [vmem:[%s216 + $0x420] sm:$0xff]
      %v369 = vld [vmem:[%s216 + $0x428] sm:$0xff]
      %v370 = vld [vmem:[%s216 + $0x430] sm:$0xff]
      %v371 = vld [vmem:[%s216 + $0x438] sm:$0xff]
      %v372 = vld [vmem:[%s216 + $0x440] sm:$0xff]
      %v373 = vld [vmem:[%s216 + $0x448] sm:$0xff]
      %v374 = vld [vmem:[%s216 + $0x450] sm:$0xff]
      %v375 = vld [vmem:[%s216 + $0x458] sm:$0xff]
      %v376 = vld [vmem:[%s216 + $0x460] sm:$0xff]
      %v377 = vld [vmem:[%s216 + $0x468] sm:$0xff]
      %v378 = vld [vmem:[%s216 + $0x470] sm:$0xff]
      %v379 = vld [vmem:[%s216 + $0x478] sm:$0xff]
      %v380 = vld [vmem:[%s216 + $0x480] sm:$0xff]
      %v381 = vld [vmem:[%s216 + $0x488] sm:$0xff]
      %v382 = vld [vmem:[%s216 + $0x490] sm:$0xff]
      %v383 = vld [vmem:[%s216 + $0x498] sm:$0xff]
      %v384 = vld [vmem:[%s216 + $0x4a0] sm:$0xff]
      %v385 = vld [vmem:[%s216 + $0x4a8] sm:$0xff]
      %v386 = vld [vmem:[%s216 + $0x4b0] sm:$0xff]
      %v387 = vld [vmem:[%s216 + $0x4b8] sm:$0xff]
      %v388 = vld [vmem:[%s216 + $0x4c0] sm:$0xff]
      %v389 = vld [vmem:[%s216 + $0x4c8] sm:$0xff]
      %v390 = vld [vmem:[%s216 + $0x4d0] sm:$0xff]
      %v391 = vld [vmem:[%s216 + $0x4d8] sm:$0xff]
      %v392 = vld [vmem:[%s216 + $0x4e0] sm:$0xff]
      %v393 = vld [vmem:[%s216 + $0x4e8] sm:$0xff]
      %v394 = vld [vmem:[%s216 + $0x4f0] sm:$0xff]
      %v395 = vld [vmem:[%s216 + $0x4f8] sm:$0xff]
      %v396 = vld [vmem:[%s216 + $0x500] sm:$0xff]
      %v397 = vld [vmem:[%s216 + $0x508] sm:$0xff]
      %v398 = vld [vmem:[%s216 + $0x510] sm:$0xff]
      %v399 = vld [vmem:[%s216 + $0x518] sm:$0xff]
      %v400 = vld [vmem:[%s216 + $0x520] sm:$0xff]
      %v401 = vld [vmem:[%s216 + $0x528] sm:$0xff]
      %v402 = vld [vmem:[%s216 + $0x530] sm:$0xff]
      %v403 = vld [vmem:[%s216 + $0x538] sm:$0xff]
      %v404 = vld [vmem:[%s216 + $0x540] sm:$0xff]
      %v405 = vld [vmem:[%s216 + $0x548] sm:$0xff]
      %v406 = vld [vmem:[%s216 + $0x550] sm:$0xff]
      %v407 = vld [vmem:[%s216 + $0x558] sm:$0xff]
      %v408 = vld [vmem:[%s216 + $0x560] sm:$0xff]
      %v409 = vld [vmem:[%s216 + $0x568] sm:$0xff]
      %v410 = vld [vmem:[%s216 + $0x570] sm:$0xff]
      %v411 = vld [vmem:[%s216 + $0x578] sm:$0xff]
      %v412 = vld [vmem:[%s216 + $0x580] sm:$0xff]
      %v413 = vld [vmem:[%s216 + $0x588] sm:$0xff]
      %v414 = vld [vmem:[%s216 + $0x590] sm:$0xff]
      %v415 = vld [vmem:[%s216 + $0x598] sm:$0xff]
      %v416 = vld [vmem:[%s216 + $0x5a0] sm:$0xff]
      %v417 = vld [vmem:[%s216 + $0x5a8] sm:$0xff]
      %v418 = vld [vmem:[%s216 + $0x5b0] sm:$0xff]
      %v419 = vld [vmem:[%s216 + $0x5b8] sm:$0xff]
      %v420 = vld [vmem:[%s216 + $0x5c0] sm:$0xff]
      %v421 = vld [vmem:[%s216 + $0x5c8] sm:$0xff]
      %v422 = vld [vmem:[%s216 + $0x5d0] sm:$0xff]
      %v423 = vld [vmem:[%s216 + $0x5d8] sm:$0xff]
      %v424 = vld [vmem:[%s216 + $0x5e0] sm:$0xff]
      %v425 = vld [vmem:[%s216 + $0x5e8] sm:$0xff]
      %v426 = vld [vmem:[%s216 + $0x5f0] sm:$0xff]
      %v427 = vld [vmem:[%s216 + $0x5f8] sm:$0xff]
      %v428 = vld [vmem:[%s216 + $0x600] sm:$0xff]
      %v429 = vld [vmem:[%s216 + $0x608] sm:$0xff]
      %v430 = vld [vmem:[%s216 + $0x610] sm:$0xff]
      %v431 = vld [vmem:[%s216 + $0x618] sm:$0xff]
      %v432 = vld [vmem:[%s216 + $0x620] sm:$0xff]
      %v433 = vld [vmem:[%s216 + $0x628] sm:$0xff]
      %v434 = vld [vmem:[%s216 + $0x630] sm:$0xff]
      %v435 = vld [vmem:[%s216 + $0x638] sm:$0xff]
      %v436 = vld [vmem:[%s216 + $0x640] sm:$0xff]
      %v437 = vld [vmem:[%s216 + $0x648] sm:$0xff]
      %v438 = vld [vmem:[%s216 + $0x650] sm:$0xff]
      %v439 = vld [vmem:[%s216 + $0x658] sm:$0xff]
      %v440 = vld [vmem:[%s216 + $0x660] sm:$0xff]
      %v441 = vld [vmem:[%s216 + $0x668] sm:$0xff]
      %v442 = vld [vmem:[%s216 + $0x670] sm:$0xff]
      %v443 = vld [vmem:[%s216 + $0x678] sm:$0xff]
      %v444 = vld [vmem:[%s216 + $0x680] sm:$0xff]
      %v445 = vld [vmem:[%s216 + $0x688] sm:$0xff]
      %v446 = vld [vmem:[%s216 + $0x690] sm:$0xff]
      %v447 = vld [vmem:[%s216 + $0x698] sm:$0xff]
      %v448 = vld [vmem:[%s216 + $0x6a0] sm:$0xff]
      %v449 = vld [vmem:[%s216 + $0x6a8] sm:$0xff]
      %v450 = vld [vmem:[%s216 + $0x6b0] sm:$0xff]
      %v451 = vld [vmem:[%s216 + $0x6b8] sm:$0xff]
      %v452 = vld [vmem:[%s216 + $0x6c0] sm:$0xff]
      %v453 = vld [vmem:[%s216 + $0x6c8] sm:$0xff]
      %v454 = vld [vmem:[%s216 + $0x6d0] sm:$0xff]
      %v455 = vld [vmem:[%s216 + $0x6d8] sm:$0xff]
      %v456 = vld [vmem:[%s216 + $0x6e0] sm:$0xff]
      %v457 = vld [vmem:[%s216 + $0x6e8] sm:$0xff]
      %v458 = vld [vmem:[%s216 + $0x6f0] sm:$0xff]
      %v459 = vld [vmem:[%s216 + $0x6f8] sm:$0xff]
      %v460 = vld [vmem:[%s216 + $0x700] sm:$0xff]
      %v461 = vld [vmem:[%s216 + $0x708] sm:$0xff]
      %v462 = vld [vmem:[%s216 + $0x710] sm:$0xff]
      %v463 = vld [vmem:[%s216 + $0x718] sm:$0xff]
      %v464 = vld [vmem:[%s216 + $0x720] sm:$0xff]
      %v465 = vld [vmem:[%s216 + $0x728] sm:$0xff]
      %v466 = vld [vmem:[%s216 + $0x730] sm:$0xff]
      %v467 = vld [vmem:[%s216 + $0x738] sm:$0xff]
      %v468 = vld [vmem:[%s216 + $0x740] sm:$0xff]
      %v469 = vld [vmem:[%s216 + $0x748] sm:$0xff]
      %v470 = vld [vmem:[%s216 + $0x750] sm:$0xff]
      %v471 = vld [vmem:[%s216 + $0x758] sm:$0xff]
      %v472 = vld [vmem:[%s216 + $0x760] sm:$0xff]
      %v473 = vld [vmem:[%s216 + $0x768] sm:$0xff]
      %v474 = vld [vmem:[%s216 + $0x770] sm:$0xff]
      %v475 = vld [vmem:[%s216 + $0x778] sm:$0xff]
      %v476 = vld [vmem:[%s216 + $0x780] sm:$0xff]
      %v477 = vld [vmem:[%s216 + $0x788] sm:$0xff]
      %v478 = vld [vmem:[%s216 + $0x790] sm:$0xff]
      %v479 = vld [vmem:[%s216 + $0x798] sm:$0xff]
      %v480 = vld [vmem:[%s216 + $0x7a0] sm:$0xff]
      %v481 = vld [vmem:[%s216 + $0x7a8] sm:$0xff]
      %v482 = vld [vmem:[%s216 + $0x7b0] sm:$0xff]
      %v483 = vld [vmem:[%s216 + $0x7b8] sm:$0xff]
      %v484 = vld [vmem:[%s216 + $0x7c0] sm:$0xff]
      %v485 = vld [vmem:[%s216 + $0x7c8] sm:$0xff]
      %v486 = vld [vmem:[%s216 + $0x7d0] sm:$0xff]
      %v487 = vld [vmem:[%s216 + $0x7d8] sm:$0xff]
      %v488 = vld [vmem:[%s216 + $0x7e0] sm:$0xff]
      %v489 = vld [vmem:[%s216 + $0x7e8] sm:$0xff]
      %v490 = vld [vmem:[%s216 + $0x7f0] sm:$0xff]
      %v491 = vld [vmem:[%s216 + $0x7f8] sm:$0xff]
      %v492 = vld [vmem:[%s224] sm:$0xff]
      %v493 = vld [vmem:[%s224 + $0x8] sm:$0xff]
      %v494 = vld [vmem:[%s224 + $0x10] sm:$0xff]
      %v495 = vld [vmem:[%s224 + $0x18] sm:$0xff]
      %v496 = vld [vmem:[%s224 + $0x20] sm:$0xff]
      %v497 = vld [vmem:[%s224 + $0x28] sm:$0xff]
      %v498 = vld [vmem:[%s224 + $0x30] sm:$0xff]
      %v499 = vld [vmem:[%s224 + $0x38] sm:$0xff]
      %v500 = vld [vmem:[%s224 + $0x40] sm:$0xff]
      %v501 = vld [vmem:[%s224 + $0x48] sm:$0xff]
      %v502 = vld [vmem:[%s224 + $0x50] sm:$0xff]
      %v503 = vld [vmem:[%s224 + $0x58] sm:$0xff]
      %v504 = vld [vmem:[%s224 + $0x60] sm:$0xff]
      %v505 = vld [vmem:[%s224 + $0x68] sm:$0xff]
      %v506 = vld [vmem:[%s224 + $0x70] sm:$0xff]
      %v507 = vld [vmem:[%s224 + $0x78] sm:$0xff]
      %v508 = vld [vmem:[%s224 + $0x80] sm:$0xff]
      %v509 = vld [vmem:[%s224 + $0x88] sm:$0xff]
      %v510 = vld [vmem:[%s224 + $0x90] sm:$0xff]
      %v511 = vld [vmem:[%s224 + $0x98] sm:$0xff]
      %v512 = vld [vmem:[%s224 + $0xa0] sm:$0xff]
      %v513 = vld [vmem:[%s224 + $0xa8] sm:$0xff]
      %v514 = vld [vmem:[%s224 + $0xb0] sm:$0xff]
      %v515 = vld [vmem:[%s224 + $0xb8] sm:$0xff]
      %v516 = vld [vmem:[%s224 + $0xc0] sm:$0xff]
      %v517 = vld [vmem:[%s224 + $0xc8] sm:$0xff]
      %v518 = vld [vmem:[%s224 + $0xd0] sm:$0xff]
      %v519 = vld [vmem:[%s224 + $0xd8] sm:$0xff]
      %v520 = vld [vmem:[%s224 + $0xe0] sm:$0xff]
      %v521 = vld [vmem:[%s224 + $0xe8] sm:$0xff]
      %v522 = vld [vmem:[%s224 + $0xf0] sm:$0xff]
      %v523 = vld [vmem:[%s224 + $0xf8] sm:$0xff]
      %v524 = vld [vmem:[%s224 + $0x100] sm:$0xff]
      %v525 = vld [vmem:[%s224 + $0x108] sm:$0xff]
      %v526 = vld [vmem:[%s224 + $0x110] sm:$0xff]
      %v527 = vld [vmem:[%s224 + $0x118] sm:$0xff]
      %v528 = vld [vmem:[%s224 + $0x120] sm:$0xff]
      %v529 = vld [vmem:[%s224 + $0x128] sm:$0xff]
      %v530 = vld [vmem:[%s224 + $0x130] sm:$0xff]
      %v531 = vld [vmem:[%s224 + $0x138] sm:$0xff]
      %v532 = vld [vmem:[%s224 + $0x140] sm:$0xff]
      %v533 = vld [vmem:[%s224 + $0x148] sm:$0xff]
      %v534 = vld [vmem:[%s224 + $0x150] sm:$0xff]
      %v535 = vld [vmem:[%s224 + $0x158] sm:$0xff]
      %v536 = vld [vmem:[%s224 + $0x160] sm:$0xff]
      %v537 = vld [vmem:[%s224 + $0x168] sm:$0xff]
      %v538 = vld [vmem:[%s224 + $0x170] sm:$0xff]
      %v539 = vld [vmem:[%s224 + $0x178] sm:$0xff]
      %v540 = vld [vmem:[%s224 + $0x180] sm:$0xff]
      %v541 = vld [vmem:[%s224 + $0x188] sm:$0xff]
      %v542 = vld [vmem:[%s224 + $0x190] sm:$0xff]
      %v543 = vld [vmem:[%s224 + $0x198] sm:$0xff]
      %v544 = vld [vmem:[%s224 + $0x1a0] sm:$0xff]
      %v545 = vld [vmem:[%s224 + $0x1a8] sm:$0xff]
      %v546 = vld [vmem:[%s224 + $0x1b0] sm:$0xff]
      %v547 = vld [vmem:[%s224 + $0x1b8] sm:$0xff]
      %v548 = vld [vmem:[%s224 + $0x1c0] sm:$0xff]
      %v549 = vld [vmem:[%s224 + $0x1c8] sm:$0xff]
      %v550 = vld [vmem:[%s224 + $0x1d0] sm:$0xff]
      %v551 = vld [vmem:[%s224 + $0x1d8] sm:$0xff]
      %v552 = vld [vmem:[%s224 + $0x1e0] sm:$0xff]
      %v553 = vld [vmem:[%s224 + $0x1e8] sm:$0xff]
      %v554 = vld [vmem:[%s224 + $0x1f0] sm:$0xff]
      %v555 = vld [vmem:[%s224 + $0x1f8] sm:$0xff]
      %v556 = vld [vmem:[%s227] sm:$0x1]
      %v558 = vperm.slane %v556, 0
      %560 = vmatpush.msra.mxu0 %v507
      %561 = vmatpush.msra.mxu0 %v506
      %562 = vmatpush.msra.mxu0 %v505
      %563 = vmatpush.msra.mxu0 %v504
      %564 = vmatpush.msra.mxu0 %v503
      %565 = vmatpush.msra.mxu0 %v502
      %566 = vmatpush.msra.mxu0 %v501
      %567 = vmatpush.msra.mxu0 %v500
      %568 = vmatpush.msra.mxu0 %v499
      %569 = vmatpush.msra.mxu0 %v498
      %570 = vmatpush.msra.mxu0 %v497
      %571 = vmatpush.msra.mxu0 %v496
      %572 = vmatpush.msra.mxu0 %v495
      %573 = vmatpush.msra.mxu0 %v494
      %574 = vmatpush.msra.mxu0 %v493
      %575 = vmatpush.msra.mxu0 %v492
      %576 = vmatmul.f32.gmra.mxu0 %v236
      %v577 = vpop.f32.mrf.mxu0
      %v578 = vadd.f32 %v558, %v577
      %579 = vmatmul.f32.gmra.mxu0 %v240
      %v580 = vpop.f32.mrf.mxu0
      %v581 = vadd.f32 %v558, %v580
      %582 = vmatmul.f32.gmra.mxu0 %v244
      %v583 = vpop.f32.mrf.mxu0
      %v584 = vadd.f32 %v558, %v583
      %585 = vmatmul.f32.gmra.mxu0 %v248
      %v586 = vpop.f32.mrf.mxu0
      %v587 = vadd.f32 %v558, %v586
      %588 = vmatmul.f32.gmra.mxu0 %v252
      %v589 = vpop.f32.mrf.mxu0
      %v590 = vadd.f32 %v558, %v589
      %591 = vmatmul.f32.gmra.mxu0 %v256
      %v592 = vpop.f32.mrf.mxu0
      %v593 = vadd.f32 %v558, %v592
      %594 = vmatmul.f32.gmra.mxu0 %v260
      %v595 = vpop.f32.mrf.mxu0
      %v596 = vadd.f32 %v558, %v595
      %597 = vmatmul.f32.gmra.mxu0 %v264
      %v598 = vpop.f32.mrf.mxu0
      %v599 = vadd.f32 %v558, %v598
      %600 = vmatmul.f32.gmra.mxu0 %v268
      %v601 = vpop.f32.mrf.mxu0
      %v602 = vadd.f32 %v558, %v601
      %603 = vmatmul.f32.gmra.mxu0 %v272
      %v604 = vpop.f32.mrf.mxu0
      %v605 = vadd.f32 %v558, %v604
      %606 = vmatmul.f32.gmra.mxu0 %v276
      %v607 = vpop.f32.mrf.mxu0
      %v608 = vadd.f32 %v558, %v607
      %609 = vmatmul.f32.gmra.mxu0 %v280
      %v610 = vpop.f32.mrf.mxu0
      %v611 = vadd.f32 %v558, %v610
      %612 = vmatmul.f32.gmra.mxu0 %v284
      %v613 = vpop.f32.mrf.mxu0
      %v614 = vadd.f32 %v558, %v613
      %615 = vmatmul.f32.gmra.mxu0 %v288
      %v616 = vpop.f32.mrf.mxu0
      %v617 = vadd.f32 %v558, %v616
      %618 = vmatmul.f32.gmra.mxu0 %v292
      %v619 = vpop.f32.mrf.mxu0
      %v620 = vadd.f32 %v558, %v619
      %621 = vmatmul.f32.gmra.mxu0 %v296
      %v622 = vpop.f32.mrf.mxu0
      %v623 = vadd.f32 %v558, %v622
      %624 = vmatmul.f32.gmra.mxu0 %v300
      %v625 = vpop.f32.mrf.mxu0
      %v626 = vadd.f32 %v558, %v625
      %627 = vmatmul.f32.gmra.mxu0 %v304
      %v628 = vpop.f32.mrf.mxu0
      %v629 = vadd.f32 %v558, %v628
      %630 = vmatmul.f32.gmra.mxu0 %v308
      %v631 = vpop.f32.mrf.mxu0
      %v632 = vadd.f32 %v558, %v631
      %633 = vmatmul.f32.gmra.mxu0 %v312
      %v634 = vpop.f32.mrf.mxu0
      %v635 = vadd.f32 %v558, %v634
      %636 = vmatmul.f32.gmra.mxu0 %v316
      %v637 = vpop.f32.mrf.mxu0
      %v638 = vadd.f32 %v558, %v637
      %639 = vmatmul.f32.gmra.mxu0 %v320
      %v640 = vpop.f32.mrf.mxu0
      %v641 = vadd.f32 %v558, %v640
      %642 = vmatmul.f32.gmra.mxu0 %v324
      %v643 = vpop.f32.mrf.mxu0
      %v644 = vadd.f32 %v558, %v643
      %645 = vmatmul.f32.gmra.mxu0 %v328
      %v646 = vpop.f32.mrf.mxu0
      %v647 = vadd.f32 %v558, %v646
      %648 = vmatmul.f32.gmra.mxu0 %v332
      %v649 = vpop.f32.mrf.mxu0
      %v650 = vadd.f32 %v558, %v649
      %651 = vmatmul.f32.gmra.mxu0 %v336
      %v652 = vpop.f32.mrf.mxu0
      %v653 = vadd.f32 %v558, %v652
      %654 = vmatmul.f32.gmra.mxu0 %v340
      %v655 = vpop.f32.mrf.mxu0
      %v656 = vadd.f32 %v558, %v655
      %657 = vmatmul.f32.gmra.mxu0 %v344
      %v658 = vpop.f32.mrf.mxu0
      %v659 = vadd.f32 %v558, %v658
      %660 = vmatmul.f32.gmra.mxu0 %v348
      %v661 = vpop.f32.mrf.mxu0
      %v662 = vadd.f32 %v558, %v661
      %663 = vmatmul.f32.gmra.mxu0 %v352
      %v664 = vpop.f32.mrf.mxu0
      %v665 = vadd.f32 %v558, %v664
      %666 = vmatmul.f32.gmra.mxu0 %v356
      %v667 = vpop.f32.mrf.mxu0
      %v668 = vadd.f32 %v558, %v667
      %669 = vmatmul.f32.gmra.mxu0 %v360
      %v670 = vpop.f32.mrf.mxu0
      %v671 = vadd.f32 %v558, %v670
      %672 = vmatmul.f32.gmra.mxu0 %v364
      %v673 = vpop.f32.mrf.mxu0
      %v674 = vadd.f32 %v558, %v673
      %675 = vmatmul.f32.gmra.mxu0 %v368
      %v676 = vpop.f32.mrf.mxu0
      %v677 = vadd.f32 %v558, %v676
      %678 = vmatmul.f32.gmra.mxu0 %v372
      %v679 = vpop.f32.mrf.mxu0
      %v680 = vadd.f32 %v558, %v679
      %681 = vmatmul.f32.gmra.mxu0 %v376
      %v682 = vpop.f32.mrf.mxu0
      %v683 = vadd.f32 %v558, %v682
      %684 = vmatmul.f32.gmra.mxu0 %v380
      %v685 = vpop.f32.mrf.mxu0
      %v686 = vadd.f32 %v558, %v685
      %687 = vmatmul.f32.gmra.mxu0 %v384
      %v688 = vpop.f32.mrf.mxu0
      %v689 = vadd.f32 %v558, %v688
      %690 = vmatmul.f32.gmra.mxu0 %v388
      %v691 = vpop.f32.mrf.mxu0
      %v692 = vadd.f32 %v558, %v691
      %693 = vmatmul.f32.gmra.mxu0 %v392
      %v694 = vpop.f32.mrf.mxu0
      %v695 = vadd.f32 %v558, %v694
      %696 = vmatmul.f32.gmra.mxu0 %v396
      %v697 = vpop.f32.mrf.mxu0
      %v698 = vadd.f32 %v558, %v697
      %699 = vmatmul.f32.gmra.mxu0 %v400
      %v700 = vpop.f32.mrf.mxu0
      %v701 = vadd.f32 %v558, %v700
      %702 = vmatmul.f32.gmra.mxu0 %v404
      %v703 = vpop.f32.mrf.mxu0
      %v704 = vadd.f32 %v558, %v703
      %705 = vmatmul.f32.gmra.mxu0 %v408
      %v706 = vpop.f32.mrf.mxu0
      %v707 = vadd.f32 %v558, %v706
      %708 = vmatmul.f32.gmra.mxu0 %v412
      %v709 = vpop.f32.mrf.mxu0
      %v710 = vadd.f32 %v558, %v709
      %711 = vmatmul.f32.gmra.mxu0 %v416
      %v712 = vpop.f32.mrf.mxu0
      %v713 = vadd.f32 %v558, %v712
      %714 = vmatmul.f32.gmra.mxu0 %v420
      %v715 = vpop.f32.mrf.mxu0
      %v716 = vadd.f32 %v558, %v715
      %717 = vmatmul.f32.gmra.mxu0 %v424
      %v718 = vpop.f32.mrf.mxu0
      %v719 = vadd.f32 %v558, %v718
      %720 = vmatmul.f32.gmra.mxu0 %v428
      %v721 = vpop.f32.mrf.mxu0
      %v722 = vadd.f32 %v558, %v721
      %723 = vmatmul.f32.gmra.mxu0 %v432
      %v724 = vpop.f32.mrf.mxu0
      %v725 = vadd.f32 %v558, %v724
      %726 = vmatmul.f32.gmra.mxu0 %v436
      %v727 = vpop.f32.mrf.mxu0
      %v728 = vadd.f32 %v558, %v727
      %729 = vmatmul.f32.gmra.mxu0 %v440
      %v730 = vpop.f32.mrf.mxu0
      %v731 = vadd.f32 %v558, %v730
      %732 = vmatmul.f32.gmra.mxu0 %v444
      %v733 = vpop.f32.mrf.mxu0
      %v734 = vadd.f32 %v558, %v733
      %735 = vmatmul.f32.gmra.mxu0 %v448
      %v736 = vpop.f32.mrf.mxu0
      %v737 = vadd.f32 %v558, %v736
      %738 = vmatmul.f32.gmra.mxu0 %v452
      %v739 = vpop.f32.mrf.mxu0
      %v740 = vadd.f32 %v558, %v739
      %741 = vmatmul.f32.gmra.mxu0 %v456
      %v742 = vpop.f32.mrf.mxu0
      %v743 = vadd.f32 %v558, %v742
      %744 = vmatmul.f32.gmra.mxu0 %v460
      %v745 = vpop.f32.mrf.mxu0
      %v746 = vadd.f32 %v558, %v745
      %747 = vmatmul.f32.gmra.mxu0 %v464
      %v748 = vpop.f32.mrf.mxu0
      %v749 = vadd.f32 %v558, %v748
      %750 = vmatmul.f32.gmra.mxu0 %v468
      %v751 = vpop.f32.mrf.mxu0
      %v752 = vadd.f32 %v558, %v751
      %753 = vmatmul.f32.gmra.mxu0 %v472
      %v754 = vpop.f32.mrf.mxu0
      %v755 = vadd.f32 %v558, %v754
      %756 = vmatmul.f32.gmra.mxu0 %v476
      %v757 = vpop.f32.mrf.mxu0
      %v758 = vadd.f32 %v558, %v757
      %759 = vmatmul.f32.gmra.mxu0 %v480
      %v760 = vpop.f32.mrf.mxu0
      %v761 = vadd.f32 %v558, %v760
      %762 = vmatmul.f32.gmra.mxu0 %v484
      %v763 = vpop.f32.mrf.mxu0
      %v764 = vadd.f32 %v558, %v763
      %765 = vmatmul.f32.gmra.mxu0 %v488
      %v766 = vpop.f32.mrf.mxu0
      %v767 = vadd.f32 %v558, %v766
      %768 = vdwg.mxu0
      %769 = vmatpush.msra.mxu0 %v523
      %770 = vmatpush.msra.mxu0 %v522
      %771 = vmatpush.msra.mxu0 %v521
      %772 = vmatpush.msra.mxu0 %v520
      %773 = vmatpush.msra.mxu0 %v519
      %774 = vmatpush.msra.mxu0 %v518
      %775 = vmatpush.msra.mxu0 %v517
      %776 = vmatpush.msra.mxu0 %v516
      %777 = vmatpush.msra.mxu0 %v515
      %778 = vmatpush.msra.mxu0 %v514
      %779 = vmatpush.msra.mxu0 %v513
      %780 = vmatpush.msra.mxu0 %v512
      %781 = vmatpush.msra.mxu0 %v511
      %782 = vmatpush.msra.mxu0 %v510
      %783 = vmatpush.msra.mxu0 %v509
      %784 = vmatpush.msra.mxu0 %v508
      %785 = vmatmul.f32.gmra.mxu0 %v237
      %v786 = vpop.f32.mrf.mxu0
      %v787 = vadd.f32 %v578, %v786
      %788 = vmatmul.f32.gmra.mxu0 %v241
      %v789 = vpop.f32.mrf.mxu0
      %v790 = vadd.f32 %v581, %v789
      %791 = vmatmul.f32.gmra.mxu0 %v245
      %v792 = vpop.f32.mrf.mxu0
      %v793 = vadd.f32 %v584, %v792
      %794 = vmatmul.f32.gmra.mxu0 %v249
      %v795 = vpop.f32.mrf.mxu0
      %v796 = vadd.f32 %v587, %v795
      %797 = vmatmul.f32.gmra.mxu0 %v253
      %v798 = vpop.f32.mrf.mxu0
      %v799 = vadd.f32 %v590, %v798
      %800 = vmatmul.f32.gmra.mxu0 %v257
      %v801 = vpop.f32.mrf.mxu0
      %v802 = vadd.f32 %v593, %v801
      %803 = vmatmul.f32.gmra.mxu0 %v261
      %v804 = vpop.f32.mrf.mxu0
      %v805 = vadd.f32 %v596, %v804
      %806 = vmatmul.f32.gmra.mxu0 %v265
      %v807 = vpop.f32.mrf.mxu0
      %v808 = vadd.f32 %v599, %v807
      %809 = vmatmul.f32.gmra.mxu0 %v269
      %v810 = vpop.f32.mrf.mxu0
      %v811 = vadd.f32 %v602, %v810
      %812 = vmatmul.f32.gmra.mxu0 %v273
      %v813 = vpop.f32.mrf.mxu0
      %v814 = vadd.f32 %v605, %v813
      %815 = vmatmul.f32.gmra.mxu0 %v277
      %v816 = vpop.f32.mrf.mxu0
      %v817 = vadd.f32 %v608, %v816
      %818 = vmatmul.f32.gmra.mxu0 %v281
      %v819 = vpop.f32.mrf.mxu0
      %v820 = vadd.f32 %v611, %v819
      %821 = vmatmul.f32.gmra.mxu0 %v285
      %v822 = vpop.f32.mrf.mxu0
      %v823 = vadd.f32 %v614, %v822
      %824 = vmatmul.f32.gmra.mxu0 %v289
      %v825 = vpop.f32.mrf.mxu0
      %v826 = vadd.f32 %v617, %v825
      %827 = vmatmul.f32.gmra.mxu0 %v293
      %v828 = vpop.f32.mrf.mxu0
      %v829 = vadd.f32 %v620, %v828
      %830 = vmatmul.f32.gmra.mxu0 %v297
      %v831 = vpop.f32.mrf.mxu0
      %v832 = vadd.f32 %v623, %v831
      %833 = vmatmul.f32.gmra.mxu0 %v301
      %v834 = vpop.f32.mrf.mxu0
      %v835 = vadd.f32 %v626, %v834
      %836 = vmatmul.f32.gmra.mxu0 %v305
      %v837 = vpop.f32.mrf.mxu0
      %v838 = vadd.f32 %v629, %v837
      %839 = vmatmul.f32.gmra.mxu0 %v309
      %v840 = vpop.f32.mrf.mxu0
      %v841 = vadd.f32 %v632, %v840
      %842 = vmatmul.f32.gmra.mxu0 %v313
      %v843 = vpop.f32.mrf.mxu0
      %v844 = vadd.f32 %v635, %v843
      %845 = vmatmul.f32.gmra.mxu0 %v317
      %v846 = vpop.f32.mrf.mxu0
      %v847 = vadd.f32 %v638, %v846
      %848 = vmatmul.f32.gmra.mxu0 %v321
      %v849 = vpop.f32.mrf.mxu0
      %v850 = vadd.f32 %v641, %v849
      %851 = vmatmul.f32.gmra.mxu0 %v325
      %v852 = vpop.f32.mrf.mxu0
      %v853 = vadd.f32 %v644, %v852
      %854 = vmatmul.f32.gmra.mxu0 %v329
      %v855 = vpop.f32.mrf.mxu0
      %v856 = vadd.f32 %v647, %v855
      %857 = vmatmul.f32.gmra.mxu0 %v333
      %v858 = vpop.f32.mrf.mxu0
      %v859 = vadd.f32 %v650, %v858
      %860 = vmatmul.f32.gmra.mxu0 %v337
      %v861 = vpop.f32.mrf.mxu0
      %v862 = vadd.f32 %v653, %v861
      %863 = vmatmul.f32.gmra.mxu0 %v341
      %v864 = vpop.f32.mrf.mxu0
      %v865 = vadd.f32 %v656, %v864
      %866 = vmatmul.f32.gmra.mxu0 %v345
      %v867 = vpop.f32.mrf.mxu0
      %v868 = vadd.f32 %v659, %v867
      %869 = vmatmul.f32.gmra.mxu0 %v349
      %v870 = vpop.f32.mrf.mxu0
      %v871 = vadd.f32 %v662, %v870
      %872 = vmatmul.f32.gmra.mxu0 %v353
      %v873 = vpop.f32.mrf.mxu0
      %v874 = vadd.f32 %v665, %v873
      %875 = vmatmul.f32.gmra.mxu0 %v357
      %v876 = vpop.f32.mrf.mxu0
      %v877 = vadd.f32 %v668, %v876
      %878 = vmatmul.f32.gmra.mxu0 %v361
      %v879 = vpop.f32.mrf.mxu0
      %v880 = vadd.f32 %v671, %v879
      %881 = vmatmul.f32.gmra.mxu0 %v365
      %v882 = vpop.f32.mrf.mxu0
      %v883 = vadd.f32 %v674, %v882
      %884 = vmatmul.f32.gmra.mxu0 %v369
      %v885 = vpop.f32.mrf.mxu0
      %v886 = vadd.f32 %v677, %v885
      %887 = vmatmul.f32.gmra.mxu0 %v373
      %v888 = vpop.f32.mrf.mxu0
      %v889 = vadd.f32 %v680, %v888
      %890 = vmatmul.f32.gmra.mxu0 %v377
      %v891 = vpop.f32.mrf.mxu0
      %v892 = vadd.f32 %v683, %v891
      %893 = vmatmul.f32.gmra.mxu0 %v381
      %v894 = vpop.f32.mrf.mxu0
      %v895 = vadd.f32 %v686, %v894
      %896 = vmatmul.f32.gmra.mxu0 %v385
      %v897 = vpop.f32.mrf.mxu0
      %v898 = vadd.f32 %v689, %v897
      %899 = vmatmul.f32.gmra.mxu0 %v389
      %v900 = vpop.f32.mrf.mxu0
      %v901 = vadd.f32 %v692, %v900
      %902 = vmatmul.f32.gmra.mxu0 %v393
      %v903 = vpop.f32.mrf.mxu0
      %v904 = vadd.f32 %v695, %v903
      %905 = vmatmul.f32.gmra.mxu0 %v397
      %v906 = vpop.f32.mrf.mxu0
      %v907 = vadd.f32 %v698, %v906
      %908 = vmatmul.f32.gmra.mxu0 %v401
      %v909 = vpop.f32.mrf.mxu0
      %v910 = vadd.f32 %v701, %v909
      %911 = vmatmul.f32.gmra.mxu0 %v405
      %v912 = vpop.f32.mrf.mxu0
      %v913 = vadd.f32 %v704, %v912
      %914 = vmatmul.f32.gmra.mxu0 %v409
      %v915 = vpop.f32.mrf.mxu0
      %v916 = vadd.f32 %v707, %v915
      %917 = vmatmul.f32.gmra.mxu0 %v413
      %v918 = vpop.f32.mrf.mxu0
      %v919 = vadd.f32 %v710, %v918
      %920 = vmatmul.f32.gmra.mxu0 %v417
      %v921 = vpop.f32.mrf.mxu0
      %v922 = vadd.f32 %v713, %v921
      %923 = vmatmul.f32.gmra.mxu0 %v421
      %v924 = vpop.f32.mrf.mxu0
      %v925 = vadd.f32 %v716, %v924
      %926 = vmatmul.f32.gmra.mxu0 %v425
      %v927 = vpop.f32.mrf.mxu0
      %v928 = vadd.f32 %v719, %v927
      %929 = vmatmul.f32.gmra.mxu0 %v429
      %v930 = vpop.f32.mrf.mxu0
      %v931 = vadd.f32 %v722, %v930
      %932 = vmatmul.f32.gmra.mxu0 %v433
      %v933 = vpop.f32.mrf.mxu0
      %v934 = vadd.f32 %v725, %v933
      %935 = vmatmul.f32.gmra.mxu0 %v437
      %v936 = vpop.f32.mrf.mxu0
      %v937 = vadd.f32 %v728, %v936
      %938 = vmatmul.f32.gmra.mxu0 %v441
      %v939 = vpop.f32.mrf.mxu0
      %v940 = vadd.f32 %v731, %v939
      %941 = vmatmul.f32.gmra.mxu0 %v445
      %v942 = vpop.f32.mrf.mxu0
      %v943 = vadd.f32 %v734, %v942
      %944 = vmatmul.f32.gmra.mxu0 %v449
      %v945 = vpop.f32.mrf.mxu0
      %v946 = vadd.f32 %v737, %v945
      %947 = vmatmul.f32.gmra.mxu0 %v453
      %v948 = vpop.f32.mrf.mxu0
      %v949 = vadd.f32 %v740, %v948
      %950 = vmatmul.f32.gmra.mxu0 %v457
      %v951 = vpop.f32.mrf.mxu0
      %v952 = vadd.f32 %v743, %v951
      %953 = vmatmul.f32.gmra.mxu0 %v461
      %v954 = vpop.f32.mrf.mxu0
      %v955 = vadd.f32 %v746, %v954
      %956 = vmatmul.f32.gmra.mxu0 %v465
      %v957 = vpop.f32.mrf.mxu0
      %v958 = vadd.f32 %v749, %v957
      %959 = vmatmul.f32.gmra.mxu0 %v469
      %v960 = vpop.f32.mrf.mxu0
      %v961 = vadd.f32 %v752, %v960
      %962 = vmatmul.f32.gmra.mxu0 %v473
      %v963 = vpop.f32.mrf.mxu0
      %v964 = vadd.f32 %v755, %v963
      %965 = vmatmul.f32.gmra.mxu0 %v477
      %v966 = vpop.f32.mrf.mxu0
      %v967 = vadd.f32 %v758, %v966
      %968 = vmatmul.f32.gmra.mxu0 %v481
      %v969 = vpop.f32.mrf.mxu0
      %v970 = vadd.f32 %v761, %v969
      %971 = vmatmul.f32.gmra.mxu0 %v485
      %v972 = vpop.f32.mrf.mxu0
      %v973 = vadd.f32 %v764, %v972
      %974 = vmatmul.f32.gmra.mxu0 %v489
      %v975 = vpop.f32.mrf.mxu0
      %v976 = vadd.f32 %v767, %v975
      %977 = vdwg.mxu0
      %978 = vmatpush.msra.mxu0 %v539
      %979 = vmatpush.msra.mxu0 %v538
      %980 = vmatpush.msra.mxu0 %v537
      %981 = vmatpush.msra.mxu0 %v536
      %982 = vmatpush.msra.mxu0 %v535
      %983 = vmatpush.msra.mxu0 %v534
      %984 = vmatpush.msra.mxu0 %v533
      %985 = vmatpush.msra.mxu0 %v532
      %986 = vmatpush.msra.mxu0 %v531
      %987 = vmatpush.msra.mxu0 %v530
      %988 = vmatpush.msra.mxu0 %v529
      %989 = vmatpush.msra.mxu0 %v528
      %990 = vmatpush.msra.mxu0 %v527
      %991 = vmatpush.msra.mxu0 %v526
      %992 = vmatpush.msra.mxu0 %v525
      %993 = vmatpush.msra.mxu0 %v524
      %994 = vmatmul.f32.gmra.mxu0 %v238
      %v995 = vpop.f32.mrf.mxu0
      %v996 = vadd.f32 %v787, %v995
      %997 = vmatmul.f32.gmra.mxu0 %v242
      %v998 = vpop.f32.mrf.mxu0
      %v999 = vadd.f32 %v790, %v998
      %1000 = vmatmul.f32.gmra.mxu0 %v246
      %v1001 = vpop.f32.mrf.mxu0
      %v1002 = vadd.f32 %v793, %v1001
      %1003 = vmatmul.f32.gmra.mxu0 %v250
      %v1004 = vpop.f32.mrf.mxu0
      %v1005 = vadd.f32 %v796, %v1004
      %1006 = vmatmul.f32.gmra.mxu0 %v254
      %v1007 = vpop.f32.mrf.mxu0
      %v1008 = vadd.f32 %v799, %v1007
      %1009 = vmatmul.f32.gmra.mxu0 %v258
      %v1010 = vpop.f32.mrf.mxu0
      %v1011 = vadd.f32 %v802, %v1010
      %1012 = vmatmul.f32.gmra.mxu0 %v262
      %v1013 = vpop.f32.mrf.mxu0
      %v1014 = vadd.f32 %v805, %v1013
      %1015 = vmatmul.f32.gmra.mxu0 %v266
      %v1016 = vpop.f32.mrf.mxu0
      %v1017 = vadd.f32 %v808, %v1016
      %1018 = vmatmul.f32.gmra.mxu0 %v270
      %v1019 = vpop.f32.mrf.mxu0
      %v1020 = vadd.f32 %v811, %v1019
      %1021 = vmatmul.f32.gmra.mxu0 %v274
      %v1022 = vpop.f32.mrf.mxu0
      %v1023 = vadd.f32 %v814, %v1022
      %1024 = vmatmul.f32.gmra.mxu0 %v278
      %v1025 = vpop.f32.mrf.mxu0
      %v1026 = vadd.f32 %v817, %v1025
      %1027 = vmatmul.f32.gmra.mxu0 %v282
      %v1028 = vpop.f32.mrf.mxu0
      %v1029 = vadd.f32 %v820, %v1028
      %1030 = vmatmul.f32.gmra.mxu0 %v286
      %v1031 = vpop.f32.mrf.mxu0
      %v1032 = vadd.f32 %v823, %v1031
      %1033 = vmatmul.f32.gmra.mxu0 %v290
      %v1034 = vpop.f32.mrf.mxu0
      %v1035 = vadd.f32 %v826, %v1034
      %1036 = vmatmul.f32.gmra.mxu0 %v294
      %v1037 = vpop.f32.mrf.mxu0
      %v1038 = vadd.f32 %v829, %v1037
      %1039 = vmatmul.f32.gmra.mxu0 %v298
      %v1040 = vpop.f32.mrf.mxu0
      %v1041 = vadd.f32 %v832, %v1040
      %1042 = vmatmul.f32.gmra.mxu0 %v302
      %v1043 = vpop.f32.mrf.mxu0
      %v1044 = vadd.f32 %v835, %v1043
      %1045 = vmatmul.f32.gmra.mxu0 %v306
      %v1046 = vpop.f32.mrf.mxu0
      %v1047 = vadd.f32 %v838, %v1046
      %1048 = vmatmul.f32.gmra.mxu0 %v310
      %v1049 = vpop.f32.mrf.mxu0
      %v1050 = vadd.f32 %v841, %v1049
      %1051 = vmatmul.f32.gmra.mxu0 %v314
      %v1052 = vpop.f32.mrf.mxu0
      %v1053 = vadd.f32 %v844, %v1052
      %1054 = vmatmul.f32.gmra.mxu0 %v318
      %v1055 = vpop.f32.mrf.mxu0
      %v1056 = vadd.f32 %v847, %v1055
      %1057 = vmatmul.f32.gmra.mxu0 %v322
      %v1058 = vpop.f32.mrf.mxu0
      %v1059 = vadd.f32 %v850, %v1058
      %1060 = vmatmul.f32.gmra.mxu0 %v326
      %v1061 = vpop.f32.mrf.mxu0
      %v1062 = vadd.f32 %v853, %v1061
      %1063 = vmatmul.f32.gmra.mxu0 %v330
      %v1064 = vpop.f32.mrf.mxu0
      %v1065 = vadd.f32 %v856, %v1064
      %1066 = vmatmul.f32.gmra.mxu0 %v334
      %v1067 = vpop.f32.mrf.mxu0
      %v1068 = vadd.f32 %v859, %v1067
      %1069 = vmatmul.f32.gmra.mxu0 %v338
      %v1070 = vpop.f32.mrf.mxu0
      %v1071 = vadd.f32 %v862, %v1070
      %1072 = vmatmul.f32.gmra.mxu0 %v342
      %v1073 = vpop.f32.mrf.mxu0
      %v1074 = vadd.f32 %v865, %v1073
      %1075 = vmatmul.f32.gmra.mxu0 %v346
      %v1076 = vpop.f32.mrf.mxu0
      %v1077 = vadd.f32 %v868, %v1076
      %1078 = vmatmul.f32.gmra.mxu0 %v350
      %v1079 = vpop.f32.mrf.mxu0
      %v1080 = vadd.f32 %v871, %v1079
      %1081 = vmatmul.f32.gmra.mxu0 %v354
      %v1082 = vpop.f32.mrf.mxu0
      %v1083 = vadd.f32 %v874, %v1082
      %1084 = vmatmul.f32.gmra.mxu0 %v358
      %v1085 = vpop.f32.mrf.mxu0
      %v1086 = vadd.f32 %v877, %v1085
      %1087 = vmatmul.f32.gmra.mxu0 %v362
      %v1088 = vpop.f32.mrf.mxu0
      %v1089 = vadd.f32 %v880, %v1088
      %1090 = vmatmul.f32.gmra.mxu0 %v366
      %v1091 = vpop.f32.mrf.mxu0
      %v1092 = vadd.f32 %v883, %v1091
      %1093 = vmatmul.f32.gmra.mxu0 %v370
      %v1094 = vpop.f32.mrf.mxu0
      %v1095 = vadd.f32 %v886, %v1094
      %1096 = vmatmul.f32.gmra.mxu0 %v374
      %v1097 = vpop.f32.mrf.mxu0
      %v1098 = vadd.f32 %v889, %v1097
      %1099 = vmatmul.f32.gmra.mxu0 %v378
      %v1100 = vpop.f32.mrf.mxu0
      %v1101 = vadd.f32 %v892, %v1100
      %1102 = vmatmul.f32.gmra.mxu0 %v382
      %v1103 = vpop.f32.mrf.mxu0
      %v1104 = vadd.f32 %v895, %v1103
      %1105 = vmatmul.f32.gmra.mxu0 %v386
      %v1106 = vpop.f32.mrf.mxu0
      %v1107 = vadd.f32 %v898, %v1106
      %1108 = vmatmul.f32.gmra.mxu0 %v390
      %v1109 = vpop.f32.mrf.mxu0
      %v1110 = vadd.f32 %v901, %v1109
      %1111 = vmatmul.f32.gmra.mxu0 %v394
      %v1112 = vpop.f32.mrf.mxu0
      %v1113 = vadd.f32 %v904, %v1112
      %1114 = vmatmul.f32.gmra.mxu0 %v398
      %v1115 = vpop.f32.mrf.mxu0
      %v1116 = vadd.f32 %v907, %v1115
      %1117 = vmatmul.f32.gmra.mxu0 %v402
      %v1118 = vpop.f32.mrf.mxu0
      %v1119 = vadd.f32 %v910, %v1118
      %1120 = vmatmul.f32.gmra.mxu0 %v406
      %v1121 = vpop.f32.mrf.mxu0
      %v1122 = vadd.f32 %v913, %v1121
      %1123 = vmatmul.f32.gmra.mxu0 %v410
      %v1124 = vpop.f32.mrf.mxu0
      %v1125 = vadd.f32 %v916, %v1124
      %1126 = vmatmul.f32.gmra.mxu0 %v414
      %v1127 = vpop.f32.mrf.mxu0
      %v1128 = vadd.f32 %v919, %v1127
      %1129 = vmatmul.f32.gmra.mxu0 %v418
      %v1130 = vpop.f32.mrf.mxu0
      %v1131 = vadd.f32 %v922, %v1130
      %1132 = vmatmul.f32.gmra.mxu0 %v422
      %v1133 = vpop.f32.mrf.mxu0
      %v1134 = vadd.f32 %v925, %v1133
      %1135 = vmatmul.f32.gmra.mxu0 %v426
      %v1136 = vpop.f32.mrf.mxu0
      %v1137 = vadd.f32 %v928, %v1136
      %1138 = vmatmul.f32.gmra.mxu0 %v430
      %v1139 = vpop.f32.mrf.mxu0
      %v1140 = vadd.f32 %v931, %v1139
      %1141 = vmatmul.f32.gmra.mxu0 %v434
      %v1142 = vpop.f32.mrf.mxu0
      %v1143 = vadd.f32 %v934, %v1142
      %1144 = vmatmul.f32.gmra.mxu0 %v438
      %v1145 = vpop.f32.mrf.mxu0
      %v1146 = vadd.f32 %v937, %v1145
      %1147 = vmatmul.f32.gmra.mxu0 %v442
      %v1148 = vpop.f32.mrf.mxu0
      %v1149 = vadd.f32 %v940, %v1148
      %1150 = vmatmul.f32.gmra.mxu0 %v446
      %v1151 = vpop.f32.mrf.mxu0
      %v1152 = vadd.f32 %v943, %v1151
      %1153 = vmatmul.f32.gmra.mxu0 %v450
      %v1154 = vpop.f32.mrf.mxu0
      %v1155 = vadd.f32 %v946, %v1154
      %1156 = vmatmul.f32.gmra.mxu0 %v454
      %v1157 = vpop.f32.mrf.mxu0
      %v1158 = vadd.f32 %v949, %v1157
      %1159 = vmatmul.f32.gmra.mxu0 %v458
      %v1160 = vpop.f32.mrf.mxu0
      %v1161 = vadd.f32 %v952, %v1160
      %1162 = vmatmul.f32.gmra.mxu0 %v462
      %v1163 = vpop.f32.mrf.mxu0
      %v1164 = vadd.f32 %v955, %v1163
      %1165 = vmatmul.f32.gmra.mxu0 %v466
      %v1166 = vpop.f32.mrf.mxu0
      %v1167 = vadd.f32 %v958, %v1166
      %1168 = vmatmul.f32.gmra.mxu0 %v470
      %v1169 = vpop.f32.mrf.mxu0
      %v1170 = vadd.f32 %v961, %v1169
      %1171 = vmatmul.f32.gmra.mxu0 %v474
      %v1172 = vpop.f32.mrf.mxu0
      %v1173 = vadd.f32 %v964, %v1172
      %1174 = vmatmul.f32.gmra.mxu0 %v478
      %v1175 = vpop.f32.mrf.mxu0
      %v1176 = vadd.f32 %v967, %v1175
      %1177 = vmatmul.f32.gmra.mxu0 %v482
      %v1178 = vpop.f32.mrf.mxu0
      %v1179 = vadd.f32 %v970, %v1178
      %1180 = vmatmul.f32.gmra.mxu0 %v486
      %v1181 = vpop.f32.mrf.mxu0
      %v1182 = vadd.f32 %v973, %v1181
      %1183 = vmatmul.f32.gmra.mxu0 %v490
      %v1184 = vpop.f32.mrf.mxu0
      %v1185 = vadd.f32 %v976, %v1184
      %1186 = vdwg.mxu0
      %1187 = vmatpush.msra.mxu0 %v555
      %1188 = vmatpush.msra.mxu0 %v554
      %1189 = vmatpush.msra.mxu0 %v553
      %1190 = vmatpush.msra.mxu0 %v552
      %1191 = vmatpush.msra.mxu0 %v551
      %1192 = vmatpush.msra.mxu0 %v550
      %1193 = vmatpush.msra.mxu0 %v549
      %1194 = vmatpush.msra.mxu0 %v548
      %1195 = vmatpush.msra.mxu0 %v547
      %1196 = vmatpush.msra.mxu0 %v546
      %1197 = vmatpush.msra.mxu0 %v545
      %1198 = vmatpush.msra.mxu0 %v544
      %1199 = vmatpush.msra.mxu0 %v543
      %1200 = vmatpush.msra.mxu0 %v542
      %1201 = vmatpush.msra.mxu0 %v541
      %1202 = vmatpush.msra.mxu0 %v540
      %1203 = vmatmul.f32.gmra.mxu0 %v239
      %v1204 = vpop.f32.mrf.mxu0
      %v1205 = vadd.f32 %v996, %v1204
      %1206 = vmatmul.f32.gmra.mxu0 %v243
      %v1207 = vpop.f32.mrf.mxu0
      %v1208 = vadd.f32 %v999, %v1207
      %1209 = vmatmul.f32.gmra.mxu0 %v247
      %v1210 = vpop.f32.mrf.mxu0
      %v1211 = vadd.f32 %v1002, %v1210
      %1212 = vmatmul.f32.gmra.mxu0 %v251
      %v1213 = vpop.f32.mrf.mxu0
      %v1214 = vadd.f32 %v1005, %v1213
      %1215 = vmatmul.f32.gmra.mxu0 %v255
      %v1216 = vpop.f32.mrf.mxu0
      %v1217 = vadd.f32 %v1008, %v1216
      %1218 = vmatmul.f32.gmra.mxu0 %v259
      %v1219 = vpop.f32.mrf.mxu0
      %v1220 = vadd.f32 %v1011, %v1219
      %1221 = vmatmul.f32.gmra.mxu0 %v263
      %v1222 = vpop.f32.mrf.mxu0
      %v1223 = vadd.f32 %v1014, %v1222
      %1224 = vmatmul.f32.gmra.mxu0 %v267
      %v1225 = vpop.f32.mrf.mxu0
      %v1226 = vadd.f32 %v1017, %v1225
      %1227 = vmatmul.f32.gmra.mxu0 %v271
      %v1228 = vpop.f32.mrf.mxu0
      %v1229 = vadd.f32 %v1020, %v1228
      %1230 = vmatmul.f32.gmra.mxu0 %v275
      %v1231 = vpop.f32.mrf.mxu0
      %v1232 = vadd.f32 %v1023, %v1231
      %1233 = vmatmul.f32.gmra.mxu0 %v279
      %v1234 = vpop.f32.mrf.mxu0
      %v1235 = vadd.f32 %v1026, %v1234
      %1236 = vmatmul.f32.gmra.mxu0 %v283
      %v1237 = vpop.f32.mrf.mxu0
      %v1238 = vadd.f32 %v1029, %v1237
      %1239 = vmatmul.f32.gmra.mxu0 %v287
      %v1240 = vpop.f32.mrf.mxu0
      %v1241 = vadd.f32 %v1032, %v1240
      %1242 = vmatmul.f32.gmra.mxu0 %v291
      %v1243 = vpop.f32.mrf.mxu0
      %v1244 = vadd.f32 %v1035, %v1243
      %1245 = vmatmul.f32.gmra.mxu0 %v295
      %v1246 = vpop.f32.mrf.mxu0
      %v1247 = vadd.f32 %v1038, %v1246
      %1248 = vmatmul.f32.gmra.mxu0 %v299
      %v1249 = vpop.f32.mrf.mxu0
      %v1250 = vadd.f32 %v1041, %v1249
      %1251 = vmatmul.f32.gmra.mxu0 %v303
      %v1252 = vpop.f32.mrf.mxu0
      %v1253 = vadd.f32 %v1044, %v1252
      %1254 = vmatmul.f32.gmra.mxu0 %v307
      %v1255 = vpop.f32.mrf.mxu0
      %v1256 = vadd.f32 %v1047, %v1255
      %1257 = vmatmul.f32.gmra.mxu0 %v311
      %v1258 = vpop.f32.mrf.mxu0
      %v1259 = vadd.f32 %v1050, %v1258
      %1260 = vmatmul.f32.gmra.mxu0 %v315
      %v1261 = vpop.f32.mrf.mxu0
      %v1262 = vadd.f32 %v1053, %v1261
      %1263 = vmatmul.f32.gmra.mxu0 %v319
      %v1264 = vpop.f32.mrf.mxu0
      %v1265 = vadd.f32 %v1056, %v1264
      %1266 = vmatmul.f32.gmra.mxu0 %v323
      %v1267 = vpop.f32.mrf.mxu0
      %v1268 = vadd.f32 %v1059, %v1267
      %1269 = vmatmul.f32.gmra.mxu0 %v327
      %v1270 = vpop.f32.mrf.mxu0
      %v1271 = vadd.f32 %v1062, %v1270
      %1272 = vmatmul.f32.gmra.mxu0 %v331
      %v1273 = vpop.f32.mrf.mxu0
      %v1274 = vadd.f32 %v1065, %v1273
      %1275 = vmatmul.f32.gmra.mxu0 %v335
      %v1276 = vpop.f32.mrf.mxu0
      %v1277 = vadd.f32 %v1068, %v1276
      %1278 = vmatmul.f32.gmra.mxu0 %v339
      %v1279 = vpop.f32.mrf.mxu0
      %v1280 = vadd.f32 %v1071, %v1279
      %1281 = vmatmul.f32.gmra.mxu0 %v343
      %v1282 = vpop.f32.mrf.mxu0
      %v1283 = vadd.f32 %v1074, %v1282
      %1284 = vmatmul.f32.gmra.mxu0 %v347
      %v1285 = vpop.f32.mrf.mxu0
      %v1286 = vadd.f32 %v1077, %v1285
      %1287 = vmatmul.f32.gmra.mxu0 %v351
      %v1288 = vpop.f32.mrf.mxu0
      %v1289 = vadd.f32 %v1080, %v1288
      %1290 = vmatmul.f32.gmra.mxu0 %v355
      %v1291 = vpop.f32.mrf.mxu0
      %v1292 = vadd.f32 %v1083, %v1291
      %1293 = vmatmul.f32.gmra.mxu0 %v359
      %v1294 = vpop.f32.mrf.mxu0
      %v1295 = vadd.f32 %v1086, %v1294
      %1296 = vmatmul.f32.gmra.mxu0 %v363
      %v1297 = vpop.f32.mrf.mxu0
      %v1298 = vadd.f32 %v1089, %v1297
      %1299 = vmatmul.f32.gmra.mxu0 %v367
      %v1300 = vpop.f32.mrf.mxu0
      %v1301 = vadd.f32 %v1092, %v1300
      %1302 = vmatmul.f32.gmra.mxu0 %v371
      %v1303 = vpop.f32.mrf.mxu0
      %v1304 = vadd.f32 %v1095, %v1303
      %1305 = vmatmul.f32.gmra.mxu0 %v375
      %v1306 = vpop.f32.mrf.mxu0
      %v1307 = vadd.f32 %v1098, %v1306
      %1308 = vmatmul.f32.gmra.mxu0 %v379
      %v1309 = vpop.f32.mrf.mxu0
      %v1310 = vadd.f32 %v1101, %v1309
      %1311 = vmatmul.f32.gmra.mxu0 %v383
      %v1312 = vpop.f32.mrf.mxu0
      %v1313 = vadd.f32 %v1104, %v1312
      %1314 = vmatmul.f32.gmra.mxu0 %v387
      %v1315 = vpop.f32.mrf.mxu0
      %v1316 = vadd.f32 %v1107, %v1315
      %1317 = vmatmul.f32.gmra.mxu0 %v391
      %v1318 = vpop.f32.mrf.mxu0
      %v1319 = vadd.f32 %v1110, %v1318
      %1320 = vmatmul.f32.gmra.mxu0 %v395
      %v1321 = vpop.f32.mrf.mxu0
      %v1322 = vadd.f32 %v1113, %v1321
      %1323 = vmatmul.f32.gmra.mxu0 %v399
      %v1324 = vpop.f32.mrf.mxu0
      %v1325 = vadd.f32 %v1116, %v1324
      %1326 = vmatmul.f32.gmra.mxu0 %v403
      %v1327 = vpop.f32.mrf.mxu0
      %v1328 = vadd.f32 %v1119, %v1327
      %1329 = vmatmul.f32.gmra.mxu0 %v407
      %v1330 = vpop.f32.mrf.mxu0
      %v1331 = vadd.f32 %v1122, %v1330
      %1332 = vmatmul.f32.gmra.mxu0 %v411
      %v1333 = vpop.f32.mrf.mxu0
      %v1334 = vadd.f32 %v1125, %v1333
      %1335 = vmatmul.f32.gmra.mxu0 %v415
      %v1336 = vpop.f32.mrf.mxu0
      %v1337 = vadd.f32 %v1128, %v1336
      %1338 = vmatmul.f32.gmra.mxu0 %v419
      %v1339 = vpop.f32.mrf.mxu0
      %v1340 = vadd.f32 %v1131, %v1339
      %1341 = vmatmul.f32.gmra.mxu0 %v423
      %v1342 = vpop.f32.mrf.mxu0
      %v1343 = vadd.f32 %v1134, %v1342
      %1344 = vmatmul.f32.gmra.mxu0 %v427
      %v1345 = vpop.f32.mrf.mxu0
      %v1346 = vadd.f32 %v1137, %v1345
      %1347 = vmatmul.f32.gmra.mxu0 %v431
      %v1348 = vpop.f32.mrf.mxu0
      %v1349 = vadd.f32 %v1140, %v1348
      %1350 = vmatmul.f32.gmra.mxu0 %v435
      %v1351 = vpop.f32.mrf.mxu0
      %v1352 = vadd.f32 %v1143, %v1351
      %1353 = vmatmul.f32.gmra.mxu0 %v439
      %v1354 = vpop.f32.mrf.mxu0
      %v1355 = vadd.f32 %v1146, %v1354
      %1356 = vmatmul.f32.gmra.mxu0 %v443
      %v1357 = vpop.f32.mrf.mxu0
      %v1358 = vadd.f32 %v1149, %v1357
      %1359 = vmatmul.f32.gmra.mxu0 %v447
      %v1360 = vpop.f32.mrf.mxu0
      %v1361 = vadd.f32 %v1152, %v1360
      %1362 = vmatmul.f32.gmra.mxu0 %v451
      %v1363 = vpop.f32.mrf.mxu0
      %v1364 = vadd.f32 %v1155, %v1363
      %1365 = vmatmul.f32.gmra.mxu0 %v455
      %v1366 = vpop.f32.mrf.mxu0
      %v1367 = vadd.f32 %v1158, %v1366
      %1368 = vmatmul.f32.gmra.mxu0 %v459
      %v1369 = vpop.f32.mrf.mxu0
      %v1370 = vadd.f32 %v1161, %v1369
      %1371 = vmatmul.f32.gmra.mxu0 %v463
      %v1372 = vpop.f32.mrf.mxu0
      %v1373 = vadd.f32 %v1164, %v1372
      %1374 = vmatmul.f32.gmra.mxu0 %v467
      %v1375 = vpop.f32.mrf.mxu0
      %v1376 = vadd.f32 %v1167, %v1375
      %1377 = vmatmul.f32.gmra.mxu0 %v471
      %v1378 = vpop.f32.mrf.mxu0
      %v1379 = vadd.f32 %v1170, %v1378
      %1380 = vmatmul.f32.gmra.mxu0 %v475
      %v1381 = vpop.f32.mrf.mxu0
      %v1382 = vadd.f32 %v1173, %v1381
      %1383 = vmatmul.f32.gmra.mxu0 %v479
      %v1384 = vpop.f32.mrf.mxu0
      %v1385 = vadd.f32 %v1176, %v1384
      %1386 = vmatmul.f32.gmra.mxu0 %v483
      %v1387 = vpop.f32.mrf.mxu0
      %v1388 = vadd.f32 %v1179, %v1387
      %1389 = vmatmul.f32.gmra.mxu0 %v487
      %v1390 = vpop.f32.mrf.mxu0
      %v1391 = vadd.f32 %v1182, %v1390
      %1392 = vmatmul.f32.gmra.mxu0 %v491
      %v1393 = vpop.f32.mrf.mxu0
      %v1394 = vadd.f32 %v1185, %v1393
      %1395 = vdwg.mxu0
      %v1396 = vtanh.pop %v1205
      %v1397 = vtanh.pop %v1208
      %v1398 = vtanh.pop %v1211
      %v1399 = vtanh.pop %v1214
      %v1400 = vtanh.pop %v1217
      %v1401 = vtanh.pop %v1220
      %v1402 = vtanh.pop %v1223
      %v1403 = vtanh.pop %v1226
      %v1404 = vtanh.pop %v1229
      %v1405 = vtanh.pop %v1232
      %v1406 = vtanh.pop %v1235
      %v1407 = vtanh.pop %v1238
      %v1408 = vtanh.pop %v1241
      %v1409 = vtanh.pop %v1244
      %v1410 = vtanh.pop %v1247
      %v1411 = vtanh.pop %v1250
      %v1412 = vtanh.pop %v1253
      %v1413 = vtanh.pop %v1256
      %v1414 = vtanh.pop %v1259
      %v1415 = vtanh.pop %v1262
      %v1416 = vtanh.pop %v1265
      %v1417 = vtanh.pop %v1268
      %v1418 = vtanh.pop %v1271
      %v1419 = vtanh.pop %v1274
      %v1420 = vtanh.pop %v1277
      %v1421 = vtanh.pop %v1280
      %v1422 = vtanh.pop %v1283
      %v1423 = vtanh.pop %v1286
      %v1424 = vtanh.pop %v1289
      %v1425 = vtanh.pop %v1292
      %v1426 = vtanh.pop %v1295
      %v1427 = vtanh.pop %v1298
      %v1428 = vtanh.pop %v1301
      %v1429 = vtanh.pop %v1304
      %v1430 = vtanh.pop %v1307
      %v1431 = vtanh.pop %v1310
      %v1432 = vtanh.pop %v1313
      %v1433 = vtanh.pop %v1316
      %v1434 = vtanh.pop %v1319
      %v1435 = vtanh.pop %v1322
      %v1436 = vtanh.pop %v1325
      %v1437 = vtanh.pop %v1328
      %v1438 = vtanh.pop %v1331
      %v1439 = vtanh.pop %v1334
      %v1440 = vtanh.pop %v1337
      %v1441 = vtanh.pop %v1340
      %v1442 = vtanh.pop %v1343
      %v1443 = vtanh.pop %v1346
      %v1444 = vtanh.pop %v1349
      %v1445 = vtanh.pop %v1352
      %v1446 = vtanh.pop %v1355
      %v1447 = vtanh.pop %v1358
      %v1448 = vtanh.pop %v1361
      %v1449 = vtanh.pop %v1364
      %v1450 = vtanh.pop %v1367
      %v1451 = vtanh.pop %v1370
      %v1452 = vtanh.pop %v1373
      %v1453 = vtanh.pop %v1376
      %v1454 = vtanh.pop %v1379
      %v1455 = vtanh.pop %v1382
      %v1456 = vtanh.pop %v1385
      %v1457 = vtanh.pop %v1388
      %v1458 = vtanh.pop %v1391
      %v1459 = vtanh.pop %v1394
      %1460 = vst [vmem:[%s235] sm:$0xff] %v1396
      %1461 = vst [vmem:[%s235 + $0x8] sm:$0xff] %v1397
      %1462 = vst [vmem:[%s235 + $0x10] sm:$0xff] %v1398
      %1463 = vst [vmem:[%s235 + $0x18] sm:$0xff] %v1399
      %1464 = vst [vmem:[%s235 + $0x20] sm:$0xff] %v1400
      %1465 = vst [vmem:[%s235 + $0x28] sm:$0xff] %v1401
      %1466 = vst [vmem:[%s235 + $0x30] sm:$0xff] %v1402
      %1467 = vst [vmem:[%s235 + $0x38] sm:$0xff] %v1403
      %1468 = vst [vmem:[%s235 + $0x40] sm:$0xff] %v1404
      %1469 = vst [vmem:[%s235 + $0x48] sm:$0xff] %v1405
      %1470 = vst [vmem:[%s235 + $0x50] sm:$0xff] %v1406
      %1471 = vst [vmem:[%s235 + $0x58] sm:$0xff] %v1407
      %1472 = vst [vmem:[%s235 + $0x60] sm:$0xff] %v1408
      %1473 = vst [vmem:[%s235 + $0x68] sm:$0xff] %v1409
      %1474 = vst [vmem:[%s235 + $0x70] sm:$0xff] %v1410
      %1475 = vst [vmem:[%s235 + $0x78] sm:$0xff] %v1411
      %1476 = vst [vmem:[%s235 + $0x80] sm:$0xff] %v1412
      %1477 = vst [vmem:[%s235 + $0x88] sm:$0xff] %v1413
      %1478 = vst [vmem:[%s235 + $0x90] sm:$0xff] %v1414
      %1479 = vst [vmem:[%s235 + $0x98] sm:$0xff] %v1415
      %1480 = vst [vmem:[%s235 + $0xa0] sm:$0xff] %v1416
      %1481 = vst [vmem:[%s235 + $0xa8] sm:$0xff] %v1417
      %1482 = vst [vmem:[%s235 + $0xb0] sm:$0xff] %v1418
      %1483 = vst [vmem:[%s235 + $0xb8] sm:$0xff] %v1419
      %1484 = vst [vmem:[%s235 + $0xc0] sm:$0xff] %v1420
      %1485 = vst [vmem:[%s235 + $0xc8] sm:$0xff] %v1421
      %1486 = vst [vmem:[%s235 + $0xd0] sm:$0xff] %v1422
      %1487 = vst [vmem:[%s235 + $0xd8] sm:$0xff] %v1423
      %1488 = vst [vmem:[%s235 + $0xe0] sm:$0xff] %v1424
      %1489 = vst [vmem:[%s235 + $0xe8] sm:$0xff] %v1425
      %1490 = vst [vmem:[%s235 + $0xf0] sm:$0xff] %v1426
      %1491 = vst [vmem:[%s235 + $0xf8] sm:$0xff] %v1427
      %1492 = vst [vmem:[%s235 + $0x100] sm:$0xff] %v1428
      %1493 = vst [vmem:[%s235 + $0x108] sm:$0xff] %v1429
      %1494 = vst [vmem:[%s235 + $0x110] sm:$0xff] %v1430
      %1495 = vst [vmem:[%s235 + $0x118] sm:$0xff] %v1431
      %1496 = vst [vmem:[%s235 + $0x120] sm:$0xff] %v1432
      %1497 = vst [vmem:[%s235 + $0x128] sm:$0xff] %v1433
      %1498 = vst [vmem:[%s235 + $0x130] sm:$0xff] %v1434
      %1499 = vst [vmem:[%s235 + $0x138] sm:$0xff] %v1435
      %1500 = vst [vmem:[%s235 + $0x140] sm:$0xff] %v1436
      %1501 = vst [vmem:[%s235 + $0x148] sm:$0xff] %v1437
      %1502 = vst [vmem:[%s235 + $0x150] sm:$0xff] %v1438
      %1503 = vst [vmem:[%s235 + $0x158] sm:$0xff] %v1439
      %1504 = vst [vmem:[%s235 + $0x160] sm:$0xff] %v1440
      %1505 = vst [vmem:[%s235 + $0x168] sm:$0xff] %v1441
      %1506 = vst [vmem:[%s235 + $0x170] sm:$0xff] %v1442
      %1507 = vst [vmem:[%s235 + $0x178] sm:$0xff] %v1443
      %1508 = vst [vmem:[%s235 + $0x180] sm:$0xff] %v1444
      %1509 = vst [vmem:[%s235 + $0x188] sm:$0xff] %v1445
      %1510 = vst [vmem:[%s235 + $0x190] sm:$0xff] %v1446
      %1511 = vst [vmem:[%s235 + $0x198] sm:$0xff] %v1447
      %1512 = vst [vmem:[%s235 + $0x1a0] sm:$0xff] %v1448
      %1513 = vst [vmem:[%s235 + $0x1a8] sm:$0xff] %v1449
      %1514 = vst [vmem:[%s235 + $0x1b0] sm:$0xff] %v1450
      %1515 = vst [vmem:[%s235 + $0x1b8] sm:$0xff] %v1451
      %1516 = vst [vmem:[%s235 + $0x1c0] sm:$0xff] %v1452
      %1517 = vst [vmem:[%s235 + $0x1c8] sm:$0xff] %v1453
      %1518 = vst [vmem:[%s235 + $0x1d0] sm:$0xff] %v1454
      %1519 = vst [vmem:[%s235 + $0x1d8] sm:$0xff] %v1455
      %1520 = vst [vmem:[%s235 + $0x1e0] sm:$0xff] %v1456
      %1521 = vst [vmem:[%s235 + $0x1e8] sm:$0xff] %v1457
      %1522 = vst [vmem:[%s235 + $0x1f0] sm:$0xff] %v1458
      %1523 = vst [vmem:[%s235 + $0x1f8] sm:$0xff] %v1459
      %p1524 = scmp.lt.s32.totalorder %s18, 3
      %s1525 = scalar_select %p1524, %s18, 3
      %p1526 = scmp.lt.s32.totalorder %s19, 0
      %s1527 = scalar_select %p1526, %s19, 0
      %s1528 = smul.addr %s1525, 64
      %s1529 = sadd.s32 %s1527, %s1528
      %s1530 = smul.addr %s1529, 8
      %s1531 = scalar_lea.vmem %s3, %s1530
      // Predicated region
      $region33: #{generator32_forward.9} parent=31 // pred_check
        %p1532 = pneg %p126
      $region34: #{generator32_forward.9} parent=31 // pred_check_branch
        %1534 = sbr.rel (%p1532) target = $region36
      $region35: #{generator32_forward.9} parent=31 // pred_region
        _
      $region36: #{generator32_forward.9} parent=31 // pred_fallthru
        _
    $region32: #{generator32_forward.9} parent=5 // pred_fallthru
      _
    %p1535 = scmp.le.s32.totalorder 2, %s9
    // Predicated region
    $region37: #{generator32_forward.9} parent=5 // pred_check
      %p1536 = pneg %p1535
    $region38: #{generator32_forward.9} parent=5 // pred_check_branch
      %1538 = sbr.rel (%p1536) target = $region40
    $region39: #{generator32_forward.9} parent=5 // pred_region
      %s1539 = ssub.s32 %s9, 2
      // Predicated region
      $region41: #{generator32_forward.9} parent=39 // pred_check
        %p1540 = pneg %p132
      $region42: #{generator32_forward.9} parent=39 // pred_check_branch
        %1542 = sbr.rel (%p1540) target = $region44
      $region43: #{generator32_forward.9} parent=39 // pred_region
        %p1543 = scmp.lt.s32.totalorder %s20, 3
        %s1544 = scalar_select %p1543, %s20, 3
        %p1545 = scmp.lt.s32.totalorder %s21, 0
        %s1546 = scalar_select %p1545, %s21, 0
        %s1547 = smul.addr %s1544, 64
        %s1548 = sadd.s32 %s1546, %s1547
        %s1549 = smul.addr %s1548, 8
        %s1550 = scalar_lea.vmem %s3, %s1549
      $region44: #{generator32_forward.9} parent=39 // pred_fallthru
        _
    $region40: #{generator32_forward.9} parent=5 // pred_fallthru
      _
  $region6: #{generator32_forward.9} parent=0 // loop_footer
    %s13 = sadd.s32 1, %s9
  $region7: #{generator32_forward.9} parent=0 // loop_footer_branch
    %8 = sbr.rel target = $region3
  $region8: #{generator32_forward.9} parent=0 // loop_exit
    _

</llo_original>
